<compile_context>
chip_gen: v7x
topology: tpu7x:2x2x1
jax: 0.10.0
libtpu: 0.0.40
codegen_flags: <defaults>
</compile_context>

<pallas_src>
import functools

import jax
import jax.numpy as jnp
from jax.experimental import pallas as pl
from jax.experimental.pallas import tpu as pltpu


def _choose_time_chunk(T):
    for tc in (32, 16, 8, 4, 2, 1):
        if T % tc == 0:
            return tc
    return 1


# ----------------------------- Pallas kernel ------------------------------ #
def bilstm_chunk_kernel(xp_ref, whh_ref, out_ref, h_sc, c_sc, *, time_chunk):
    """One chunk of `time_chunk` LSTM steps for one direction.

    Grid = (direction, time_chunk_index):
      axis 0 ("parallel")  : 0 = forward, 1 = reverse (independent recurrences)
      axis 1 ("arbitrary") : time chunks, sequential (the recurrence)

    xp_ref : (Tc, 4, Bp, H) bf16  precomputed x @ W_ih^T + bias, gate-major
    whh_ref: (4, H, H)      bf16  W_hh^T per gate, gate-major (resident)
    out_ref: (Tc, Bp, H)    bf16  hidden outputs for this chunk
    h_sc/c_sc: (Bp, H) f32        recurrent state, persists across time chunks
    """
    d = pl.program_id(0)   # direction
    c = pl.program_id(1)   # time-chunk index (reverse direction gets reversed
                           # chunks from the index_map + in-chunk offset below)

    @pl.when(c == 0)
    def _():
        h_sc[...] = jnp.zeros_like(h_sc)
        c_sc[...] = jnp.zeros_like(c_sc)

    # Loop-invariant recurrent weights, hoisted out of the time loop.
    w_i = whh_ref[0]
    w_f = whh_ref[1]
    w_g = whh_ref[2]
    w_o = whh_ref[3]

    def step(s, carry):
        # within-chunk offset: s for forward, Tc-1-s for reverse
        o = s + d * (time_chunk - 1 - 2 * s)

        xg = xp_ref[o]                          # (4, Bp, H) bf16
        hb = h_sc[...].astype(w_i.dtype)        # bf16 operand for the MXU

        pre_i = xg[0].astype(jnp.float32) + jnp.dot(hb, w_i, preferred_element_type=jnp.float32)
        pre_f = xg[1].astype(jnp.float32) + jnp.dot(hb, w_f, preferred_element_type=jnp.float32)
        pre_g = xg[2].astype(jnp.float32) + jnp.dot(hb, w_g, preferred_element_type=jnp.float32)
        pre_o = xg[3].astype(jnp.float32) + jnp.dot(hb, w_o, preferred_element_type=jnp.float32)

        i_g = jax.nn.sigmoid(pre_i)             # gate math stays f32 (v5e-safe)
        f_g = jax.nn.sigmoid(pre_f)
        g_g = jnp.tanh(pre_g)
        o_g = jax.nn.sigmoid(pre_o)

        c_new = f_g * c_sc[...] + i_g * g_g
        h_new = o_g * jnp.tanh(c_new)

        c_sc[...] = c_new
        h_sc[...] = h_new
        out_ref[o] = h_new.astype(out_ref.dtype)
        return carry

    jax.lax.fori_loop(0, time_chunk, step, 0,
                      unroll=True if time_chunk <= 8 else 4)


# ---------------------------- per-layer launch ----------------------------- #
def bilstm_layer(xp, whh):
    """xp: (2, T, 4, Bp, H) bf16 projections; whh: (2, 4, H, H) recurrent weights.
    Returns (2, T, Bp, H) bf16 hidden outputs (dir 0 = forward, dir 1 = reverse)."""
    _, T, _, Bp, H = xp.shape
    Tc = _choose_time_chunk(T)
    nc = T // Tc

    # forward (d=0) walks chunks 0..nc-1; reverse (d=1) walks nc-1..0
    def time_block(d, c):
        return c + d * (nc - 1 - 2 * c)

    xp_spec = pl.BlockSpec((pl.Squeezed(), Tc, 4, Bp, H),
                           lambda d, c: (d, time_block(d, c), 0, 0, 0))
    whh_spec = pl.BlockSpec((pl.Squeezed(), 4, H, H),
                            lambda d, c: (d, 0, 0, 0))
    out_spec = pl.BlockSpec((pl.Squeezed(), Tc, Bp, H),
                            lambda d, c: (d, time_block(d, c), 0, 0))

    # VMEM budget: double-buffered xp/out/weight blocks + f32 state.
    est_vmem = 2 * (Tc * 4 * Bp * H * 2 + Tc * Bp * H * 2 + 4 * H * H * 2) + 2 * Bp * H * 4
    ckwargs = dict(dimension_semantics=("parallel", "arbitrary"))
    if est_vmem > 24 * (1 << 20):
        # Only relevant at large H: raise the default 32 MiB scoped limit (v6e has
        # 128 MiB physical).  On v7x (64 MiB physical) shrink Tc instead.
        ckwargs["vmem_limit_bytes"] = int(min(1.5 * est_vmem, 96 * (1 << 20)))

    return pl.pallas_call(
        functools.partial(bilstm_chunk_kernel, time_chunk=Tc),
        out_shape=jax.ShapeDtypeStruct((2, T, Bp, H), jnp.bfloat16),
        grid=(2, nc),
        in_specs=[xp_spec, whh_spec],
        out_specs=out_spec,
        scratch_shapes=[
            pltpu.VMEM((Bp, H), jnp.float32),   # h state
            pltpu.VMEM((Bp, H), jnp.float32),   # c state
        ],
        compiler_params=pltpu.CompilerParams(**ckwargs),
    )(xp, whh.astype(jnp.bfloat16))


# ------------------------ hoisted input projection ------------------------- #
def input_projection(x_parts, wih, bias):
    """Batched (time-hoisted) input projection for both directions and all gates.

    x_parts: list of (T, Bp, Di) slabs whose concat along the last axis is the layer
             input (avoids materialising the per-layer concatenate of the two directions).
    wih    : (2, 4, D, H) with D = sum(Di);  bias: (2, 4, H)  (b_ih + b_hh fused)
    Returns (2, T, 4, Bp, H) bf16.
    """
    acc = None
    off = 0
    for part in x_parts:
        di = part.shape[-1]
        w = wih[:, :, off:off + di, :].astype(jnp.bfloat16)
        term = jnp.einsum('tbf,cgfh->ctgbh', part.astype(jnp.bfloat16), w,
                          preferred_element_type=jnp.float32)
        acc = term if acc is None else acc + term
        off += di
    acc = acc + bias[:, None, :, None, :]
    return acc.astype(jnp.bfloat16)


# ----------------------------- BiRNN wrapper ------------------------------- #
def birnn_forward(x, params):
    """x: (B, T, input_size) batch-first, like the PyTorch module.
    Returns (B, T, 2*hidden) float32 — full bidirectional sequence output."""
    B, T, _ = x.shape
    Bp = max(8, ((B + 7) // 8) * 8)              # pad batch to sublane granularity
    x_tm = jnp.transpose(x, (1, 0, 2))           # time-major (T, B, D)
    if Bp != B:
        x_tm = jnp.pad(x_tm, ((0, 0), (0, Bp - B), (0, 0)))

    parts = [x_tm]
    for wih, whh, bias in params:
        xp = input_projection(parts, wih, bias)  # (2, T, 4, Bp, H) bf16
        out = bilstm_layer(xp, whh)              # (2, T, Bp, H)    bf16
        parts = [out[0], out[1]]                 # next-layer input, no concat

    y = jnp.concatenate(parts, axis=-1)          # (T, Bp, 2H) — final concat only
    return jnp.transpose(y[:, :B].astype(jnp.float32), (1, 0, 2))


# --------------------------- parameter creation ---------------------------- #
def init_params(key, input_size, hidden_size, num_layers):
    """PyTorch-style init U(-1/sqrt(H), 1/sqrt(H)), stored gate-major & pre-transposed:
    wih: (2, 4, D_in, H), whh: (2, 4, H, H), bias: (2, 4, H) = b_ih + b_hh.
    Gate order matches PyTorch: i, f, g, o.  Direction 0 = forward, 1 = reverse."""
    k = 1.0 / (hidden_size ** 0.5)
    params = []
    for layer in range(num_layers):
        d_in = input_size if layer == 0 else 2 * hidden_size
        key, k1, k2, k3, k4 = jax.random.split(key, 5)
        wih = jax.random.uniform(k1, (2, 4, d_in, hidden_size), jnp.float32, -k, k)
        whh = jax.random.uniform(k2, (2, 4, hidden_size, hidden_size), jnp.float32, -k, k)
        b_ih = jax.random.uniform(k3, (2, 4, hidden_size), jnp.float32, -k, k)
        b_hh = jax.random.uniform(k4, (2, 4, hidden_size), jnp.float32, -k, k)
        params.append((wih, whh, b_ih + b_hh))
    return params


# ---------------------------- pure-JAX reference --------------------------- #
def _ref_direction(x_tm, wih_c, whh_c, b_c, *, reverse):
    T, B, _ = x_tm.shape
    H = whh_c.shape[-1]
    xs = x_tm[::-1] if reverse else x_tm

    def step(carry, x):
        h, c = carry
        g = (jnp.einsum('bd,gdh->gbh', x, wih_c)
             + jnp.einsum('bh,ghk->gbk', h, whh_c)
             + b_c[:, None, :])
        i = jax.nn.sigmoid(g[0])
        f = jax.nn.sigmoid(g[1])
        gg = jnp.tanh(g[2])
        o = jax.nn.sigmoid(g[3])
        c = f * c + i * gg
        h = o * jnp.tanh(c)
        return (h, c), h

    init = (jnp.zeros((B, H), jnp.float32), jnp.zeros((B, H), jnp.float32))
    _, ys = jax.lax.scan(step, init, xs)
    return ys[::-1] if reverse else ys


def birnn_ref(x, params):
    x_tm = jnp.transpose(x, (1, 0, 2)).astype(jnp.float32)
    for wih, whh, b in params:
        of = _ref_direction(x_tm, wih[0], whh[0], b[0], reverse=False)
        orv = _ref_direction(x_tm, wih[1], whh[1], b[1], reverse=True)
        x_tm = jnp.concatenate([of, orv], axis=-1)
    return jnp.transpose(x_tm, (1, 0, 2))


# --------------------------------- main ------------------------------------ #
if __name__ == "__main__":
    # Small shapes consistent with BiRNN(input_size, hidden_size, num_layers)
    batch, seq, input_size, hidden_size, num_layers = 2, 8, 16, 32, 2
    # NOTE: dropout_rate in the PyTorch __init__ is unused by its forward pass.

    key = jax.random.PRNGKey(0)
    key, kx = jax.random.split(key)
    x = jax.random.normal(kx, (batch, seq, input_size), jnp.float32)
    params = init_params(key, input_size, hidden_size, num_layers)

    fwd = jax.jit(birnn_forward)
    out = jax.block_until_ready(fwd(x, params))

    assert out.shape == (batch, seq, 2 * hidden_size), out.shape
    ref = jax.block_until_ready(birnn_ref(x, params))
    assert jnp.allclose(out, ref, atol=2e-2, rtol=2e-2), float(jnp.max(jnp.abs(out - ref)))

    print("KERNEL_OK")
</pallas_src>

<mosaic_0001>
module attributes {stable_mosaic.version = 11 : i64} {
  func.func @bilstm_chunk_kernel(%arg0: i32, %arg1: i32, %arg2: memref<1x8x4x8x32xbf16, #tpu.memory_space<vmem>>, %arg3: memref<1x4x32x32xbf16, #tpu.memory_space<vmem>>, %arg4: memref<1x8x8x32xbf16, #tpu.memory_space<vmem>>, %arg5: memref<8x32xf32, #tpu.memory_space<vmem>>, %arg6: memref<8x32xf32, #tpu.memory_space<vmem>>) attributes {dimension_semantics = [#tpu.dimension_semantics<parallel>, #tpu.dimension_semantics<arbitrary>], iteration_bounds = array<i64: 2, 1>, scalar_prefetch = 0 : i64, scratch_operands = 2 : i64, tpu.core_type = #tpu.core_type<tc>, window_params = [{transform_indices = @transform_0, window_bounds = array<i64: 1, 8, 4, 8, 32>}, {transform_indices = @transform_1, window_bounds = array<i64: 1, 4, 32, 32>}, {transform_indices = @transform_2, window_bounds = array<i64: 1, 8, 8, 32>}]} {
    %c0_i32 = arith.constant 0 : i32
    %0 = arith.cmpi eq, %arg1, %c0_i32 : i32
    %1 = arith.extui %0 : i1 to i32
    %c0_i32_0 = arith.constant 0 : i32
    %2 = arith.cmpi ne, %1, %c0_i32_0 : i32
    scf.if %2 {
      %cst_205 = arith.constant 0.000000e+00 : f32
      %475 = vector.broadcast %cst_205 : f32 to vector<8x32xf32>
      %c0_206 = arith.constant 0 : index
      %c0_207 = arith.constant 0 : index
      %476 = vector.load %arg5[%c0_206, %c0_207] : memref<8x32xf32, #tpu.memory_space<vmem>>, vector<8x32xf32>
      tpu.vector_store %arg5[%c0_206, %c0_207], %475 {strides = array<i32>} : memref<8x32xf32, #tpu.memory_space<vmem>>, vector<8x32xf32>,
      %cst_208 = arith.constant 0.000000e+00 : f32
      %477 = vector.broadcast %cst_208 : f32 to vector<8x32xf32>
      %c0_209 = arith.constant 0 : index
      %c0_210 = arith.constant 0 : index
      %478 = vector.load %arg6[%c0_209, %c0_210] : memref<8x32xf32, #tpu.memory_space<vmem>>, vector<8x32xf32>
      tpu.vector_store %arg6[%c0_209, %c0_210], %477 {strides = array<i32>} : memref<8x32xf32, #tpu.memory_space<vmem>>, vector<8x32xf32>,
    } else {
    }
    %c0 = arith.constant 0 : index
    %c0_1 = arith.constant 0 : index
    %c0_2 = arith.constant 0 : index
    %c0_3 = arith.constant 0 : index
    %3 = vector.load %arg3[%c0, %c0_1, %c0_2, %c0_3] : memref<1x4x32x32xbf16, #tpu.memory_space<vmem>>, vector<1x1x32x32xbf16>
    %4 = vector.shape_cast %3 : vector<1x1x32x32xbf16> to vector<32x32xbf16>
    %c0_4 = arith.constant 0 : index
    %c1 = arith.constant 1 : index
    %c0_5 = arith.constant 0 : index
    %c0_6 = arith.constant 0 : index
    %5 = vector.load %arg3[%c0_4, %c1, %c0_5, %c0_6] : memref<1x4x32x32xbf16, #tpu.memory_space<vmem>>, vector<1x1x32x32xbf16>
    %6 = vector.shape_cast %5 : vector<1x1x32x32xbf16> to vector<32x32xbf16>
    %c0_7 = arith.constant 0 : index
    %c2 = arith.constant 2 : index
    %c0_8 = arith.constant 0 : index
    %c0_9 = arith.constant 0 : index
    %7 = vector.load %arg3[%c0_7, %c2, %c0_8, %c0_9] : memref<1x4x32x32xbf16, #tpu.memory_space<vmem>>, vector<1x1x32x32xbf16>
    %8 = vector.shape_cast %7 : vector<1x1x32x32xbf16> to vector<32x32xbf16>
    %c0_10 = arith.constant 0 : index
    %c3 = arith.constant 3 : index
    %c0_11 = arith.constant 0 : index
    %c0_12 = arith.constant 0 : index
    %9 = vector.load %arg3[%c0_10, %c3, %c0_11, %c0_12] : memref<1x4x32x32xbf16, #tpu.memory_space<vmem>>, vector<1x1x32x32xbf16>
    %10 = vector.shape_cast %9 : vector<1x1x32x32xbf16> to vector<32x32xbf16>
    %c0_i32_13 = arith.constant 0 : i32
    %c2_i32 = arith.constant 2 : i32
    %11 = arith.muli %c2_i32, %c0_i32_13 : i32
    %c7_i32 = arith.constant 7 : i32
    %12 = arith.subi %c7_i32, %11 : i32
    %13 = arith.muli %arg0, %12 : i32
    %14 = arith.addi %c0_i32_13, %13 : i32
    %c0_14 = arith.constant 0 : index
    %15 = arith.index_cast %14 : i32 to index
    %c0_15 = arith.constant 0 : index
    %c0_16 = arith.constant 0 : index
    %c0_17 = arith.constant 0 : index
    %16 = vector.load %arg2[%c0_14, %15, %c0_15, %c0_16, %c0_17] : memref<1x8x4x8x32xbf16, #tpu.memory_space<vmem>>, vector<1x1x4x8x32xbf16>
    %17 = vector.shape_cast %16 : vector<1x1x4x8x32xbf16> to vector<4x8x32xbf16>
    %c0_18 = arith.constant 0 : index
    %c0_19 = arith.constant 0 : index
    %18 = vector.load %arg5[%c0_18, %c0_19] : memref<8x32xf32, #tpu.memory_space<vmem>>, vector<8x32xf32>
    %19 = arith.truncf %18 : vector<8x32xf32> to vector<8x32xbf16>
    %20 = vector.extract_strided_slice %17 {offsets = [0, 0, 0], sizes = [1, 8, 32], strides = [1, 1, 1]} : vector<4x8x32xbf16> to vector<1x8x32xbf16>
    %21 = vector.shape_cast %20 : vector<1x8x32xbf16> to vector<8x32xbf16>
    %22 = arith.extf %21 : vector<8x32xbf16> to vector<8x32xf32>
    %cst = arith.constant dense<0.000000e+00> : vector<8x32xf32>
    %23 = tpu.matmul %19, %4, %cst {dimension_numbers = #tpu.dot_dimension_numbers<[1], [0], [0], [1], [0, 0, 1, 1], [], []>} : vector<8x32xbf16>, vector<32x32xbf16>, vector<8x32xf32> -> vector<8x32xf32>
    %24 = arith.addf %22, %23 : vector<8x32xf32>
    %25 = vector.extract_strided_slice %17 {offsets = [1, 0, 0], sizes = [1, 8, 32], strides = [1, 1, 1]} : vector<4x8x32xbf16> to vector<1x8x32xbf16>
    %26 = vector.shape_cast %25 : vector<1x8x32xbf16> to vector<8x32xbf16>
    %27 = arith.extf %26 : vector<8x32xbf16> to vector<8x32xf32>
    %cst_20 = arith.constant dense<0.000000e+00> : vector<8x32xf32>
    %28 = tpu.matmul %19, %6, %cst_20 {dimension_numbers = #tpu.dot_dimension_numbers<[1], [0], [0], [1], [0, 0, 1, 1], [], []>} : vector<8x32xbf16>, vector<32x32xbf16>, vector<8x32xf32> -> vector<8x32xf32>
    %29 = arith.addf %27, %28 : vector<8x32xf32>
    %30 = vector.extract_strided_slice %17 {offsets = [2, 0, 0], sizes = [1, 8, 32], strides = [1, 1, 1]} : vector<4x8x32xbf16> to vector<1x8x32xbf16>
    %31 = vector.shape_cast %30 : vector<1x8x32xbf16> to vector<8x32xbf16>
    %32 = arith.extf %31 : vector<8x32xbf16> to vector<8x32xf32>
    %cst_21 = arith.constant dense<0.000000e+00> : vector<8x32xf32>
    %33 = tpu.matmul %19, %8, %cst_21 {dimension_numbers = #tpu.dot_dimension_numbers<[1], [0], [0], [1], [0, 0, 1, 1], [], []>} : vector<8x32xbf16>, vector<32x32xbf16>, vector<8x32xf32> -> vector<8x32xf32>
    %34 = arith.addf %32, %33 : vector<8x32xf32>
    %35 = vector.extract_strided_slice %17 {offsets = [3, 0, 0], sizes = [1, 8, 32], strides = [1, 1, 1]} : vector<4x8x32xbf16> to vector<1x8x32xbf16>
    %36 = vector.shape_cast %35 : vector<1x8x32xbf16> to vector<8x32xbf16>
    %37 = arith.extf %36 : vector<8x32xbf16> to vector<8x32xf32>
    %cst_22 = arith.constant dense<0.000000e+00> : vector<8x32xf32>
    %38 = tpu.matmul %19, %10, %cst_22 {dimension_numbers = #tpu.dot_dimension_numbers<[1], [0], [0], [1], [0, 0, 1, 1], [], []>} : vector<8x32xbf16>, vector<32x32xbf16>, vector<8x32xf32> -> vector<8x32xf32>
    %39 = arith.addf %37, %38 : vector<8x32xf32>
    %40 = arith.negf %24 : vector<8x32xf32>
    %41 = math.exp %40 : vector<8x32xf32>
    %cst_23 = arith.constant 1.000000e+00 : f32
    %42 = vector.broadcast %cst_23 : f32 to vector<8x32xf32>
    %43 = arith.addf %42, %41 : vector<8x32xf32>
    %44 = arith.divf %42, %43 : vector<8x32xf32>
    %45 = arith.negf %29 : vector<8x32xf32>
    %46 = math.exp %45 : vector<8x32xf32>
    %cst_24 = arith.constant 1.000000e+00 : f32
    %47 = vector.broadcast %cst_24 : f32 to vector<8x32xf32>
    %48 = arith.addf %47, %46 : vector<8x32xf32>
    %49 = arith.divf %47, %48 : vector<8x32xf32>
    %50 = math.tanh %34 : vector<8x32xf32>
    %51 = arith.negf %39 : vector<8x32xf32>
    %52 = math.exp %51 : vector<8x32xf32>
    %cst_25 = arith.constant 1.000000e+00 : f32
    %53 = vector.broadcast %cst_25 : f32 to vector<8x32xf32>
    %54 = arith.addf %53, %52 : vector<8x32xf32>
    %55 = arith.divf %53, %54 : vector<8x32xf32>
    %c0_26 = arith.constant 0 : index
    %c0_27 = arith.constant 0 : index
    %56 = vector.load %arg6[%c0_26, %c0_27] : memref<8x32xf32, #tpu.memory_space<vmem>>, vector<8x32xf32>
    %57 = arith.mulf %49, %56 : vector<8x32xf32>
    %58 = arith.mulf %44, %50 : vector<8x32xf32>
    %59 = arith.addf %57, %58 : vector<8x32xf32>
    %60 = math.tanh %59 : vector<8x32xf32>
    %61 = arith.mulf %55, %60 : vector<8x32xf32>
    %c0_28 = arith.constant 0 : index
    %c0_29 = arith.constant 0 : index
    %62 = vector.load %arg6[%c0_28, %c0_29] : memref<8x32xf32, #tpu.memory_space<vmem>>, vector<8x32xf32>
    tpu.vector_store %arg6[%c0_28, %c0_29], %59 {strides = array<i32>} : memref<8x32xf32, #tpu.memory_space<vmem>>, vector<8x32xf32>,
    %c0_30 = arith.constant 0 : index
    %c0_31 = arith.constant 0 : index
    %63 = vector.load %arg5[%c0_30, %c0_31] : memref<8x32xf32, #tpu.memory_space<vmem>>, vector<8x32xf32>
    tpu.vector_store %arg5[%c0_30, %c0_31], %61 {strides = array<i32>} : memref<8x32xf32, #tpu.memory_space<vmem>>, vector<8x32xf32>,
    %64 = arith.truncf %61 : vector<8x32xf32> to vector<8x32xbf16>
    %c0_32 = arith.constant 0 : index
    %65 = arith.index_cast %14 : i32 to index
    %c0_33 = arith.constant 0 : index
    %c0_34 = arith.constant 0 : index
    %66 = vector.load %arg4[%c0_32, %65, %c0_33, %c0_34] : memref<1x8x8x32xbf16, #tpu.memory_space<vmem>>, vector<1x1x8x32xbf16>
    %67 = vector.shape_cast %66 : vector<1x1x8x32xbf16> to vector<8x32xbf16>
    %68 = vector.shape_cast %64 : vector<8x32xbf16> to vector<1x1x8x32xbf16>
    tpu.vector_store %arg4[%c0_32, %65, %c0_33, %c0_34], %68 {strides = array<i32>} : memref<1x8x8x32xbf16, #tpu.memory_space<vmem>>, vector<1x1x8x32xbf16>,
    %c1_i32 = arith.constant 1 : i32
    %c2_i32_35 = arith.constant 2 : i32
    %69 = arith.muli %c2_i32_35, %c1_i32 : i32
    %c7_i32_36 = arith.constant 7 : i32
    %70 = arith.subi %c7_i32_36, %69 : i32
    %71 = arith.muli %arg0, %70 : i32
    %72 = arith.addi %c1_i32, %71 : i32
    %c0_37 = arith.constant 0 : index
    %73 = arith.index_cast %72 : i32 to index
    %c0_38 = arith.constant 0 : index
    %c0_39 = arith.constant 0 : index
    %c0_40 = arith.constant 0 : index
    %74 = vector.load %arg2[%c0_37, %73, %c0_38, %c0_39, %c0_40] : memref<1x8x4x8x32xbf16, #tpu.memory_space<vmem>>, vector<1x1x4x8x32xbf16>
    %75 = vector.shape_cast %74 : vector<1x1x4x8x32xbf16> to vector<4x8x32xbf16>
    %c0_41 = arith.constant 0 : index
    %c0_42 = arith.constant 0 : index
    %76 = vector.load %arg5[%c0_41, %c0_42] : memref<8x32xf32, #tpu.memory_space<vmem>>, vector<8x32xf32>
    %77 = arith.truncf %76 : vector<8x32xf32> to vector<8x32xbf16>
    %78 = vector.extract_strided_slice %75 {offsets = [0, 0, 0], sizes = [1, 8, 32], strides = [1, 1, 1]} : vector<4x8x32xbf16> to vector<1x8x32xbf16>
    %79 = vector.shape_cast %78 : vector<1x8x32xbf16> to vector<8x32xbf16>
    %80 = arith.extf %79 : vector<8x32xbf16> to vector<8x32xf32>
    %cst_43 = arith.constant dense<0.000000e+00> : vector<8x32xf32>
    %81 = tpu.matmul %77, %4, %cst_43 {dimension_numbers = #tpu.dot_dimension_numbers<[1], [0], [0], [1], [0, 0, 1, 1], [], []>} : vector<8x32xbf16>, vector<32x32xbf16>, vector<8x32xf32> -> vector<8x32xf32>
    %82 = arith.addf %80, %81 : vector<8x32xf32>
    %83 = vector.extract_strided_slice %75 {offsets = [1, 0, 0], sizes = [1, 8, 32], strides = [1, 1, 1]} : vector<4x8x32xbf16> to vector<1x8x32xbf16>
    %84 = vector.shape_cast %83 : vector<1x8x32xbf16> to vector<8x32xbf16>
    %85 = arith.extf %84 : vector<8x32xbf16> to vector<8x32xf32>
    %cst_44 = arith.constant dense<0.000000e+00> : vector<8x32xf32>
    %86 = tpu.matmul %77, %6, %cst_44 {dimension_numbers = #tpu.dot_dimension_numbers<[1], [0], [0], [1], [0, 0, 1, 1], [], []>} : vector<8x32xbf16>, vector<32x32xbf16>, vector<8x32xf32> -> vector<8x32xf32>
    %87 = arith.addf %85, %86 : vector<8x32xf32>
    %88 = vector.extract_strided_slice %75 {offsets = [2, 0, 0], sizes = [1, 8, 32], strides = [1, 1, 1]} : vector<4x8x32xbf16> to vector<1x8x32xbf16>
    %89 = vector.shape_cast %88 : vector<1x8x32xbf16> to vector<8x32xbf16>
    %90 = arith.extf %89 : vector<8x32xbf16> to vector<8x32xf32>
    %cst_45 = arith.constant dense<0.000000e+00> : vector<8x32xf32>
    %91 = tpu.matmul %77, %8, %cst_45 {dimension_numbers = #tpu.dot_dimension_numbers<[1], [0], [0], [1], [0, 0, 1, 1], [], []>} : vector<8x32xbf16>, vector<32x32xbf16>, vector<8x32xf32> -> vector<8x32xf32>
    %92 = arith.addf %90, %91 : vector<8x32xf32>
    %93 = vector.extract_strided_slice %75 {offsets = [3, 0, 0], sizes = [1, 8, 32], strides = [1, 1, 1]} : vector<4x8x32xbf16> to vector<1x8x32xbf16>
    %94 = vector.shape_cast %93 : vector<1x8x32xbf16> to vector<8x32xbf16>
    %95 = arith.extf %94 : vector<8x32xbf16> to vector<8x32xf32>
    %cst_46 = arith.constant dense<0.000000e+00> : vector<8x32xf32>
    %96 = tpu.matmul %77, %10, %cst_46 {dimension_numbers = #tpu.dot_dimension_numbers<[1], [0], [0], [1], [0, 0, 1, 1], [], []>} : vector<8x32xbf16>, vector<32x32xbf16>, vector<8x32xf32> -> vector<8x32xf32>
    %97 = arith.addf %95, %96 : vector<8x32xf32>
    %98 = arith.negf %82 : vector<8x32xf32>
    %99 = math.exp %98 : vector<8x32xf32>
    %cst_47 = arith.constant 1.000000e+00 : f32
    %100 = vector.broadcast %cst_47 : f32 to vector<8x32xf32>
    %101 = arith.addf %100, %99 : vector<8x32xf32>
    %102 = arith.divf %100, %101 : vector<8x32xf32>
    %103 = arith.negf %87 : vector<8x32xf32>
    %104 = math.exp %103 : vector<8x32xf32>
    %cst_48 = arith.constant 1.000000e+00 : f32
    %105 = vector.broadcast %cst_48 : f32 to vector<8x32xf32>
    %106 = arith.addf %105, %104 : vector<8x32xf32>
    %107 = arith.divf %105, %106 : vector<8x32xf32>
    %108 = math.tanh %92 : vector<8x32xf32>
    %109 = arith.negf %97 : vector<8x32xf32>
    %110 = math.exp %109 : vector<8x32xf32>
    %cst_49 = arith.constant 1.000000e+00 : f32
    %111 = vector.broadcast %cst_49 : f32 to vector<8x32xf32>
    %112 = arith.addf %111, %110 : vector<8x32xf32>
    %113 = arith.divf %111, %112 : vector<8x32xf32>
    %c0_50 = arith.constant 0 : index
    %c0_51 = arith.constant 0 : index
    %114 = vector.load %arg6[%c0_50, %c0_51] : memref<8x32xf32, #tpu.memory_space<vmem>>, vector<8x32xf32>
    %115 = arith.mulf %107, %114 : vector<8x32xf32>
    %116 = arith.mulf %102, %108 : vector<8x32xf32>
    %117 = arith.addf %115, %116 : vector<8x32xf32>
    %118 = math.tanh %117 : vector<8x32xf32>
    %119 = arith.mulf %113, %118 : vector<8x32xf32>
    %c0_52 = arith.constant 0 : index
    %c0_53 = arith.constant 0 : index
    %120 = vector.load %arg6[%c0_52, %c0_53] : memref<8x32xf32, #tpu.memory_space<vmem>>, vector<8x32xf32>
    tpu.vector_store %arg6[%c0_52, %c0_53], %117 {strides = array<i32>} : memref<8x32xf32, #tpu.memory_space<vmem>>, vector<8x32xf32>,
    %c0_54 = arith.constant 0 : index
    %c0_55 = arith.constant 0 : index
    %121 = vector.load %arg5[%c0_54, %c0_55] : memref<8x32xf32, #tpu.memory_space<vmem>>, vector<8x32xf32>
    tpu.vector_store %arg5[%c0_54, %c0_55], %119 {strides = array<i32>} : memref<8x32xf32, #tpu.memory_space<vmem>>, vector<8x32xf32>,
    %122 = arith.truncf %119 : vector<8x32xf32> to vector<8x32xbf16>
    %c0_56 = arith.constant 0 : index
    %123 = arith.index_cast %72 : i32 to index
    %c0_57 = arith.constant 0 : index
    %c0_58 = arith.constant 0 : index
    %124 = vector.load %arg4[%c0_56, %123, %c0_57, %c0_58] : memref<1x8x8x32xbf16, #tpu.memory_space<vmem>>, vector<1x1x8x32xbf16>
    %125 = vector.shape_cast %124 : vector<1x1x8x32xbf16> to vector<8x32xbf16>
    %126 = vector.shape_cast %122 : vector<8x32xbf16> to vector<1x1x8x32xbf16>
    tpu.vector_store %arg4[%c0_56, %123, %c0_57, %c0_58], %126 {strides = array<i32>} : memref<1x8x8x32xbf16, #tpu.memory_space<vmem>>, vector<1x1x8x32xbf16>,
    %c2_i32_59 = arith.constant 2 : i32
    %c2_i32_60 = arith.constant 2 : i32
    %127 = arith.muli %c2_i32_60, %c2_i32_59 : i32
    %c7_i32_61 = arith.constant 7 : i32
    %128 = arith.subi %c7_i32_61, %127 : i32
    %129 = arith.muli %arg0, %128 : i32
    %130 = arith.addi %c2_i32_59, %129 : i32
    %c0_62 = arith.constant 0 : index
    %131 = arith.index_cast %130 : i32 to index
    %c0_63 = arith.constant 0 : index
    %c0_64 = arith.constant 0 : index
    %c0_65 = arith.constant 0 : index
    %132 = vector.load %arg2[%c0_62, %131, %c0_63, %c0_64, %c0_65] : memref<1x8x4x8x32xbf16, #tpu.memory_space<vmem>>, vector<1x1x4x8x32xbf16>
    %133 = vector.shape_cast %132 : vector<1x1x4x8x32xbf16> to vector<4x8x32xbf16>
    %c0_66 = arith.constant 0 : index
    %c0_67 = arith.constant 0 : index
    %134 = vector.load %arg5[%c0_66, %c0_67] : memref<8x32xf32, #tpu.memory_space<vmem>>, vector<8x32xf32>
    %135 = arith.truncf %134 : vector<8x32xf32> to vector<8x32xbf16>
    %136 = vector.extract_strided_slice %133 {offsets = [0, 0, 0], sizes = [1, 8, 32], strides = [1, 1, 1]} : vector<4x8x32xbf16> to vector<1x8x32xbf16>
    %137 = vector.shape_cast %136 : vector<1x8x32xbf16> to vector<8x32xbf16>
    %138 = arith.extf %137 : vector<8x32xbf16> to vector<8x32xf32>
    %cst_68 = arith.constant dense<0.000000e+00> : vector<8x32xf32>
    %139 = tpu.matmul %135, %4, %cst_68 {dimension_numbers = #tpu.dot_dimension_numbers<[1], [0], [0], [1], [0, 0, 1, 1], [], []>} : vector<8x32xbf16>, vector<32x32xbf16>, vector<8x32xf32> -> vector<8x32xf32>
    %140 = arith.addf %138, %139 : vector<8x32xf32>
    %141 = vector.extract_strided_slice %133 {offsets = [1, 0, 0], sizes = [1, 8, 32], strides = [1, 1, 1]} : vector<4x8x32xbf16> to vector<1x8x32xbf16>
    %142 = vector.shape_cast %141 : vector<1x8x32xbf16> to vector<8x32xbf16>
    %143 = arith.extf %142 : vector<8x32xbf16> to vector<8x32xf32>
    %cst_69 = arith.constant dense<0.000000e+00> : vector<8x32xf32>
    %144 = tpu.matmul %135, %6, %cst_69 {dimension_numbers = #tpu.dot_dimension_numbers<[1], [0], [0], [1], [0, 0, 1, 1], [], []>} : vector<8x32xbf16>, vector<32x32xbf16>, vector<8x32xf32> -> vector<8x32xf32>
    %145 = arith.addf %143, %144 : vector<8x32xf32>
    %146 = vector.extract_strided_slice %133 {offsets = [2, 0, 0], sizes = [1, 8, 32], strides = [1, 1, 1]} : vector<4x8x32xbf16> to vector<1x8x32xbf16>
    %147 = vector.shape_cast %146 : vector<1x8x32xbf16> to vector<8x32xbf16>
    %148 = arith.extf %147 : vector<8x32xbf16> to vector<8x32xf32>
    %cst_70 = arith.constant dense<0.000000e+00> : vector<8x32xf32>
    %149 = tpu.matmul %135, %8, %cst_70 {dimension_numbers = #tpu.dot_dimension_numbers<[1], [0], [0], [1], [0, 0, 1, 1], [], []>} : vector<8x32xbf16>, vector<32x32xbf16>, vector<8x32xf32> -> vector<8x32xf32>
    %150 = arith.addf %148, %149 : vector<8x32xf32>
    %151 = vector.extract_strided_slice %133 {offsets = [3, 0, 0], sizes = [1, 8, 32], strides = [1, 1, 1]} : vector<4x8x32xbf16> to vector<1x8x32xbf16>
    %152 = vector.shape_cast %151 : vector<1x8x32xbf16> to vector<8x32xbf16>
    %153 = arith.extf %152 : vector<8x32xbf16> to vector<8x32xf32>
    %cst_71 = arith.constant dense<0.000000e+00> : vector<8x32xf32>
    %154 = tpu.matmul %135, %10, %cst_71 {dimension_numbers = #tpu.dot_dimension_numbers<[1], [0], [0], [1], [0, 0, 1, 1], [], []>} : vector<8x32xbf16>, vector<32x32xbf16>, vector<8x32xf32> -> vector<8x32xf32>
    %155 = arith.addf %153, %154 : vector<8x32xf32>
    %156 = arith.negf %140 : vector<8x32xf32>
    %157 = math.exp %156 : vector<8x32xf32>
    %cst_72 = arith.constant 1.000000e+00 : f32
    %158 = vector.broadcast %cst_72 : f32 to vector<8x32xf32>
    %159 = arith.addf %158, %157 : vector<8x32xf32>
    %160 = arith.divf %158, %159 : vector<8x32xf32>
    %161 = arith.negf %145 : vector<8x32xf32>
    %162 = math.exp %161 : vector<8x32xf32>
    %cst_73 = arith.constant 1.000000e+00 : f32
    %163 = vector.broadcast %cst_73 : f32 to vector<8x32xf32>
    %164 = arith.addf %163, %162 : vector<8x32xf32>
    %165 = arith.divf %163, %164 : vector<8x32xf32>
    %166 = math.tanh %150 : vector<8x32xf32>
    %167 = arith.negf %155 : vector<8x32xf32>
    %168 = math.exp %167 : vector<8x32xf32>
    %cst_74 = arith.constant 1.000000e+00 : f32
    %169 = vector.broadcast %cst_74 : f32 to vector<8x32xf32>
    %170 = arith.addf %169, %168 : vector<8x32xf32>
    %171 = arith.divf %169, %170 : vector<8x32xf32>
    %c0_75 = arith.constant 0 : index
    %c0_76 = arith.constant 0 : index
    %172 = vector.load %arg6[%c0_75, %c0_76] : memref<8x32xf32, #tpu.memory_space<vmem>>, vector<8x32xf32>
    %173 = arith.mulf %165, %172 : vector<8x32xf32>
    %174 = arith.mulf %160, %166 : vector<8x32xf32>
    %175 = arith.addf %173, %174 : vector<8x32xf32>
    %176 = math.tanh %175 : vector<8x32xf32>
    %177 = arith.mulf %171, %176 : vector<8x32xf32>
    %c0_77 = arith.constant 0 : index
    %c0_78 = arith.constant 0 : index
    %178 = vector.load %arg6[%c0_77, %c0_78] : memref<8x32xf32, #tpu.memory_space<vmem>>, vector<8x32xf32>
    tpu.vector_store %arg6[%c0_77, %c0_78], %175 {strides = array<i32>} : memref<8x32xf32, #tpu.memory_space<vmem>>, vector<8x32xf32>,
    %c0_79 = arith.constant 0 : index
    %c0_80 = arith.constant 0 : index
    %179 = vector.load %arg5[%c0_79, %c0_80] : memref<8x32xf32, #tpu.memory_space<vmem>>, vector<8x32xf32>
    tpu.vector_store %arg5[%c0_79, %c0_80], %177 {strides = array<i32>} : memref<8x32xf32, #tpu.memory_space<vmem>>, vector<8x32xf32>,
    %180 = arith.truncf %177 : vector<8x32xf32> to vector<8x32xbf16>
    %c0_81 = arith.constant 0 : index
    %181 = arith.index_cast %130 : i32 to index
    %c0_82 = arith.constant 0 : index
    %c0_83 = arith.constant 0 : index
    %182 = vector.load %arg4[%c0_81, %181, %c0_82, %c0_83] : memref<1x8x8x32xbf16, #tpu.memory_space<vmem>>, vector<1x1x8x32xbf16>
    %183 = vector.shape_cast %182 : vector<1x1x8x32xbf16> to vector<8x32xbf16>
    %184 = vector.shape_cast %180 : vector<8x32xbf16> to vector<1x1x8x32xbf16>
    tpu.vector_store %arg4[%c0_81, %181, %c0_82, %c0_83], %184 {strides = array<i32>} : memref<1x8x8x32xbf16, #tpu.memory_space<vmem>>, vector<1x1x8x32xbf16>,
    %c3_i32 = arith.constant 3 : i32
    %c2_i32_84 = arith.constant 2 : i32
    %185 = arith.muli %c2_i32_84, %c3_i32 : i32
    %c7_i32_85 = arith.constant 7 : i32
    %186 = arith.subi %c7_i32_85, %185 : i32
    %187 = arith.muli %arg0, %186 : i32
    %188 = arith.addi %c3_i32, %187 : i32
    %c0_86 = arith.constant 0 : index
    %189 = arith.index_cast %188 : i32 to index
    %c0_87 = arith.constant 0 : index
    %c0_88 = arith.constant 0 : index
    %c0_89 = arith.constant 0 : index
    %190 = vector.load %arg2[%c0_86, %189, %c0_87, %c0_88, %c0_89] : memref<1x8x4x8x32xbf16, #tpu.memory_space<vmem>>, vector<1x1x4x8x32xbf16>
    %191 = vector.shape_cast %190 : vector<1x1x4x8x32xbf16> to vector<4x8x32xbf16>
    %c0_90 = arith.constant 0 : index
    %c0_91 = arith.constant 0 : index
    %192 = vector.load %arg5[%c0_90, %c0_91] : memref<8x32xf32, #tpu.memory_space<vmem>>, vector<8x32xf32>
    %193 = arith.truncf %192 : vector<8x32xf32> to vector<8x32xbf16>
    %194 = vector.extract_strided_slice %191 {offsets = [0, 0, 0], sizes = [1, 8, 32], strides = [1, 1, 1]} : vector<4x8x32xbf16> to vector<1x8x32xbf16>
    %195 = vector.shape_cast %194 : vector<1x8x32xbf16> to vector<8x32xbf16>
    %196 = arith.extf %195 : vector<8x32xbf16> to vector<8x32xf32>
    %cst_92 = arith.constant dense<0.000000e+00> : vector<8x32xf32>
    %197 = tpu.matmul %193, %4, %cst_92 {dimension_numbers = #tpu.dot_dimension_numbers<[1], [0], [0], [1], [0, 0, 1, 1], [], []>} : vector<8x32xbf16>, vector<32x32xbf16>, vector<8x32xf32> -> vector<8x32xf32>
    %198 = arith.addf %196, %197 : vector<8x32xf32>
    %199 = vector.extract_strided_slice %191 {offsets = [1, 0, 0], sizes = [1, 8, 32], strides = [1, 1, 1]} : vector<4x8x32xbf16> to vector<1x8x32xbf16>
    %200 = vector.shape_cast %199 : vector<1x8x32xbf16> to vector<8x32xbf16>
    %201 = arith.extf %200 : vector<8x32xbf16> to vector<8x32xf32>
    %cst_93 = arith.constant dense<0.000000e+00> : vector<8x32xf32>
    %202 = tpu.matmul %193, %6, %cst_93 {dimension_numbers = #tpu.dot_dimension_numbers<[1], [0], [0], [1], [0, 0, 1, 1], [], []>} : vector<8x32xbf16>, vector<32x32xbf16>, vector<8x32xf32> -> vector<8x32xf32>
    %203 = arith.addf %201, %202 : vector<8x32xf32>
    %204 = vector.extract_strided_slice %191 {offsets = [2, 0, 0], sizes = [1, 8, 32], strides = [1, 1, 1]} : vector<4x8x32xbf16> to vector<1x8x32xbf16>
    %205 = vector.shape_cast %204 : vector<1x8x32xbf16> to vector<8x32xbf16>
    %206 = arith.extf %205 : vector<8x32xbf16> to vector<8x32xf32>
    %cst_94 = arith.constant dense<0.000000e+00> : vector<8x32xf32>
    %207 = tpu.matmul %193, %8, %cst_94 {dimension_numbers = #tpu.dot_dimension_numbers<[1], [0], [0], [1], [0, 0, 1, 1], [], []>} : vector<8x32xbf16>, vector<32x32xbf16>, vector<8x32xf32> -> vector<8x32xf32>
    %208 = arith.addf %206, %207 : vector<8x32xf32>
    %209 = vector.extract_strided_slice %191 {offsets = [3, 0, 0], sizes = [1, 8, 32], strides = [1, 1, 1]} : vector<4x8x32xbf16> to vector<1x8x32xbf16>
    %210 = vector.shape_cast %209 : vector<1x8x32xbf16> to vector<8x32xbf16>
    %211 = arith.extf %210 : vector<8x32xbf16> to vector<8x32xf32>
    %cst_95 = arith.constant dense<0.000000e+00> : vector<8x32xf32>
    %212 = tpu.matmul %193, %10, %cst_95 {dimension_numbers = #tpu.dot_dimension_numbers<[1], [0], [0], [1], [0, 0, 1, 1], [], []>} : vector<8x32xbf16>, vector<32x32xbf16>, vector<8x32xf32> -> vector<8x32xf32>
    %213 = arith.addf %211, %212 : vector<8x32xf32>
    %214 = arith.negf %198 : vector<8x32xf32>
    %215 = math.exp %214 : vector<8x32xf32>
    %cst_96 = arith.constant 1.000000e+00 : f32
    %216 = vector.broadcast %cst_96 : f32 to vector<8x32xf32>
    %217 = arith.addf %216, %215 : vector<8x32xf32>
    %218 = arith.divf %216, %217 : vector<8x32xf32>
    %219 = arith.negf %203 : vector<8x32xf32>
    %220 = math.exp %219 : vector<8x32xf32>
    %cst_97 = arith.constant 1.000000e+00 : f32
    %221 = vector.broadcast %cst_97 : f32 to vector<8x32xf32>
    %222 = arith.addf %221, %220 : vector<8x32xf32>
    %223 = arith.divf %221, %222 : vector<8x32xf32>
    %224 = math.tanh %208 : vector<8x32xf32>
    %225 = arith.negf %213 : vector<8x32xf32>
    %226 = math.exp %225 : vector<8x32xf32>
    %cst_98 = arith.constant 1.000000e+00 : f32
    %227 = vector.broadcast %cst_98 : f32 to vector<8x32xf32>
    %228 = arith.addf %227, %226 : vector<8x32xf32>
    %229 = arith.divf %227, %228 : vector<8x32xf32>
    %c0_99 = arith.constant 0 : index
    %c0_100 = arith.constant 0 : index
    %230 = vector.load %arg6[%c0_99, %c0_100] : memref<8x32xf32, #tpu.memory_space<vmem>>, vector<8x32xf32>
    %231 = arith.mulf %223, %230 : vector<8x32xf32>
    %232 = arith.mulf %218, %224 : vector<8x32xf32>
    %233 = arith.addf %231, %232 : vector<8x32xf32>
    %234 = math.tanh %233 : vector<8x32xf32>
    %235 = arith.mulf %229, %234 : vector<8x32xf32>
    %c0_101 = arith.constant 0 : index
    %c0_102 = arith.constant 0 : index
    %236 = vector.load %arg6[%c0_101, %c0_102] : memref<8x32xf32, #tpu.memory_space<vmem>>, vector<8x32xf32>
    tpu.vector_store %arg6[%c0_101, %c0_102], %233 {strides = array<i32>} : memref<8x32xf32, #tpu.memory_space<vmem>>, vector<8x32xf32>,
    %c0_103 = arith.constant 0 : index
    %c0_104 = arith.constant 0 : index
    %237 = vector.load %arg5[%c0_103, %c0_104] : memref<8x32xf32, #tpu.memory_space<vmem>>, vector<8x32xf32>
    tpu.vector_store %arg5[%c0_103, %c0_104], %235 {strides = array<i32>} : memref<8x32xf32, #tpu.memory_space<vmem>>, vector<8x32xf32>,
    %238 = arith.truncf %235 : vector<8x32xf32> to vector<8x32xbf16>
    %c0_105 = arith.constant 0 : index
    %239 = arith.index_cast %188 : i32 to index
    %c0_106 = arith.constant 0 : index
    %c0_107 = arith.constant 0 : index
    %240 = vector.load %arg4[%c0_105, %239, %c0_106, %c0_107] : memref<1x8x8x32xbf16, #tpu.memory_space<vmem>>, vector<1x1x8x32xbf16>
    %241 = vector.shape_cast %240 : vector<1x1x8x32xbf16> to vector<8x32xbf16>
    %242 = vector.shape_cast %238 : vector<8x32xbf16> to vector<1x1x8x32xbf16>
    tpu.vector_store %arg4[%c0_105, %239, %c0_106, %c0_107], %242 {strides = array<i32>} : memref<1x8x8x32xbf16, #tpu.memory_space<vmem>>, vector<1x1x8x32xbf16>,
    %c4_i32 = arith.constant 4 : i32
    %c2_i32_108 = arith.constant 2 : i32
    %243 = arith.muli %c2_i32_108, %c4_i32 : i32
    %c7_i32_109 = arith.constant 7 : i32
    %244 = arith.subi %c7_i32_109, %243 : i32
    %245 = arith.muli %arg0, %244 : i32
    %246 = arith.addi %c4_i32, %245 : i32
    %c0_110 = arith.constant 0 : index
    %247 = arith.index_cast %246 : i32 to index
    %c0_111 = arith.constant 0 : index
    %c0_112 = arith.constant 0 : index
    %c0_113 = arith.constant 0 : index
    %248 = vector.load %arg2[%c0_110, %247, %c0_111, %c0_112, %c0_113] : memref<1x8x4x8x32xbf16, #tpu.memory_space<vmem>>, vector<1x1x4x8x32xbf16>
    %249 = vector.shape_cast %248 : vector<1x1x4x8x32xbf16> to vector<4x8x32xbf16>
    %c0_114 = arith.constant 0 : index
    %c0_115 = arith.constant 0 : index
    %250 = vector.load %arg5[%c0_114, %c0_115] : memref<8x32xf32, #tpu.memory_space<vmem>>, vector<8x32xf32>
    %251 = arith.truncf %250 : vector<8x32xf32> to vector<8x32xbf16>
    %252 = vector.extract_strided_slice %249 {offsets = [0, 0, 0], sizes = [1, 8, 32], strides = [1, 1, 1]} : vector<4x8x32xbf16> to vector<1x8x32xbf16>
    %253 = vector.shape_cast %252 : vector<1x8x32xbf16> to vector<8x32xbf16>
    %254 = arith.extf %253 : vector<8x32xbf16> to vector<8x32xf32>
    %cst_116 = arith.constant dense<0.000000e+00> : vector<8x32xf32>
    %255 = tpu.matmul %251, %4, %cst_116 {dimension_numbers = #tpu.dot_dimension_numbers<[1], [0], [0], [1], [0, 0, 1, 1], [], []>} : vector<8x32xbf16>, vector<32x32xbf16>, vector<8x32xf32> -> vector<8x32xf32>
    %256 = arith.addf %254, %255 : vector<8x32xf32>
    %257 = vector.extract_strided_slice %249 {offsets = [1, 0, 0], sizes = [1, 8, 32], strides = [1, 1, 1]} : vector<4x8x32xbf16> to vector<1x8x32xbf16>
    %258 = vector.shape_cast %257 : vector<1x8x32xbf16> to vector<8x32xbf16>
    %259 = arith.extf %258 : vector<8x32xbf16> to vector<8x32xf32>
    %cst_117 = arith.constant dense<0.000000e+00> : vector<8x32xf32>
    %260 = tpu.matmul %251, %6, %cst_117 {dimension_numbers = #tpu.dot_dimension_numbers<[1], [0], [0], [1], [0, 0, 1, 1], [], []>} : vector<8x32xbf16>, vector<32x32xbf16>, vector<8x32xf32> -> vector<8x32xf32>
    %261 = arith.addf %259, %260 : vector<8x32xf32>
    %262 = vector.extract_strided_slice %249 {offsets = [2, 0, 0], sizes = [1, 8, 32], strides = [1, 1, 1]} : vector<4x8x32xbf16> to vector<1x8x32xbf16>
    %263 = vector.shape_cast %262 : vector<1x8x32xbf16> to vector<8x32xbf16>
    %264 = arith.extf %263 : vector<8x32xbf16> to vector<8x32xf32>
    %cst_118 = arith.constant dense<0.000000e+00> : vector<8x32xf32>
    %265 = tpu.matmul %251, %8, %cst_118 {dimension_numbers = #tpu.dot_dimension_numbers<[1], [0], [0], [1], [0, 0, 1, 1], [], []>} : vector<8x32xbf16>, vector<32x32xbf16>, vector<8x32xf32> -> vector<8x32xf32>
    %266 = arith.addf %264, %265 : vector<8x32xf32>
    %267 = vector.extract_strided_slice %249 {offsets = [3, 0, 0], sizes = [1, 8, 32], strides = [1, 1, 1]} : vector<4x8x32xbf16> to vector<1x8x32xbf16>
    %268 = vector.shape_cast %267 : vector<1x8x32xbf16> to vector<8x32xbf16>
    %269 = arith.extf %268 : vector<8x32xbf16> to vector<8x32xf32>
    %cst_119 = arith.constant dense<0.000000e+00> : vector<8x32xf32>
    %270 = tpu.matmul %251, %10, %cst_119 {dimension_numbers = #tpu.dot_dimension_numbers<[1], [0], [0], [1], [0, 0, 1, 1], [], []>} : vector<8x32xbf16>, vector<32x32xbf16>, vector<8x32xf32> -> vector<8x32xf32>
    %271 = arith.addf %269, %270 : vector<8x32xf32>
    %272 = arith.negf %256 : vector<8x32xf32>
    %273 = math.exp %272 : vector<8x32xf32>
    %cst_120 = arith.constant 1.000000e+00 : f32
    %274 = vector.broadcast %cst_120 : f32 to vector<8x32xf32>
    %275 = arith.addf %274, %273 : vector<8x32xf32>
    %276 = arith.divf %274, %275 : vector<8x32xf32>
    %277 = arith.negf %261 : vector<8x32xf32>
    %278 = math.exp %277 : vector<8x32xf32>
    %cst_121 = arith.constant 1.000000e+00 : f32
    %279 = vector.broadcast %cst_121 : f32 to vector<8x32xf32>
    %280 = arith.addf %279, %278 : vector<8x32xf32>
    %281 = arith.divf %279, %280 : vector<8x32xf32>
    %282 = math.tanh %266 : vector<8x32xf32>
    %283 = arith.negf %271 : vector<8x32xf32>
    %284 = math.exp %283 : vector<8x32xf32>
    %cst_122 = arith.constant 1.000000e+00 : f32
    %285 = vector.broadcast %cst_122 : f32 to vector<8x32xf32>
    %286 = arith.addf %285, %284 : vector<8x32xf32>
    %287 = arith.divf %285, %286 : vector<8x32xf32>
    %c0_123 = arith.constant 0 : index
    %c0_124 = arith.constant 0 : index
    %288 = vector.load %arg6[%c0_123, %c0_124] : memref<8x32xf32, #tpu.memory_space<vmem>>, vector<8x32xf32>
    %289 = arith.mulf %281, %288 : vector<8x32xf32>
    %290 = arith.mulf %276, %282 : vector<8x32xf32>
    %291 = arith.addf %289, %290 : vector<8x32xf32>
    %292 = math.tanh %291 : vector<8x32xf32>
    %293 = arith.mulf %287, %292 : vector<8x32xf32>
    %c0_125 = arith.constant 0 : index
    %c0_126 = arith.constant 0 : index
    %294 = vector.load %arg6[%c0_125, %c0_126] : memref<8x32xf32, #tpu.memory_space<vmem>>, vector<8x32xf32>
    tpu.vector_store %arg6[%c0_125, %c0_126], %291 {strides = array<i32>} : memref<8x32xf32, #tpu.memory_space<vmem>>, vector<8x32xf32>,
    %c0_127 = arith.constant 0 : index
    %c0_128 = arith.constant 0 : index
    %295 = vector.load %arg5[%c0_127, %c0_128] : memref<8x32xf32, #tpu.memory_space<vmem>>, vector<8x32xf32>
    tpu.vector_store %arg5[%c0_127, %c0_128], %293 {strides = array<i32>} : memref<8x32xf32, #tpu.memory_space<vmem>>, vector<8x32xf32>,
    %296 = arith.truncf %293 : vector<8x32xf32> to vector<8x32xbf16>
    %c0_129 = arith.constant 0 : index
    %297 = arith.index_cast %246 : i32 to index
    %c0_130 = arith.constant 0 : index
    %c0_131 = arith.constant 0 : index
    %298 = vector.load %arg4[%c0_129, %297, %c0_130, %c0_131] : memref<1x8x8x32xbf16, #tpu.memory_space<vmem>>, vector<1x1x8x32xbf16>
    %299 = vector.shape_cast %298 : vector<1x1x8x32xbf16> to vector<8x32xbf16>
    %300 = vector.shape_cast %296 : vector<8x32xbf16> to vector<1x1x8x32xbf16>
    tpu.vector_store %arg4[%c0_129, %297, %c0_130, %c0_131], %300 {strides = array<i32>} : memref<1x8x8x32xbf16, #tpu.memory_space<vmem>>, vector<1x1x8x32xbf16>,
    %c5_i32 = arith.constant 5 : i32
    %c2_i32_132 = arith.constant 2 : i32
    %301 = arith.muli %c2_i32_132, %c5_i32 : i32
    %c7_i32_133 = arith.constant 7 : i32
    %302 = arith.subi %c7_i32_133, %301 : i32
    %303 = arith.muli %arg0, %302 : i32
    %304 = arith.addi %c5_i32, %303 : i32
    %c0_134 = arith.constant 0 : index
    %305 = arith.index_cast %304 : i32 to index
    %c0_135 = arith.constant 0 : index
    %c0_136 = arith.constant 0 : index
    %c0_137 = arith.constant 0 : index
    %306 = vector.load %arg2[%c0_134, %305, %c0_135, %c0_136, %c0_137] : memref<1x8x4x8x32xbf16, #tpu.memory_space<vmem>>, vector<1x1x4x8x32xbf16>
    %307 = vector.shape_cast %306 : vector<1x1x4x8x32xbf16> to vector<4x8x32xbf16>
    %c0_138 = arith.constant 0 : index
    %c0_139 = arith.constant 0 : index
    %308 = vector.load %arg5[%c0_138, %c0_139] : memref<8x32xf32, #tpu.memory_space<vmem>>, vector<8x32xf32>
    %309 = arith.truncf %308 : vector<8x32xf32> to vector<8x32xbf16>
    %310 = vector.extract_strided_slice %307 {offsets = [0, 0, 0], sizes = [1, 8, 32], strides = [1, 1, 1]} : vector<4x8x32xbf16> to vector<1x8x32xbf16>
    %311 = vector.shape_cast %310 : vector<1x8x32xbf16> to vector<8x32xbf16>
    %312 = arith.extf %311 : vector<8x32xbf16> to vector<8x32xf32>
    %cst_140 = arith.constant dense<0.000000e+00> : vector<8x32xf32>
    %313 = tpu.matmul %309, %4, %cst_140 {dimension_numbers = #tpu.dot_dimension_numbers<[1], [0], [0], [1], [0, 0, 1, 1], [], []>} : vector<8x32xbf16>, vector<32x32xbf16>, vector<8x32xf32> -> vector<8x32xf32>
    %314 = arith.addf %312, %313 : vector<8x32xf32>
    %315 = vector.extract_strided_slice %307 {offsets = [1, 0, 0], sizes = [1, 8, 32], strides = [1, 1, 1]} : vector<4x8x32xbf16> to vector<1x8x32xbf16>
    %316 = vector.shape_cast %315 : vector<1x8x32xbf16> to vector<8x32xbf16>
    %317 = arith.extf %316 : vector<8x32xbf16> to vector<8x32xf32>
    %cst_141 = arith.constant dense<0.000000e+00> : vector<8x32xf32>
    %318 = tpu.matmul %309, %6, %cst_141 {dimension_numbers = #tpu.dot_dimension_numbers<[1], [0], [0], [1], [0, 0, 1, 1], [], []>} : vector<8x32xbf16>, vector<32x32xbf16>, vector<8x32xf32> -> vector<8x32xf32>
    %319 = arith.addf %317, %318 : vector<8x32xf32>
    %320 = vector.extract_strided_slice %307 {offsets = [2, 0, 0], sizes = [1, 8, 32], strides = [1, 1, 1]} : vector<4x8x32xbf16> to vector<1x8x32xbf16>
    %321 = vector.shape_cast %320 : vector<1x8x32xbf16> to vector<8x32xbf16>
    %322 = arith.extf %321 : vector<8x32xbf16> to vector<8x32xf32>
    %cst_142 = arith.constant dense<0.000000e+00> : vector<8x32xf32>
    %323 = tpu.matmul %309, %8, %cst_142 {dimension_numbers = #tpu.dot_dimension_numbers<[1], [0], [0], [1], [0, 0, 1, 1], [], []>} : vector<8x32xbf16>, vector<32x32xbf16>, vector<8x32xf32> -> vector<8x32xf32>
    %324 = arith.addf %322, %323 : vector<8x32xf32>
    %325 = vector.extract_strided_slice %307 {offsets = [3, 0, 0], sizes = [1, 8, 32], strides = [1, 1, 1]} : vector<4x8x32xbf16> to vector<1x8x32xbf16>
    %326 = vector.shape_cast %325 : vector<1x8x32xbf16> to vector<8x32xbf16>
    %327 = arith.extf %326 : vector<8x32xbf16> to vector<8x32xf32>
    %cst_143 = arith.constant dense<0.000000e+00> : vector<8x32xf32>
    %328 = tpu.matmul %309, %10, %cst_143 {dimension_numbers = #tpu.dot_dimension_numbers<[1], [0], [0], [1], [0, 0, 1, 1], [], []>} : vector<8x32xbf16>, vector<32x32xbf16>, vector<8x32xf32> -> vector<8x32xf32>
    %329 = arith.addf %327, %328 : vector<8x32xf32>
    %330 = arith.negf %314 : vector<8x32xf32>
    %331 = math.exp %330 : vector<8x32xf32>
    %cst_144 = arith.constant 1.000000e+00 : f32
    %332 = vector.broadcast %cst_144 : f32 to vector<8x32xf32>
    %333 = arith.addf %332, %331 : vector<8x32xf32>
    %334 = arith.divf %332, %333 : vector<8x32xf32>
    %335 = arith.negf %319 : vector<8x32xf32>
    %336 = math.exp %335 : vector<8x32xf32>
    %cst_145 = arith.constant 1.000000e+00 : f32
    %337 = vector.broadcast %cst_145 : f32 to vector<8x32xf32>
    %338 = arith.addf %337, %336 : vector<8x32xf32>
    %339 = arith.divf %337, %338 : vector<8x32xf32>
    %340 = math.tanh %324 : vector<8x32xf32>
    %341 = arith.negf %329 : vector<8x32xf32>
    %342 = math.exp %341 : vector<8x32xf32>
    %cst_146 = arith.constant 1.000000e+00 : f32
    %343 = vector.broadcast %cst_146 : f32 to vector<8x32xf32>
    %344 = arith.addf %343, %342 : vector<8x32xf32>
    %345 = arith.divf %343, %344 : vector<8x32xf32>
    %c0_147 = arith.constant 0 : index
    %c0_148 = arith.constant 0 : index
    %346 = vector.load %arg6[%c0_147, %c0_148] : memref<8x32xf32, #tpu.memory_space<vmem>>, vector<8x32xf32>
    %347 = arith.mulf %339, %346 : vector<8x32xf32>
    %348 = arith.mulf %334, %340 : vector<8x32xf32>
    %349 = arith.addf %347, %348 : vector<8x32xf32>
    %350 = math.tanh %349 : vector<8x32xf32>
    %351 = arith.mulf %345, %350 : vector<8x32xf32>
    %c0_149 = arith.constant 0 : index
    %c0_150 = arith.constant 0 : index
    %352 = vector.load %arg6[%c0_149, %c0_150] : memref<8x32xf32, #tpu.memory_space<vmem>>, vector<8x32xf32>
    tpu.vector_store %arg6[%c0_149, %c0_150], %349 {strides = array<i32>} : memref<8x32xf32, #tpu.memory_space<vmem>>, vector<8x32xf32>,
    %c0_151 = arith.constant 0 : index
    %c0_152 = arith.constant 0 : index
    %353 = vector.load %arg5[%c0_151, %c0_152] : memref<8x32xf32, #tpu.memory_space<vmem>>, vector<8x32xf32>
    tpu.vector_store %arg5[%c0_151, %c0_152], %351 {strides = array<i32>} : memref<8x32xf32, #tpu.memory_space<vmem>>, vector<8x32xf32>,
    %354 = arith.truncf %351 : vector<8x32xf32> to vector<8x32xbf16>
    %c0_153 = arith.constant 0 : index
    %355 = arith.index_cast %304 : i32 to index
    %c0_154 = arith.constant 0 : index
    %c0_155 = arith.constant 0 : index
    %356 = vector.load %arg4[%c0_153, %355, %c0_154, %c0_155] : memref<1x8x8x32xbf16, #tpu.memory_space<vmem>>, vector<1x1x8x32xbf16>
    %357 = vector.shape_cast %356 : vector<1x1x8x32xbf16> to vector<8x32xbf16>
    %358 = vector.shape_cast %354 : vector<8x32xbf16> to vector<1x1x8x32xbf16>
    tpu.vector_store %arg4[%c0_153, %355, %c0_154, %c0_155], %358 {strides = array<i32>} : memref<1x8x8x32xbf16, #tpu.memory_space<vmem>>, vector<1x1x8x32xbf16>,
    %c6_i32 = arith.constant 6 : i32
    %c2_i32_156 = arith.constant 2 : i32
    %359 = arith.muli %c2_i32_156, %c6_i32 : i32
    %c7_i32_157 = arith.constant 7 : i32
    %360 = arith.subi %c7_i32_157, %359 : i32
    %361 = arith.muli %arg0, %360 : i32
    %362 = arith.addi %c6_i32, %361 : i32
    %c0_158 = arith.constant 0 : index
    %363 = arith.index_cast %362 : i32 to index
    %c0_159 = arith.constant 0 : index
    %c0_160 = arith.constant 0 : index
    %c0_161 = arith.constant 0 : index
    %364 = vector.load %arg2[%c0_158, %363, %c0_159, %c0_160, %c0_161] : memref<1x8x4x8x32xbf16, #tpu.memory_space<vmem>>, vector<1x1x4x8x32xbf16>
    %365 = vector.shape_cast %364 : vector<1x1x4x8x32xbf16> to vector<4x8x32xbf16>
    %c0_162 = arith.constant 0 : index
    %c0_163 = arith.constant 0 : index
    %366 = vector.load %arg5[%c0_162, %c0_163] : memref<8x32xf32, #tpu.memory_space<vmem>>, vector<8x32xf32>
    %367 = arith.truncf %366 : vector<8x32xf32> to vector<8x32xbf16>
    %368 = vector.extract_strided_slice %365 {offsets = [0, 0, 0], sizes = [1, 8, 32], strides = [1, 1, 1]} : vector<4x8x32xbf16> to vector<1x8x32xbf16>
    %369 = vector.shape_cast %368 : vector<1x8x32xbf16> to vector<8x32xbf16>
    %370 = arith.extf %369 : vector<8x32xbf16> to vector<8x32xf32>
    %cst_164 = arith.constant dense<0.000000e+00> : vector<8x32xf32>
    %371 = tpu.matmul %367, %4, %cst_164 {dimension_numbers = #tpu.dot_dimension_numbers<[1], [0], [0], [1], [0, 0, 1, 1], [], []>} : vector<8x32xbf16>, vector<32x32xbf16>, vector<8x32xf32> -> vector<8x32xf32>
    %372 = arith.addf %370, %371 : vector<8x32xf32>
    %373 = vector.extract_strided_slice %365 {offsets = [1, 0, 0], sizes = [1, 8, 32], strides = [1, 1, 1]} : vector<4x8x32xbf16> to vector<1x8x32xbf16>
    %374 = vector.shape_cast %373 : vector<1x8x32xbf16> to vector<8x32xbf16>
    %375 = arith.extf %374 : vector<8x32xbf16> to vector<8x32xf32>
    %cst_165 = arith.constant dense<0.000000e+00> : vector<8x32xf32>
    %376 = tpu.matmul %367, %6, %cst_165 {dimension_numbers = #tpu.dot_dimension_numbers<[1], [0], [0], [1], [0, 0, 1, 1], [], []>} : vector<8x32xbf16>, vector<32x32xbf16>, vector<8x32xf32> -> vector<8x32xf32>
    %377 = arith.addf %375, %376 : vector<8x32xf32>
    %378 = vector.extract_strided_slice %365 {offsets = [2, 0, 0], sizes = [1, 8, 32], strides = [1, 1, 1]} : vector<4x8x32xbf16> to vector<1x8x32xbf16>
    %379 = vector.shape_cast %378 : vector<1x8x32xbf16> to vector<8x32xbf16>
    %380 = arith.extf %379 : vector<8x32xbf16> to vector<8x32xf32>
    %cst_166 = arith.constant dense<0.000000e+00> : vector<8x32xf32>
    %381 = tpu.matmul %367, %8, %cst_166 {dimension_numbers = #tpu.dot_dimension_numbers<[1], [0], [0], [1], [0, 0, 1, 1], [], []>} : vector<8x32xbf16>, vector<32x32xbf16>, vector<8x32xf32> -> vector<8x32xf32>
    %382 = arith.addf %380, %381 : vector<8x32xf32>
    %383 = vector.extract_strided_slice %365 {offsets = [3, 0, 0], sizes = [1, 8, 32], strides = [1, 1, 1]} : vector<4x8x32xbf16> to vector<1x8x32xbf16>
    %384 = vector.shape_cast %383 : vector<1x8x32xbf16> to vector<8x32xbf16>
    %385 = arith.extf %384 : vector<8x32xbf16> to vector<8x32xf32>
    %cst_167 = arith.constant dense<0.000000e+00> : vector<8x32xf32>
    %386 = tpu.matmul %367, %10, %cst_167 {dimension_numbers = #tpu.dot_dimension_numbers<[1], [0], [0], [1], [0, 0, 1, 1], [], []>} : vector<8x32xbf16>, vector<32x32xbf16>, vector<8x32xf32> -> vector<8x32xf32>
    %387 = arith.addf %385, %386 : vector<8x32xf32>
    %388 = arith.negf %372 : vector<8x32xf32>
    %389 = math.exp %388 : vector<8x32xf32>
    %cst_168 = arith.constant 1.000000e+00 : f32
    %390 = vector.broadcast %cst_168 : f32 to vector<8x32xf32>
    %391 = arith.addf %390, %389 : vector<8x32xf32>
    %392 = arith.divf %390, %391 : vector<8x32xf32>
    %393 = arith.negf %377 : vector<8x32xf32>
    %394 = math.exp %393 : vector<8x32xf32>
    %cst_169 = arith.constant 1.000000e+00 : f32
    %395 = vector.broadcast %cst_169 : f32 to vector<8x32xf32>
    %396 = arith.addf %395, %394 : vector<8x32xf32>
    %397 = arith.divf %395, %396 : vector<8x32xf32>
    %398 = math.tanh %382 : vector<8x32xf32>
    %399 = arith.negf %387 : vector<8x32xf32>
    %400 = math.exp %399 : vector<8x32xf32>
    %cst_170 = arith.constant 1.000000e+00 : f32
    %401 = vector.broadcast %cst_170 : f32 to vector<8x32xf32>
    %402 = arith.addf %401, %400 : vector<8x32xf32>
    %403 = arith.divf %401, %402 : vector<8x32xf32>
    %c0_171 = arith.constant 0 : index
    %c0_172 = arith.constant 0 : index
    %404 = vector.load %arg6[%c0_171, %c0_172] : memref<8x32xf32, #tpu.memory_space<vmem>>, vector<8x32xf32>
    %405 = arith.mulf %397, %404 : vector<8x32xf32>
    %406 = arith.mulf %392, %398 : vector<8x32xf32>
    %407 = arith.addf %405, %406 : vector<8x32xf32>
    %408 = math.tanh %407 : vector<8x32xf32>
    %409 = arith.mulf %403, %408 : vector<8x32xf32>
    %c0_173 = arith.constant 0 : index
    %c0_174 = arith.constant 0 : index
    %410 = vector.load %arg6[%c0_173, %c0_174] : memref<8x32xf32, #tpu.memory_space<vmem>>, vector<8x32xf32>
    tpu.vector_store %arg6[%c0_173, %c0_174], %407 {strides = array<i32>} : memref<8x32xf32, #tpu.memory_space<vmem>>, vector<8x32xf32>,
    %c0_175 = arith.constant 0 : index
    %c0_176 = arith.constant 0 : index
    %411 = vector.load %arg5[%c0_175, %c0_176] : memref<8x32xf32, #tpu.memory_space<vmem>>, vector<8x32xf32>
    tpu.vector_store %arg5[%c0_175, %c0_176], %409 {strides = array<i32>} : memref<8x32xf32, #tpu.memory_space<vmem>>, vector<8x32xf32>,
    %412 = arith.truncf %409 : vector<8x32xf32> to vector<8x32xbf16>
    %c0_177 = arith.constant 0 : index
    %413 = arith.index_cast %362 : i32 to index
    %c0_178 = arith.constant 0 : index
    %c0_179 = arith.constant 0 : index
    %414 = vector.load %arg4[%c0_177, %413, %c0_178, %c0_179] : memref<1x8x8x32xbf16, #tpu.memory_space<vmem>>, vector<1x1x8x32xbf16>
    %415 = vector.shape_cast %414 : vector<1x1x8x32xbf16> to vector<8x32xbf16>
    %416 = vector.shape_cast %412 : vector<8x32xbf16> to vector<1x1x8x32xbf16>
    tpu.vector_store %arg4[%c0_177, %413, %c0_178, %c0_179], %416 {strides = array<i32>} : memref<1x8x8x32xbf16, #tpu.memory_space<vmem>>, vector<1x1x8x32xbf16>,
    %c7_i32_180 = arith.constant 7 : i32
    %c2_i32_181 = arith.constant 2 : i32
    %417 = arith.muli %c2_i32_181, %c7_i32_180 : i32
    %c7_i32_182 = arith.constant 7 : i32
    %418 = arith.subi %c7_i32_182, %417 : i32
    %419 = arith.muli %arg0, %418 : i32
    %420 = arith.addi %c7_i32_180, %419 : i32
    %c0_183 = arith.constant 0 : index
    %421 = arith.index_cast %420 : i32 to index
    %c0_184 = arith.constant 0 : index
    %c0_185 = arith.constant 0 : index
    %c0_186 = arith.constant 0 : index
    %422 = vector.load %arg2[%c0_183, %421, %c0_184, %c0_185, %c0_186] : memref<1x8x4x8x32xbf16, #tpu.memory_space<vmem>>, vector<1x1x4x8x32xbf16>
    %423 = vector.shape_cast %422 : vector<1x1x4x8x32xbf16> to vector<4x8x32xbf16>
    %c0_187 = arith.constant 0 : index
    %c0_188 = arith.constant 0 : index
    %424 = vector.load %arg5[%c0_187, %c0_188] : memref<8x32xf32, #tpu.memory_space<vmem>>, vector<8x32xf32>
    %425 = arith.truncf %424 : vector<8x32xf32> to vector<8x32xbf16>
    %426 = vector.extract_strided_slice %423 {offsets = [0, 0, 0], sizes = [1, 8, 32], strides = [1, 1, 1]} : vector<4x8x32xbf16> to vector<1x8x32xbf16>
    %427 = vector.shape_cast %426 : vector<1x8x32xbf16> to vector<8x32xbf16>
    %428 = arith.extf %427 : vector<8x32xbf16> to vector<8x32xf32>
    %cst_189 = arith.constant dense<0.000000e+00> : vector<8x32xf32>
    %429 = tpu.matmul %425, %4, %cst_189 {dimension_numbers = #tpu.dot_dimension_numbers<[1], [0], [0], [1], [0, 0, 1, 1], [], []>} : vector<8x32xbf16>, vector<32x32xbf16>, vector<8x32xf32> -> vector<8x32xf32>
    %430 = arith.addf %428, %429 : vector<8x32xf32>
    %431 = vector.extract_strided_slice %423 {offsets = [1, 0, 0], sizes = [1, 8, 32], strides = [1, 1, 1]} : vector<4x8x32xbf16> to vector<1x8x32xbf16>
    %432 = vector.shape_cast %431 : vector<1x8x32xbf16> to vector<8x32xbf16>
    %433 = arith.extf %432 : vector<8x32xbf16> to vector<8x32xf32>
    %cst_190 = arith.constant dense<0.000000e+00> : vector<8x32xf32>
    %434 = tpu.matmul %425, %6, %cst_190 {dimension_numbers = #tpu.dot_dimension_numbers<[1], [0], [0], [1], [0, 0, 1, 1], [], []>} : vector<8x32xbf16>, vector<32x32xbf16>, vector<8x32xf32> -> vector<8x32xf32>
    %435 = arith.addf %433, %434 : vector<8x32xf32>
    %436 = vector.extract_strided_slice %423 {offsets = [2, 0, 0], sizes = [1, 8, 32], strides = [1, 1, 1]} : vector<4x8x32xbf16> to vector<1x8x32xbf16>
    %437 = vector.shape_cast %436 : vector<1x8x32xbf16> to vector<8x32xbf16>
    %438 = arith.extf %437 : vector<8x32xbf16> to vector<8x32xf32>
    %cst_191 = arith.constant dense<0.000000e+00> : vector<8x32xf32>
    %439 = tpu.matmul %425, %8, %cst_191 {dimension_numbers = #tpu.dot_dimension_numbers<[1], [0], [0], [1], [0, 0, 1, 1], [], []>} : vector<8x32xbf16>, vector<32x32xbf16>, vector<8x32xf32> -> vector<8x32xf32>
    %440 = arith.addf %438, %439 : vector<8x32xf32>
    %441 = vector.extract_strided_slice %423 {offsets = [3, 0, 0], sizes = [1, 8, 32], strides = [1, 1, 1]} : vector<4x8x32xbf16> to vector<1x8x32xbf16>
    %442 = vector.shape_cast %441 : vector<1x8x32xbf16> to vector<8x32xbf16>
    %443 = arith.extf %442 : vector<8x32xbf16> to vector<8x32xf32>
    %cst_192 = arith.constant dense<0.000000e+00> : vector<8x32xf32>
    %444 = tpu.matmul %425, %10, %cst_192 {dimension_numbers = #tpu.dot_dimension_numbers<[1], [0], [0], [1], [0, 0, 1, 1], [], []>} : vector<8x32xbf16>, vector<32x32xbf16>, vector<8x32xf32> -> vector<8x32xf32>
    %445 = arith.addf %443, %444 : vector<8x32xf32>
    %446 = arith.negf %430 : vector<8x32xf32>
    %447 = math.exp %446 : vector<8x32xf32>
    %cst_193 = arith.constant 1.000000e+00 : f32
    %448 = vector.broadcast %cst_193 : f32 to vector<8x32xf32>
    %449 = arith.addf %448, %447 : vector<8x32xf32>
    %450 = arith.divf %448, %449 : vector<8x32xf32>
    %451 = arith.negf %435 : vector<8x32xf32>
    %452 = math.exp %451 : vector<8x32xf32>
    %cst_194 = arith.constant 1.000000e+00 : f32
    %453 = vector.broadcast %cst_194 : f32 to vector<8x32xf32>
    %454 = arith.addf %453, %452 : vector<8x32xf32>
    %455 = arith.divf %453, %454 : vector<8x32xf32>
    %456 = math.tanh %440 : vector<8x32xf32>
    %457 = arith.negf %445 : vector<8x32xf32>
    %458 = math.exp %457 : vector<8x32xf32>
    %cst_195 = arith.constant 1.000000e+00 : f32
    %459 = vector.broadcast %cst_195 : f32 to vector<8x32xf32>
    %460 = arith.addf %459, %458 : vector<8x32xf32>
    %461 = arith.divf %459, %460 : vector<8x32xf32>
    %c0_196 = arith.constant 0 : index
    %c0_197 = arith.constant 0 : index
    %462 = vector.load %arg6[%c0_196, %c0_197] : memref<8x32xf32, #tpu.memory_space<vmem>>, vector<8x32xf32>
    %463 = arith.mulf %455, %462 : vector<8x32xf32>
    %464 = arith.mulf %450, %456 : vector<8x32xf32>
    %465 = arith.addf %463, %464 : vector<8x32xf32>
    %466 = math.tanh %465 : vector<8x32xf32>
    %467 = arith.mulf %461, %466 : vector<8x32xf32>
    %c0_198 = arith.constant 0 : index
    %c0_199 = arith.constant 0 : index
    %468 = vector.load %arg6[%c0_198, %c0_199] : memref<8x32xf32, #tpu.memory_space<vmem>>, vector<8x32xf32>
    tpu.vector_store %arg6[%c0_198, %c0_199], %465 {strides = array<i32>} : memref<8x32xf32, #tpu.memory_space<vmem>>, vector<8x32xf32>,
    %c0_200 = arith.constant 0 : index
    %c0_201 = arith.constant 0 : index
    %469 = vector.load %arg5[%c0_200, %c0_201] : memref<8x32xf32, #tpu.memory_space<vmem>>, vector<8x32xf32>
    tpu.vector_store %arg5[%c0_200, %c0_201], %467 {strides = array<i32>} : memref<8x32xf32, #tpu.memory_space<vmem>>, vector<8x32xf32>,
    %470 = arith.truncf %467 : vector<8x32xf32> to vector<8x32xbf16>
    %c0_202 = arith.constant 0 : index
    %471 = arith.index_cast %420 : i32 to index
    %c0_203 = arith.constant 0 : index
    %c0_204 = arith.constant 0 : index
    %472 = vector.load %arg4[%c0_202, %471, %c0_203, %c0_204] : memref<1x8x8x32xbf16, #tpu.memory_space<vmem>>, vector<1x1x8x32xbf16>
    %473 = vector.shape_cast %472 : vector<1x1x8x32xbf16> to vector<8x32xbf16>
    %474 = vector.shape_cast %470 : vector<8x32xbf16> to vector<1x1x8x32xbf16>
    tpu.vector_store %arg4[%c0_202, %471, %c0_203, %c0_204], %474 {strides = array<i32>} : memref<1x8x8x32xbf16, #tpu.memory_space<vmem>>, vector<1x1x8x32xbf16>,
    %c8_i32 = arith.constant 8 : i32
    return
  }
  func.func @transform_0(%arg0: i32, %arg1: i32) -> (i32, i32, i32, i32, i32) {
    %c2_i32 = arith.constant 2 : i32
    %0 = arith.muli %c2_i32, %arg1 : i32
    %c0_i32 = arith.constant 0 : i32
    %1 = arith.subi %c0_i32, %0 : i32
    %2 = arith.muli %arg0, %1 : i32
    %3 = arith.addi %arg1, %2 : i32
    %c0_i32_0 = arith.constant 0 : i32
    %c0_i32_1 = arith.constant 0 : i32
    %c0_i32_2 = arith.constant 0 : i32
    %c0_i32_3 = arith.constant 0 : i32
    return %arg0, %3, %c0_i32_0, %c0_i32_1, %c0_i32_2 : i32, i32, i32, i32, i32
  }
  func.func @transform_1(%arg0: i32, %arg1: i32) -> (i32, i32, i32, i32) {
    %c0_i32 = arith.constant 0 : i32
    %c0_i32_0 = arith.constant 0 : i32
    %c0_i32_1 = arith.constant 0 : i32
    %c0_i32_2 = arith.constant 0 : i32
    return %arg0, %c0_i32, %c0_i32_0, %c0_i32_1 : i32, i32, i32, i32
  }
  func.func @transform_2(%arg0: i32, %arg1: i32) -> (i32, i32, i32, i32) {
    %c2_i32 = arith.constant 2 : i32
    %0 = arith.muli %c2_i32, %arg1 : i32
    %c0_i32 = arith.constant 0 : i32
    %1 = arith.subi %c0_i32, %0 : i32
    %2 = arith.muli %arg0, %1 : i32
    %3 = arith.addi %arg1, %2 : i32
    %c0_i32_0 = arith.constant 0 : i32
    %c0_i32_1 = arith.constant 0 : i32
    %c0_i32_2 = arith.constant 0 : i32
    return %arg0, %3, %c0_i32_0, %c0_i32_1 : i32, i32, i32, i32
  }
}

</mosaic_0001>

<llo_original>
// kernel: birnn_forward.2
$region0: #{birnn_forward.2}
  #allocation0 [shape = 'u32[]', space=smem, size = 0x4, offset = 0x4, fixed_abs, tag = 'smem constant byte address 0x4 - core index']
  #allocation1 [shape = 'u32[144,128]{1,0:T(1,128)}', space=vmem, size = 0x12000, scoped, tag = 'internal scratch']
  #allocation2 [shape = 'f32[8,32]{1,0:T(8,128)}', space=vmem, size = 0x1000, scoped, tag = 'scratch operand']
  #allocation3 [shape = 'f32[8,32]{1,0:T(8,128)}', space=vmem, size = 0x1000, scoped, tag = 'scratch operand']
  %s0 = inlined_call_operand.vmem [shape: bf16[2,8,4,8,32], index: 0, kind: input, shape index: {}]
  %s1 = inlined_call_operand.vmem [shape: bf16[2,4,32,32], index: 1, kind: input, shape index: {}]
  %s2 = inlined_call_operand.vmem [shape: bf16[2,8,8,32], index: 2, kind: output, shape index: {}]
  %s3 = sld [smem:[#allocation0]]
  $region45: #{birnn_forward.2} parent=0
    _
  %s5 = ssub.s32 1, %s3
  %s6 = scalar_select 0, %s5, %s3
  loop: start=0, step=1, limit=4
  $region2: #{birnn_forward.2} parent=0 // loop_pre_header
    _
  $region3: #{birnn_forward.2} parent=0 // loop_header
    %s8 = sphi 0, %s12
    %p9 = scmp.ge.s32.totalorder %s8, 4
    %s15 = sphi 0, %s27
    %s16 = sphi 0, %s23
    %s17 = sphi 0, %s15
    %s18 = sphi 0, %s16
    %s19 = sphi 0, %s17
    %s20 = sphi 0, %s18
    %s40 = sphi 0, %s42
    %s43 = sphi 0, %s40
    %s44 = sphi 0, %s43
    %s60 = sphi 0, %s44
    %s66 = sphi 0, %s68
    %s69 = sphi 0, %s66
    %s70 = sphi 0, %s69
    %s86 = sphi 0, %s70
    %s102 = sphi 0, %s104
    %s105 = sphi 0, %s102
    %s106 = sphi 0, %s105
    %s122 = sphi 0, %s106
  $region4: #{birnn_forward.2} parent=0 // loop_header_branch
    %11 = sbr.rel (%p9) target = $region8
  $region5: #{birnn_forward.2} parent=0 // loop_body
    %s13 = ssub.s32 %s8, 1
    %s14 = ssub.s32 %s8, 2
    %s21 = sadd.s32 1, %s16
    %p22 = scmp.ge.s32.totalorder %s21, 1
    %s23 = scalar_select %p22, 0, %s21
    %s24 = sadd.s32 1, %s15
    %s25 = scalar_select %p22, %s24, %s15
    %p26 = scmp.ge.s32.totalorder %s25, 2
    %s27 = scalar_select %p26, 0, %s25
    %s28 = smul.u32 %s16, 2
    %s29 = ssub.s32 0, %s28
    %s30 = smul.u32 %s15, %s29
    %s31 = sadd.s32 %s16, %s30
    %s32 = smul.u32 %s23, 2
    %s33 = ssub.s32 0, %s32
    %s34 = smul.u32 %s27, %s33
    %s35 = sadd.s32 %s23, %s34
    %s36 = ssub.s32 %s15, %s27
    %s37 = ssub.s32 %s31, %s35
    %s38 = sor.u32 %s36, %s37
    %p39 = scmp.eq.s32.totalorder %s38, 0
    %s41 = sadd.s32 %s40, 1
    %s42 = scalar_select %p39, %s40, %s41
    %p45 = pneg %p39
    %p46 = scmp.eq.s32.totalorder %s8, 1
    %p47 = por %p45, %p46
    %p48 = scmp.ne.s32.totalorder %s40, %s43
    %p49 = scmp.eq.s32.totalorder %s8, 0
    %p50 = por %p48, %p49
    %p51 = scmp.ne.s32.totalorder %s40, %s43
    %p52 = scmp.eq.s32.totalorder %s13, 1
    %p53 = por %p51, %p52
    %p54 = scmp.ne.s32.totalorder %s43, %s44
    %p55 = scmp.eq.s32.totalorder %s13, 0
    %p56 = por %p54, %p55
    %p57 = scmp.ne.s32.totalorder %s43, %s44
    %p58 = scmp.eq.s32.totalorder %s14, 1
    %p59 = por %p57, %p58
    %p61 = scmp.ne.s32.totalorder %s44, %s60
    %p62 = scmp.eq.s32.totalorder %s14, 0
    %p63 = por %p61, %p62
    %s64 = ssub.s32 %s15, %s27
    %p65 = scmp.eq.s32.totalorder %s64, 0
    %s67 = sadd.s32 %s66, 1
    %s68 = scalar_select %p65, %s66, %s67
    %p71 = pneg %p65
    %p72 = scmp.eq.s32.totalorder %s8, 1
    %p73 = por %p71, %p72
    %p74 = scmp.ne.s32.totalorder %s66, %s69
    %p75 = scmp.eq.s32.totalorder %s8, 0
    %p76 = por %p74, %p75
    %p77 = scmp.ne.s32.totalorder %s66, %s69
    %p78 = scmp.eq.s32.totalorder %s13, 1
    %p79 = por %p77, %p78
    %p80 = scmp.ne.s32.totalorder %s69, %s70
    %p81 = scmp.eq.s32.totalorder %s13, 0
    %p82 = por %p80, %p81
    %p83 = scmp.ne.s32.totalorder %s69, %s70
    %p84 = scmp.eq.s32.totalorder %s14, 1
    %p85 = por %p83, %p84
    %p87 = scmp.ne.s32.totalorder %s70, %s86
    %p88 = scmp.eq.s32.totalorder %s14, 0
    %p89 = por %p87, %p88
    %s90 = smul.u32 %s16, 2
    %s91 = ssub.s32 0, %s90
    %s92 = smul.u32 %s15, %s91
    %s93 = sadd.s32 %s16, %s92
    %s94 = smul.u32 %s23, 2
    %s95 = ssub.s32 0, %s94
    %s96 = smul.u32 %s27, %s95
    %s97 = sadd.s32 %s23, %s96
    %s98 = ssub.s32 %s15, %s27
    %s99 = ssub.s32 %s93, %s97
    %s100 = sor.u32 %s98, %s99
    %p101 = scmp.eq.s32.totalorder %s100, 0
    %s103 = sadd.s32 %s102, 1
    %s104 = scalar_select %p101, %s102, %s103
    %p107 = pneg %p101
    %p108 = scmp.eq.s32.totalorder %s8, 1
    %p109 = por %p107, %p108
    %p110 = scmp.ne.s32.totalorder %s102, %s105
    %p111 = scmp.eq.s32.totalorder %s8, 0
    %p112 = por %p110, %p111
    %p113 = scmp.ne.s32.totalorder %s102, %s105
    %p114 = scmp.eq.s32.totalorder %s13, 1
    %p115 = por %p113, %p114
    %p116 = scmp.ne.s32.totalorder %s105, %s106
    %p117 = scmp.eq.s32.totalorder %s13, 0
    %p118 = por %p116, %p117
    %p119 = scmp.ne.s32.totalorder %s105, %s106
    %p120 = scmp.eq.s32.totalorder %s14, 1
    %p121 = por %p119, %p120
    %p123 = scmp.ne.s32.totalorder %s106, %s122
    %p124 = scmp.eq.s32.totalorder %s14, 0
    %p125 = por %p123, %p124
    %p126 = scmp.le.s32.totalorder 1, %s8
    %p127 = scmp.lt.s32.totalorder %s8, 3
    %p128 = pnand %p126, %p127
    %p129 = pneg %p128
    // Predicated region
    $region9: #{birnn_forward.2} parent=5 // pred_check
      _
    $region10: #{birnn_forward.2} parent=5 // pred_check_branch
      %131 = sbr.rel (%p128) target = $region12
    $region11: #{birnn_forward.2} parent=5 // pred_region
      %s132 = ssub.s32 %s8, 1
    $region12: #{birnn_forward.2} parent=5 // pred_fallthru
      _
    %p133 = scmp.lt.s32.totalorder %s8, 2
    // Predicated region
    $region13: #{birnn_forward.2} parent=5 // pred_check
      %p134 = pneg %p133
    $region14: #{birnn_forward.2} parent=5 // pred_check_branch
      %136 = sbr.rel (%p134) target = $region16
    $region15: #{birnn_forward.2} parent=5 // pred_region
      // Predicated region
      $region17: #{birnn_forward.2} parent=15 // pred_check
        %p137 = pneg %p50
      $region18: #{birnn_forward.2} parent=15 // pred_check_branch
        %139 = sbr.rel (%p137) target = $region20
      $region19: #{birnn_forward.2} parent=15 // pred_region
        %s140 = smul.u32 %s16, 2
        %s141 = ssub.s32 0, %s140
        %s142 = smul.u32 %s15, %s141
        %s143 = sadd.s32 %s16, %s142
        %s144 = smul.u32 8, %s143
        %p145 = scmp.lt.s32.totalorder %s15, 1
        %s146 = scalar_select %p145, %s15, 1
        %p147 = scmp.lt.s32.totalorder %s144, 7
        %s148 = scalar_select %p147, %s144, 7
        %s149 = smul.addr %s148, 4
        %s150 = smul.addr %s146, 32
        %s151 = sadd.s32 %s149, %s150
        %s152 = smul.addr %s151, 4
        %s153 = scalar_lea.vmem %s0, %s152
        %s154 = smul.u32 %s16, 2
        %s155 = ssub.s32 0, %s154
        %s156 = smul.u32 %s15, %s155
        %s157 = sadd.s32 %s16, %s156
        %s158 = smul.u32 8, %s157
      $region20: #{birnn_forward.2} parent=15 // pred_fallthru
        _
      // Predicated region
      $region21: #{birnn_forward.2} parent=15 // pred_check
        %p159 = pneg %p76
      $region22: #{birnn_forward.2} parent=15 // pred_check_branch
        %161 = sbr.rel (%p159) target = $region24
      $region23: #{birnn_forward.2} parent=15 // pred_region
        %p162 = scmp.lt.s32.totalorder %s15, 1
        %s163 = scalar_select %p162, %s15, 1
        %s164 = smul.addr %s163, 16
        %s165 = smul.addr %s164, 4
        %s166 = scalar_lea.vmem %s1, %s165
      $region24: #{birnn_forward.2} parent=15 // pred_fallthru
        _
    $region16: #{birnn_forward.2} parent=5 // pred_fallthru
      _
    %p167 = scmp.le.s32.totalorder 1, %s8
    %p168 = scmp.lt.s32.totalorder %s8, 3
    %p169 = pnand %p167, %p168
    %p170 = pneg %p169
    // Predicated region
    $region25: #{birnn_forward.2} parent=5 // pred_check
      _
    $region26: #{birnn_forward.2} parent=5 // pred_check_branch
      %172 = sbr.rel (%p169) target = $region28
    $region27: #{birnn_forward.2} parent=5 // pred_region
      %s173 = ssub.s32 %s8, 1
      %s174 = smul.u32 %s18, 2
      %s175 = ssub.s32 0, %s174
      %s176 = smul.u32 %s17, %s175
      %s177 = sadd.s32 %s18, %s176
      %s178 = smul.u32 8, %s177
      %p179 = scmp.lt.s32.totalorder %s17, 1
      %s180 = scalar_select %p179, %s17, 1
      %p181 = scmp.lt.s32.totalorder %s178, 7
      %s182 = scalar_select %p181, %s178, 7
      %s183 = smul.addr %s182, 4
      %s184 = smul.addr %s180, 32
      %s185 = sadd.s32 %s183, %s184
      %s186 = smul.addr %s185, 4
      %s187 = scalar_lea.vmem %s0, %s186
      %p188 = pneg %p56
      %p189 = pneg %p53
      %p190 = scmp.lt.s32.totalorder %s17, 1
      %s191 = scalar_select %p190, %s17, 1
      %s192 = smul.addr %s191, 16
      %s193 = smul.addr %s192, 4
      %s194 = scalar_lea.vmem %s1, %s193
      %p195 = pneg %p82
      %p196 = pneg %p79
      %p197 = pneg %p118
      %p198 = pneg %p115
      %s199 = smul.u32 %s18, 2
      %s200 = ssub.s32 0, %s199
      %s201 = smul.u32 %s17, %s200
      %s202 = sadd.s32 %s18, %s201
      %s203 = smul.u32 8, %s202
      %p204 = scmp.lt.s32.totalorder %s17, 1
      %s205 = scalar_select %p204, %s17, 1
      %p206 = scmp.lt.s32.totalorder %s203, 7
      %s207 = scalar_select %p206, %s203, 7
      %s208 = smul.addr %s205, 8
      %s209 = sadd.s32 %s207, %s208
      %s210 = smul.addr %s209, 4
      %s211 = scalar_lea.vmem %s2, %s210
      %s212 = smul.u32 %s18, 2
      %s213 = ssub.s32 0, %s212
      %s214 = smul.u32 %s17, %s213
      %s215 = sadd.s32 %s18, %s214
      %s216 = smul.u32 8, %s215
      %p217 = scmp.lt.s32.totalorder %s17, 1
      %s218 = scalar_select %p217, %s17, 1
      %p219 = scmp.lt.s32.totalorder %s216, 7
      %s220 = scalar_select %p219, %s216, 7
      %s221 = smul.addr %s220, 4
      %s222 = smul.addr %s218, 32
      %s223 = sadd.s32 %s221, %s222
      %s224 = smul.addr %s223, 4
      %s225 = scalar_lea.vmem %s0, %s224
      %s226 = smul.u32 %s18, 2
      %s227 = ssub.s32 0, %s226
      %s228 = smul.u32 %s17, %s227
      %s229 = sadd.s32 %s18, %s228
      %s230 = smul.u32 8, %s229
      %p231 = scmp.lt.s32.totalorder %s17, 1
      %s232 = scalar_select %p231, %s17, 1
      %s233 = smul.addr %s232, 16
      %s234 = smul.addr %s233, 4
      %s235 = scalar_lea.vmem %s1, %s234
      %s236 = smul.u32 %s18, 2
      %s237 = ssub.s32 0, %s236
      %s238 = smul.u32 %s17, %s237
      %s239 = sadd.s32 %s18, %s238
      %s240 = smul.u32 8, %s239
      %p241 = scmp.lt.s32.totalorder %s17, 1
      %s242 = scalar_select %p241, %s17, 1
      %p243 = scmp.lt.s32.totalorder %s240, 7
      %s244 = scalar_select %p243, %s240, 7
      %s245 = smul.addr %s242, 8
      %s246 = sadd.s32 %s244, %s245
      %s247 = smul.addr %s246, 4
      %s248 = scalar_lea.vmem %s2, %s247
      %s249 = smul.u32 %s18, 2
      %s250 = ssub.s32 0, %s249
      %s251 = smul.u32 %s17, %s250
      %s252 = sadd.s32 %s18, %s251
      %s253 = smul.u32 8, %s252
      %p255 = scmp.eq.s32.totalorder %s18, 0
      // Predicated region
      $region29: #{birnn_forward.2} parent=27 // pred_check
        %p256 = pneg %p255
      $region30: #{birnn_forward.2} parent=27 // pred_check_branch
        %258 = sbr.rel (%p256) target = $region32
      $region31: #{birnn_forward.2} parent=27 // pred_region
        %vm259 = vcmask 261120
        %260 = vst.msk [vmem:[#allocation2] sm:$0xff] %vm259, 0.0
        %261 = vst.msk [vmem:[#allocation3] sm:$0xff] %vm259, 0.0
      $region32: #{birnn_forward.2} parent=27 // pred_fallthru
        _
      %v262 = vld [vmem:[%s235] sm:$0xf]
      %v263 = vld [vmem:[%s235 + $0x4] sm:$0xf]
      %v264 = vld [vmem:[%s235 + $0x8] sm:$0xf]
      %v265 = vld [vmem:[%s235 + $0xc] sm:$0xf]
      %s266 = scalar_lea.vmem %s235, 16
      %v267 = vld [vmem:[%s266] sm:$0xf]
      %v268 = vld [vmem:[%s266 + $0x4] sm:$0xf]
      %v269 = vld [vmem:[%s266 + $0x8] sm:$0xf]
      %v270 = vld [vmem:[%s266 + $0xc] sm:$0xf]
      %s271 = scalar_lea.vmem %s235, 32
      %v272 = vld [vmem:[%s271] sm:$0xf]
      %v273 = vld [vmem:[%s271 + $0x4] sm:$0xf]
      %v274 = vld [vmem:[%s271 + $0x8] sm:$0xf]
      %v275 = vld [vmem:[%s271 + $0xc] sm:$0xf]
      %s276 = scalar_lea.vmem %s235, 48
      %v277 = vld [vmem:[%s276] sm:$0xf]
      %v278 = vld [vmem:[%s276 + $0x4] sm:$0xf]
      %v279 = vld [vmem:[%s276 + $0x8] sm:$0xf]
      %v280 = vld [vmem:[%s276 + $0xc] sm:$0xf]
      %s281 = smul.u32 %s17, 7
      %s282 = smul.u32 %s281, 4
      %s283 = smul.addr %s282, 4
      %s284 = scalar_lea.vmem %s225, %s283
      %v285 = vld [vmem:[%s284] sm:$0xf]
      %v286 = vld [vmem:[%s284 + $0x4] sm:$0xf]
      %v287 = vld [vmem:[%s284 + $0x8] sm:$0xf]
      %v288 = vld [vmem:[%s284 + $0xc] sm:$0xf]
      %v289 = vld [vmem:[#allocation2] sm:$0xff]
      %v290 = vpack.c.bf16 %v289, %v289
      %v291 = vunpack.c.l.bf16 %v285
      %v296 = vunpack.c.l.b16 %v262
      %v297 = vunpack.c.l.b16 %v263
      %v298 = vunpack.c.l.b16 %v264
      %v299 = vunpack.c.l.b16 %v265
      %v300 = vpack.c.b16 %v297, %v296
      %v301 = vpack.c.b16 %v299, %v298
      %vm304 = vcmask 261120
      %v306 = vsel %vm304, %v290, 0
      %308 = vmatprep.subr.bf16.mxu0 0
      %309 = vmatpush1.bf16.msra.mxu0 %v300
      %310 = vmatprep.subr.bf16.mxu0 0
      %311 = vmatpush1.bf16.msra.mxu0 %v301
      %312 = vmatprep.subr.bf16.mxu0 0
      %313 = vmatpush1.bf16.msra.mxu0 0
      %314 = vmatprep.subr.bf16.mxu0 0
      %315 = vmatpush1.bf16.msra.mxu0 0
      %316 = vmatprep.subr.bf16.mxu0 0
      %317 = vmatpush1.bf16.msra.mxu0 0
      %318 = vmatprep.subr.bf16.mxu0 0
      %319 = vmatpush1.bf16.msra.mxu0 0
      %320 = vmatprep.subr.bf16.mxu0 0
      %321 = vmatpush1.bf16.msra.mxu0 0
      %322 = vmatprep.subr.bf16.mxu0 0
      %323 = vmatpush1.bf16.msra.mxu0 0
      %324 = vmatprep.subr.bf16.mxu0 0
      %325 = vmatpush1.bf16.msra.mxu0 0
      %326 = vmatprep.subr.bf16.mxu0 0
      %327 = vmatpush1.bf16.msra.mxu0 0
      %328 = vmatprep.subr.bf16.mxu0 0
      %329 = vmatpush1.bf16.msra.mxu0 0
      %330 = vmatprep.subr.bf16.mxu0 0
      %331 = vmatpush1.bf16.msra.mxu0 0
      %332 = vmatprep.subr.bf16.mxu0 0
      %333 = vmatpush1.bf16.msra.mxu0 0
      %334 = vmatprep.subr.bf16.mxu0 0
      %335 = vmatpush1.bf16.msra.mxu0 0
      %336 = vmatprep.subr.bf16.mxu0 0
      %337 = vmatpush1.bf16.msra.mxu0 0
      %338 = vmatprep.subr.bf16.mxu0 0
      %339 = vmatpush1.bf16.msra.mxu0 0
      %340 = vmatprep.mubr.bf16.mxu0 0
      %341 = vmatmul.mubr.bf16.gmra.mrb[0].mxu0 %v306
      %v342 = vpop.f32.mrb[0].mxu0
      %v343 = vadd.f32 0.0, %v342
      %v344 = vpop.f32.mrb[0].mxu0
      %v345 = vpop.f32.mrb[0].mxu0
      %v346 = vpop.f32.mrb[0].mxu0
      %347 = vdwg.mxu0
      %v348 = vadd.f32 %v291, %v343
      %v349 = vunpack.c.l.bf16 %v286
      %v354 = vunpack.c.l.b16 %v267
      %v355 = vunpack.c.l.b16 %v268
      %v356 = vunpack.c.l.b16 %v269
      %v357 = vunpack.c.l.b16 %v270
      %v358 = vpack.c.b16 %v355, %v354
      %v359 = vpack.c.b16 %v357, %v356
      %362 = vmatprep.subr.bf16.mxu0 0
      %363 = vmatpush1.bf16.msra.mxu0 %v358
      %364 = vmatprep.subr.bf16.mxu0 0
      %365 = vmatpush1.bf16.msra.mxu0 %v359
      %366 = vmatprep.subr.bf16.mxu0 0
      %367 = vmatpush1.bf16.msra.mxu0 0
      %368 = vmatprep.subr.bf16.mxu0 0
      %369 = vmatpush1.bf16.msra.mxu0 0
      %370 = vmatprep.subr.bf16.mxu0 0
      %371 = vmatpush1.bf16.msra.mxu0 0
      %372 = vmatprep.subr.bf16.mxu0 0
      %373 = vmatpush1.bf16.msra.mxu0 0
      %374 = vmatprep.subr.bf16.mxu0 0
      %375 = vmatpush1.bf16.msra.mxu0 0
      %376 = vmatprep.subr.bf16.mxu0 0
      %377 = vmatpush1.bf16.msra.mxu0 0
      %378 = vmatprep.subr.bf16.mxu0 0
      %379 = vmatpush1.bf16.msra.mxu0 0
      %380 = vmatprep.subr.bf16.mxu0 0
      %381 = vmatpush1.bf16.msra.mxu0 0
      %382 = vmatprep.subr.bf16.mxu0 0
      %383 = vmatpush1.bf16.msra.mxu0 0
      %384 = vmatprep.subr.bf16.mxu0 0
      %385 = vmatpush1.bf16.msra.mxu0 0
      %386 = vmatprep.subr.bf16.mxu0 0
      %387 = vmatpush1.bf16.msra.mxu0 0
      %388 = vmatprep.subr.bf16.mxu0 0
      %389 = vmatpush1.bf16.msra.mxu0 0
      %390 = vmatprep.subr.bf16.mxu0 0
      %391 = vmatpush1.bf16.msra.mxu0 0
      %392 = vmatprep.subr.bf16.mxu0 0
      %393 = vmatpush1.bf16.msra.mxu0 0
      %394 = vmatprep.mubr.bf16.mxu0 0
      %395 = vmatmul.mubr.bf16.gmra.mrb[0].mxu0 %v306
      %v396 = vpop.f32.mrb[0].mxu0
      %v397 = vadd.f32 0.0, %v396
      %v398 = vpop.f32.mrb[0].mxu0
      %v399 = vpop.f32.mrb[0].mxu0
      %v400 = vpop.f32.mrb[0].mxu0
      %401 = vdwg.mxu0
      %v402 = vadd.f32 %v349, %v397
      %v403 = vunpack.c.l.bf16 %v287
      %v408 = vunpack.c.l.b16 %v272
      %v409 = vunpack.c.l.b16 %v273
      %v410 = vunpack.c.l.b16 %v274
      %v411 = vunpack.c.l.b16 %v275
      %v412 = vpack.c.b16 %v409, %v408
      %v413 = vpack.c.b16 %v411, %v410
      %416 = vmatprep.subr.bf16.mxu0 0
      %417 = vmatpush1.bf16.msra.mxu0 %v412
      %418 = vmatprep.subr.bf16.mxu0 0
      %419 = vmatpush1.bf16.msra.mxu0 %v413
      %420 = vmatprep.subr.bf16.mxu0 0
      %421 = vmatpush1.bf16.msra.mxu0 0
      %422 = vmatprep.subr.bf16.mxu0 0
      %423 = vmatpush1.bf16.msra.mxu0 0
      %424 = vmatprep.subr.bf16.mxu0 0
      %425 = vmatpush1.bf16.msra.mxu0 0
      %426 = vmatprep.subr.bf16.mxu0 0
      %427 = vmatpush1.bf16.msra.mxu0 0
      %428 = vmatprep.subr.bf16.mxu0 0
      %429 = vmatpush1.bf16.msra.mxu0 0
      %430 = vmatprep.subr.bf16.mxu0 0
      %431 = vmatpush1.bf16.msra.mxu0 0
      %432 = vmatprep.subr.bf16.mxu0 0
      %433 = vmatpush1.bf16.msra.mxu0 0
      %434 = vmatprep.subr.bf16.mxu0 0
      %435 = vmatpush1.bf16.msra.mxu0 0
      %436 = vmatprep.subr.bf16.mxu0 0
      %437 = vmatpush1.bf16.msra.mxu0 0
      %438 = vmatprep.subr.bf16.mxu0 0
      %439 = vmatpush1.bf16.msra.mxu0 0
      %440 = vmatprep.subr.bf16.mxu0 0
      %441 = vmatpush1.bf16.msra.mxu0 0
      %442 = vmatprep.subr.bf16.mxu0 0
      %443 = vmatpush1.bf16.msra.mxu0 0
      %444 = vmatprep.subr.bf16.mxu0 0
      %445 = vmatpush1.bf16.msra.mxu0 0
      %446 = vmatprep.subr.bf16.mxu0 0
      %447 = vmatpush1.bf16.msra.mxu0 0
      %448 = vmatprep.mubr.bf16.mxu0 0
      %449 = vmatmul.mubr.bf16.gmra.mrb[0].mxu0 %v306
      %v450 = vpop.f32.mrb[0].mxu0
      %v451 = vadd.f32 0.0, %v450
      %v452 = vpop.f32.mrb[0].mxu0
      %v453 = vpop.f32.mrb[0].mxu0
      %v454 = vpop.f32.mrb[0].mxu0
      %455 = vdwg.mxu0
      %v456 = vadd.f32 %v403, %v451
      %v457 = vunpack.c.l.bf16 %v288
      %v462 = vunpack.c.l.b16 %v277
      %v463 = vunpack.c.l.b16 %v278
      %v464 = vunpack.c.l.b16 %v279
      %v465 = vunpack.c.l.b16 %v280
      %v466 = vpack.c.b16 %v463, %v462
      %v467 = vpack.c.b16 %v465, %v464
      %470 = vmatprep.subr.bf16.mxu0 0
      %471 = vmatpush1.bf16.msra.mxu0 %v466
      %472 = vmatprep.subr.bf16.mxu0 0
      %473 = vmatpush1.bf16.msra.mxu0 %v467
      %474 = vmatprep.subr.bf16.mxu0 0
      %475 = vmatpush1.bf16.msra.mxu0 0
      %476 = vmatprep.subr.bf16.mxu0 0
      %477 = vmatpush1.bf16.msra.mxu0 0
      %478 = vmatprep.subr.bf16.mxu0 0
      %479 = vmatpush1.bf16.msra.mxu0 0
      %480 = vmatprep.subr.bf16.mxu0 0
      %481 = vmatpush1.bf16.msra.mxu0 0
      %482 = vmatprep.subr.bf16.mxu0 0
      %483 = vmatpush1.bf16.msra.mxu0 0
      %484 = vmatprep.subr.bf16.mxu0 0
      %485 = vmatpush1.bf16.msra.mxu0 0
      %486 = vmatprep.subr.bf16.mxu0 0
      %487 = vmatpush1.bf16.msra.mxu0 0
      %488 = vmatprep.subr.bf16.mxu0 0
      %489 = vmatpush1.bf16.msra.mxu0 0
      %490 = vmatprep.subr.bf16.mxu0 0
      %491 = vmatpush1.bf16.msra.mxu0 0
      %492 = vmatprep.subr.bf16.mxu0 0
      %493 = vmatpush1.bf16.msra.mxu0 0
      %494 = vmatprep.subr.bf16.mxu0 0
      %495 = vmatpush1.bf16.msra.mxu0 0
      %496 = vmatprep.subr.bf16.mxu0 0
      %497 = vmatpush1.bf16.msra.mxu0 0
      %498 = vmatprep.subr.bf16.mxu0 0
      %499 = vmatpush1.bf16.msra.mxu0 0
      %500 = vmatprep.subr.bf16.mxu0 0
      %501 = vmatpush1.bf16.msra.mxu0 0
      %502 = vmatprep.mubr.bf16.mxu0 0
      %503 = vmatmul.mubr.bf16.gmra.mrb[0].mxu0 %v306
      %v504 = vpop.f32.mrb[0].mxu0
      %v505 = vadd.f32 0.0, %v504
      %v506 = vpop.f32.mrb[0].mxu0
      %v507 = vpop.f32.mrb[0].mxu0
      %v508 = vpop.f32.mrb[0].mxu0
      %509 = vdwg.mxu0
      %v510 = vadd.f32 %v457, %v505
      %v511 = vxor.u32 %v348, 2147483648
      %v512 = vmul.f32 %v511, 1.442695
      %v513 = vpow.pop %v512
      %v514 = vadd.f32 %v513, 1.0
      %v515 = vrcp.pop %v514
      %v516 = vmul.f32 1.0, %v515
      %v517 = vxor.u32 %v402, 2147483648
      %v518 = vmul.f32 %v517, 1.442695
      %v519 = vpow.pop %v518
      %v520 = vadd.f32 %v519, 1.0
      %v521 = vrcp.pop %v520
      %v522 = vmul.f32 1.0, %v521
      %v523 = vtanh.pop %v456
      %v524 = vxor.u32 %v510, 2147483648
      %v525 = vmul.f32 %v524, 1.442695
      %v526 = vpow.pop %v525
      %v527 = vadd.f32 %v526, 1.0
      %v528 = vrcp.pop %v527
      %v529 = vmul.f32 1.0, %v528
      %v530 = vld [vmem:[#allocation3] sm:$0xff]
      %v531 = vmul.f32 %v522, %v530
      %v532 = vmul.f32 %v516, %v523
      %v533 = vadd.f32 %v531, %v532
      %v534 = vtanh.pop %v533
      %v535 = vmul.f32 %v529, %v534
      %536 = vst.msk [vmem:[#allocation3] sm:$0xff] %vm304, %v533
      %537 = vst.msk [vmem:[#allocation2] sm:$0xff] %vm304, %v535
      %v538 = vpack.c.bf16 %v535, %v535
      %s539 = smul.addr %s281, 4
      %s540 = scalar_lea.vmem %s248, %s539
      %vm541 = vcmask 257024
      %542 = vst.msk [vmem:[%s540] sm:$0xf] %vm541, %v538
      %s543 = smul.u32 %s17, 5
      %s544 = sadd.s32 %s543, 1
      %s545 = smul.u32 %s544, 4
      %s546 = smul.addr %s545, 4
      %s547 = scalar_lea.vmem %s225, %s546
      %v548 = vld [vmem:[%s547] sm:$0xf]
      %v549 = vld [vmem:[%s547 + $0x4] sm:$0xf]
      %v550 = vld [vmem:[%s547 + $0x8] sm:$0xf]
      %v551 = vld [vmem:[%s547 + $0xc] sm:$0xf]
      %v552 = vld [vmem:[#allocation2] sm:$0xff]
      %v553 = vpack.c.bf16 %v552, %v552
      %v554 = vunpack.c.l.bf16 %v548
      %v556 = vsel %vm304, %v553, 0
      %558 = vmatprep.subr.bf16.mxu0 0
      %559 = vmatpush1.bf16.msra.mxu0 %v300
      %560 = vmatprep.subr.bf16.mxu0 0
      %561 = vmatpush1.bf16.msra.mxu0 %v301
      %562 = vmatprep.subr.bf16.mxu0 0
      %563 = vmatpush1.bf16.msra.mxu0 0
      %564 = vmatprep.subr.bf16.mxu0 0
      %565 = vmatpush1.bf16.msra.mxu0 0
      %566 = vmatprep.subr.bf16.mxu0 0
      %567 = vmatpush1.bf16.msra.mxu0 0
      %568 = vmatprep.subr.bf16.mxu0 0
      %569 = vmatpush1.bf16.msra.mxu0 0
      %570 = vmatprep.subr.bf16.mxu0 0
      %571 = vmatpush1.bf16.msra.mxu0 0
      %572 = vmatprep.subr.bf16.mxu0 0
      %573 = vmatpush1.bf16.msra.mxu0 0
      %574 = vmatprep.subr.bf16.mxu0 0
      %575 = vmatpush1.bf16.msra.mxu0 0
      %576 = vmatprep.subr.bf16.mxu0 0
      %577 = vmatpush1.bf16.msra.mxu0 0
      %578 = vmatprep.subr.bf16.mxu0 0
      %579 = vmatpush1.bf16.msra.mxu0 0
      %580 = vmatprep.subr.bf16.mxu0 0
      %581 = vmatpush1.bf16.msra.mxu0 0
      %582 = vmatprep.subr.bf16.mxu0 0
      %583 = vmatpush1.bf16.msra.mxu0 0
      %584 = vmatprep.subr.bf16.mxu0 0
      %585 = vmatpush1.bf16.msra.mxu0 0
      %586 = vmatprep.subr.bf16.mxu0 0
      %587 = vmatpush1.bf16.msra.mxu0 0
      %588 = vmatprep.subr.bf16.mxu0 0
      %589 = vmatpush1.bf16.msra.mxu0 0
      %590 = vmatprep.mubr.bf16.mxu0 0
      %591 = vmatmul.mubr.bf16.gmra.mrb[0].mxu0 %v556
      %v592 = vpop.f32.mrb[0].mxu0
      %v593 = vadd.f32 0.0, %v592
      %v594 = vpop.f32.mrb[0].mxu0
      %v595 = vpop.f32.mrb[0].mxu0
      %v596 = vpop.f32.mrb[0].mxu0
      %597 = vdwg.mxu0
      %v598 = vadd.f32 %v554, %v593
      %v599 = vunpack.c.l.bf16 %v549
      %600 = vmatprep.subr.bf16.mxu0 0
      %601 = vmatpush1.bf16.msra.mxu0 %v358
      %602 = vmatprep.subr.bf16.mxu0 0
      %603 = vmatpush1.bf16.msra.mxu0 %v359
      %604 = vmatprep.subr.bf16.mxu0 0
      %605 = vmatpush1.bf16.msra.mxu0 0
      %606 = vmatprep.subr.bf16.mxu0 0
      %607 = vmatpush1.bf16.msra.mxu0 0
      %608 = vmatprep.subr.bf16.mxu0 0
      %609 = vmatpush1.bf16.msra.mxu0 0
      %610 = vmatprep.subr.bf16.mxu0 0
      %611 = vmatpush1.bf16.msra.mxu0 0
      %612 = vmatprep.subr.bf16.mxu0 0
      %613 = vmatpush1.bf16.msra.mxu0 0
      %614 = vmatprep.subr.bf16.mxu0 0
      %615 = vmatpush1.bf16.msra.mxu0 0
      %616 = vmatprep.subr.bf16.mxu0 0
      %617 = vmatpush1.bf16.msra.mxu0 0
      %618 = vmatprep.subr.bf16.mxu0 0
      %619 = vmatpush1.bf16.msra.mxu0 0
      %620 = vmatprep.subr.bf16.mxu0 0
      %621 = vmatpush1.bf16.msra.mxu0 0
      %622 = vmatprep.subr.bf16.mxu0 0
      %623 = vmatpush1.bf16.msra.mxu0 0
      %624 = vmatprep.subr.bf16.mxu0 0
      %625 = vmatpush1.bf16.msra.mxu0 0
      %626 = vmatprep.subr.bf16.mxu0 0
      %627 = vmatpush1.bf16.msra.mxu0 0
      %628 = vmatprep.subr.bf16.mxu0 0
      %629 = vmatpush1.bf16.msra.mxu0 0
      %630 = vmatprep.subr.bf16.mxu0 0
      %631 = vmatpush1.bf16.msra.mxu0 0
      %632 = vmatprep.mubr.bf16.mxu0 0
      %633 = vmatmul.mubr.bf16.gmra.mrb[0].mxu0 %v556
      %v634 = vpop.f32.mrb[0].mxu0
      %v635 = vadd.f32 0.0, %v634
      %v636 = vpop.f32.mrb[0].mxu0
      %v637 = vpop.f32.mrb[0].mxu0
      %v638 = vpop.f32.mrb[0].mxu0
      %639 = vdwg.mxu0
      %v640 = vadd.f32 %v599, %v635
      %v641 = vunpack.c.l.bf16 %v550
      %642 = vmatprep.subr.bf16.mxu0 0
      %643 = vmatpush1.bf16.msra.mxu0 %v412
      %644 = vmatprep.subr.bf16.mxu0 0
      %645 = vmatpush1.bf16.msra.mxu0 %v413
      %646 = vmatprep.subr.bf16.mxu0 0
      %647 = vmatpush1.bf16.msra.mxu0 0
      %648 = vmatprep.subr.bf16.mxu0 0
      %649 = vmatpush1.bf16.msra.mxu0 0
      %650 = vmatprep.subr.bf16.mxu0 0
      %651 = vmatpush1.bf16.msra.mxu0 0
      %652 = vmatprep.subr.bf16.mxu0 0
      %653 = vmatpush1.bf16.msra.mxu0 0
      %654 = vmatprep.subr.bf16.mxu0 0
      %655 = vmatpush1.bf16.msra.mxu0 0
      %656 = vmatprep.subr.bf16.mxu0 0
      %657 = vmatpush1.bf16.msra.mxu0 0
      %658 = vmatprep.subr.bf16.mxu0 0
      %659 = vmatpush1.bf16.msra.mxu0 0
      %660 = vmatprep.subr.bf16.mxu0 0
      %661 = vmatpush1.bf16.msra.mxu0 0
      %662 = vmatprep.subr.bf16.mxu0 0
      %663 = vmatpush1.bf16.msra.mxu0 0
      %664 = vmatprep.subr.bf16.mxu0 0
      %665 = vmatpush1.bf16.msra.mxu0 0
      %666 = vmatprep.subr.bf16.mxu0 0
      %667 = vmatpush1.bf16.msra.mxu0 0
      %668 = vmatprep.subr.bf16.mxu0 0
      %669 = vmatpush1.bf16.msra.mxu0 0
      %670 = vmatprep.subr.bf16.mxu0 0
      %671 = vmatpush1.bf16.msra.mxu0 0
      %672 = vmatprep.subr.bf16.mxu0 0
      %673 = vmatpush1.bf16.msra.mxu0 0
      %674 = vmatprep.mubr.bf16.mxu0 0
      %675 = vmatmul.mubr.bf16.gmra.mrb[0].mxu0 %v556
      %v676 = vpop.f32.mrb[0].mxu0
      %v677 = vadd.f32 0.0, %v676
      %v678 = vpop.f32.mrb[0].mxu0
      %v679 = vpop.f32.mrb[0].mxu0
      %v680 = vpop.f32.mrb[0].mxu0
      %681 = vdwg.mxu0
      %v682 = vadd.f32 %v641, %v677
      %v683 = vunpack.c.l.bf16 %v551
      %684 = vmatprep.subr.bf16.mxu0 0
      %685 = vmatpush1.bf16.msra.mxu0 %v466
      %686 = vmatprep.subr.bf16.mxu0 0
      %687 = vmatpush1.bf16.msra.mxu0 %v467
      %688 = vmatprep.subr.bf16.mxu0 0
      %689 = vmatpush1.bf16.msra.mxu0 0
      %690 = vmatprep.subr.bf16.mxu0 0
      %691 = vmatpush1.bf16.msra.mxu0 0
      %692 = vmatprep.subr.bf16.mxu0 0
      %693 = vmatpush1.bf16.msra.mxu0 0
      %694 = vmatprep.subr.bf16.mxu0 0
      %695 = vmatpush1.bf16.msra.mxu0 0
      %696 = vmatprep.subr.bf16.mxu0 0
      %697 = vmatpush1.bf16.msra.mxu0 0
      %698 = vmatprep.subr.bf16.mxu0 0
      %699 = vmatpush1.bf16.msra.mxu0 0
      %700 = vmatprep.subr.bf16.mxu0 0
      %701 = vmatpush1.bf16.msra.mxu0 0
      %702 = vmatprep.subr.bf16.mxu0 0
      %703 = vmatpush1.bf16.msra.mxu0 0
      %704 = vmatprep.subr.bf16.mxu0 0
      %705 = vmatpush1.bf16.msra.mxu0 0
      %706 = vmatprep.subr.bf16.mxu0 0
      %707 = vmatpush1.bf16.msra.mxu0 0
      %708 = vmatprep.subr.bf16.mxu0 0
      %709 = vmatpush1.bf16.msra.mxu0 0
      %710 = vmatprep.subr.bf16.mxu0 0
      %711 = vmatpush1.bf16.msra.mxu0 0
      %712 = vmatprep.subr.bf16.mxu0 0
      %713 = vmatpush1.bf16.msra.mxu0 0
      %714 = vmatprep.subr.bf16.mxu0 0
      %715 = vmatpush1.bf16.msra.mxu0 0
      %716 = vmatprep.mubr.bf16.mxu0 0
      %717 = vmatmul.mubr.bf16.gmra.mrb[0].mxu0 %v556
      %v718 = vpop.f32.mrb[0].mxu0
      %v719 = vadd.f32 0.0, %v718
      %v720 = vpop.f32.mrb[0].mxu0
      %v721 = vpop.f32.mrb[0].mxu0
      %v722 = vpop.f32.mrb[0].mxu0
      %723 = vdwg.mxu0
      %v724 = vadd.f32 %v683, %v719
      %v725 = vxor.u32 %v598, 2147483648
      %v726 = vmul.f32 %v725, 1.442695
      %v727 = vpow.pop %v726
      %v728 = vadd.f32 %v727, 1.0
      %v729 = vrcp.pop %v728
      %v730 = vmul.f32 1.0, %v729
      %v731 = vxor.u32 %v640, 2147483648
      %v732 = vmul.f32 %v731, 1.442695
      %v733 = vpow.pop %v732
      %v734 = vadd.f32 %v733, 1.0
      %v735 = vrcp.pop %v734
      %v736 = vmul.f32 1.0, %v735
      %v737 = vtanh.pop %v682
      %v738 = vxor.u32 %v724, 2147483648
      %v739 = vmul.f32 %v738, 1.442695
      %v740 = vpow.pop %v739
      %v741 = vadd.f32 %v740, 1.0
      %v742 = vrcp.pop %v741
      %v743 = vmul.f32 1.0, %v742
      %v744 = vld [vmem:[#allocation3] sm:$0xff]
      %v745 = vmul.f32 %v736, %v744
      %v746 = vmul.f32 %v730, %v737
      %v747 = vadd.f32 %v745, %v746
      %v748 = vtanh.pop %v747
      %v749 = vmul.f32 %v743, %v748
      %750 = vst.msk [vmem:[#allocation3] sm:$0xff] %vm304, %v747
      %751 = vst.msk [vmem:[#allocation2] sm:$0xff] %vm304, %v749
      %v752 = vpack.c.bf16 %v749, %v749
      %s753 = smul.addr %s544, 4
      %s754 = scalar_lea.vmem %s248, %s753
      %755 = vst.msk [vmem:[%s754] sm:$0xf] %vm541, %v752
      %s756 = smul.u32 %s17, 3
      %s757 = sadd.s32 %s756, 2
      %s758 = smul.u32 %s757, 4
      %s759 = smul.addr %s758, 4
      %s760 = scalar_lea.vmem %s225, %s759
      %v761 = vld [vmem:[%s760] sm:$0xf]
      %v762 = vld [vmem:[%s760 + $0x4] sm:$0xf]
      %v763 = vld [vmem:[%s760 + $0x8] sm:$0xf]
      %v764 = vld [vmem:[%s760 + $0xc] sm:$0xf]
      %v765 = vld [vmem:[#allocation2] sm:$0xff]
      %v766 = vpack.c.bf16 %v765, %v765
      %v767 = vunpack.c.l.bf16 %v761
      %v769 = vsel %vm304, %v766, 0
      %771 = vmatprep.subr.bf16.mxu0 0
      %772 = vmatpush1.bf16.msra.mxu0 %v300
      %773 = vmatprep.subr.bf16.mxu0 0
      %774 = vmatpush1.bf16.msra.mxu0 %v301
      %775 = vmatprep.subr.bf16.mxu0 0
      %776 = vmatpush1.bf16.msra.mxu0 0
      %777 = vmatprep.subr.bf16.mxu0 0
      %778 = vmatpush1.bf16.msra.mxu0 0
      %779 = vmatprep.subr.bf16.mxu0 0
      %780 = vmatpush1.bf16.msra.mxu0 0
      %781 = vmatprep.subr.bf16.mxu0 0
      %782 = vmatpush1.bf16.msra.mxu0 0
      %783 = vmatprep.subr.bf16.mxu0 0
      %784 = vmatpush1.bf16.msra.mxu0 0
      %785 = vmatprep.subr.bf16.mxu0 0
      %786 = vmatpush1.bf16.msra.mxu0 0
      %787 = vmatprep.subr.bf16.mxu0 0
      %788 = vmatpush1.bf16.msra.mxu0 0
      %789 = vmatprep.subr.bf16.mxu0 0
      %790 = vmatpush1.bf16.msra.mxu0 0
      %791 = vmatprep.subr.bf16.mxu0 0
      %792 = vmatpush1.bf16.msra.mxu0 0
      %793 = vmatprep.subr.bf16.mxu0 0
      %794 = vmatpush1.bf16.msra.mxu0 0
      %795 = vmatprep.subr.bf16.mxu0 0
      %796 = vmatpush1.bf16.msra.mxu0 0
      %797 = vmatprep.subr.bf16.mxu0 0
      %798 = vmatpush1.bf16.msra.mxu0 0
      %799 = vmatprep.subr.bf16.mxu0 0
      %800 = vmatpush1.bf16.msra.mxu0 0
      %801 = vmatprep.subr.bf16.mxu0 0
      %802 = vmatpush1.bf16.msra.mxu0 0
      %803 = vmatprep.mubr.bf16.mxu0 0
      %804 = vmatmul.mubr.bf16.gmra.mrb[0].mxu0 %v769
      %v805 = vpop.f32.mrb[0].mxu0
      %v806 = vadd.f32 0.0, %v805
      %v807 = vpop.f32.mrb[0].mxu0
      %v808 = vpop.f32.mrb[0].mxu0
      %v809 = vpop.f32.mrb[0].mxu0
      %810 = vdwg.mxu0
      %v811 = vadd.f32 %v767, %v806
      %v812 = vunpack.c.l.bf16 %v762
      %813 = vmatprep.subr.bf16.mxu0 0
      %814 = vmatpush1.bf16.msra.mxu0 %v358
      %815 = vmatprep.subr.bf16.mxu0 0
      %816 = vmatpush1.bf16.msra.mxu0 %v359
      %817 = vmatprep.subr.bf16.mxu0 0
      %818 = vmatpush1.bf16.msra.mxu0 0
      %819 = vmatprep.subr.bf16.mxu0 0
      %820 = vmatpush1.bf16.msra.mxu0 0
      %821 = vmatprep.subr.bf16.mxu0 0
      %822 = vmatpush1.bf16.msra.mxu0 0
      %823 = vmatprep.subr.bf16.mxu0 0
      %824 = vmatpush1.bf16.msra.mxu0 0
      %825 = vmatprep.subr.bf16.mxu0 0
      %826 = vmatpush1.bf16.msra.mxu0 0
      %827 = vmatprep.subr.bf16.mxu0 0
      %828 = vmatpush1.bf16.msra.mxu0 0
      %829 = vmatprep.subr.bf16.mxu0 0
      %830 = vmatpush1.bf16.msra.mxu0 0
      %831 = vmatprep.subr.bf16.mxu0 0
      %832 = vmatpush1.bf16.msra.mxu0 0
      %833 = vmatprep.subr.bf16.mxu0 0
      %834 = vmatpush1.bf16.msra.mxu0 0
      %835 = vmatprep.subr.bf16.mxu0 0
      %836 = vmatpush1.bf16.msra.mxu0 0
      %837 = vmatprep.subr.bf16.mxu0 0
      %838 = vmatpush1.bf16.msra.mxu0 0
      %839 = vmatprep.subr.bf16.mxu0 0
      %840 = vmatpush1.bf16.msra.mxu0 0
      %841 = vmatprep.subr.bf16.mxu0 0
      %842 = vmatpush1.bf16.msra.mxu0 0
      %843 = vmatprep.subr.bf16.mxu0 0
      %844 = vmatpush1.bf16.msra.mxu0 0
      %845 = vmatprep.mubr.bf16.mxu0 0
      %846 = vmatmul.mubr.bf16.gmra.mrb[0].mxu0 %v769
      %v847 = vpop.f32.mrb[0].mxu0
      %v848 = vadd.f32 0.0, %v847
      %v849 = vpop.f32.mrb[0].mxu0
      %v850 = vpop.f32.mrb[0].mxu0
      %v851 = vpop.f32.mrb[0].mxu0
      %852 = vdwg.mxu0
      %v853 = vadd.f32 %v812, %v848
      %v854 = vunpack.c.l.bf16 %v763
      %855 = vmatprep.subr.bf16.mxu0 0
      %856 = vmatpush1.bf16.msra.mxu0 %v412
      %857 = vmatprep.subr.bf16.mxu0 0
      %858 = vmatpush1.bf16.msra.mxu0 %v413
      %859 = vmatprep.subr.bf16.mxu0 0
      %860 = vmatpush1.bf16.msra.mxu0 0
      %861 = vmatprep.subr.bf16.mxu0 0
      %862 = vmatpush1.bf16.msra.mxu0 0
      %863 = vmatprep.subr.bf16.mxu0 0
      %864 = vmatpush1.bf16.msra.mxu0 0
      %865 = vmatprep.subr.bf16.mxu0 0
      %866 = vmatpush1.bf16.msra.mxu0 0
      %867 = vmatprep.subr.bf16.mxu0 0
      %868 = vmatpush1.bf16.msra.mxu0 0
      %869 = vmatprep.subr.bf16.mxu0 0
      %870 = vmatpush1.bf16.msra.mxu0 0
      %871 = vmatprep.subr.bf16.mxu0 0
      %872 = vmatpush1.bf16.msra.mxu0 0
      %873 = vmatprep.subr.bf16.mxu0 0
      %874 = vmatpush1.bf16.msra.mxu0 0
      %875 = vmatprep.subr.bf16.mxu0 0
      %876 = vmatpush1.bf16.msra.mxu0 0
      %877 = vmatprep.subr.bf16.mxu0 0
      %878 = vmatpush1.bf16.msra.mxu0 0
      %879 = vmatprep.subr.bf16.mxu0 0
      %880 = vmatpush1.bf16.msra.mxu0 0
      %881 = vmatprep.subr.bf16.mxu0 0
      %882 = vmatpush1.bf16.msra.mxu0 0
      %883 = vmatprep.subr.bf16.mxu0 0
      %884 = vmatpush1.bf16.msra.mxu0 0
      %885 = vmatprep.subr.bf16.mxu0 0
      %886 = vmatpush1.bf16.msra.mxu0 0
      %887 = vmatprep.mubr.bf16.mxu0 0
      %888 = vmatmul.mubr.bf16.gmra.mrb[0].mxu0 %v769
      %v889 = vpop.f32.mrb[0].mxu0
      %v890 = vadd.f32 0.0, %v889
      %v891 = vpop.f32.mrb[0].mxu0
      %v892 = vpop.f32.mrb[0].mxu0
      %v893 = vpop.f32.mrb[0].mxu0
      %894 = vdwg.mxu0
      %v895 = vadd.f32 %v854, %v890
      %v896 = vunpack.c.l.bf16 %v764
      %897 = vmatprep.subr.bf16.mxu0 0
      %898 = vmatpush1.bf16.msra.mxu0 %v466
      %899 = vmatprep.subr.bf16.mxu0 0
      %900 = vmatpush1.bf16.msra.mxu0 %v467
      %901 = vmatprep.subr.bf16.mxu0 0
      %902 = vmatpush1.bf16.msra.mxu0 0
      %903 = vmatprep.subr.bf16.mxu0 0
      %904 = vmatpush1.bf16.msra.mxu0 0
      %905 = vmatprep.subr.bf16.mxu0 0
      %906 = vmatpush1.bf16.msra.mxu0 0
      %907 = vmatprep.subr.bf16.mxu0 0
      %908 = vmatpush1.bf16.msra.mxu0 0
      %909 = vmatprep.subr.bf16.mxu0 0
      %910 = vmatpush1.bf16.msra.mxu0 0
      %911 = vmatprep.subr.bf16.mxu0 0
      %912 = vmatpush1.bf16.msra.mxu0 0
      %913 = vmatprep.subr.bf16.mxu0 0
      %914 = vmatpush1.bf16.msra.mxu0 0
      %915 = vmatprep.subr.bf16.mxu0 0
      %916 = vmatpush1.bf16.msra.mxu0 0
      %917 = vmatprep.subr.bf16.mxu0 0
      %918 = vmatpush1.bf16.msra.mxu0 0
      %919 = vmatprep.subr.bf16.mxu0 0
      %920 = vmatpush1.bf16.msra.mxu0 0
      %921 = vmatprep.subr.bf16.mxu0 0
      %922 = vmatpush1.bf16.msra.mxu0 0
      %923 = vmatprep.subr.bf16.mxu0 0
      %924 = vmatpush1.bf16.msra.mxu0 0
      %925 = vmatprep.subr.bf16.mxu0 0
      %926 = vmatpush1.bf16.msra.mxu0 0
      %927 = vmatprep.subr.bf16.mxu0 0
      %928 = vmatpush1.bf16.msra.mxu0 0
      %929 = vmatprep.mubr.bf16.mxu0 0
      %930 = vmatmul.mubr.bf16.gmra.mrb[0].mxu0 %v769
      %v931 = vpop.f32.mrb[0].mxu0
      %v932 = vadd.f32 0.0, %v931
      %v933 = vpop.f32.mrb[0].mxu0
      %v934 = vpop.f32.mrb[0].mxu0
      %v935 = vpop.f32.mrb[0].mxu0
      %936 = vdwg.mxu0
      %v937 = vadd.f32 %v896, %v932
      %v938 = vxor.u32 %v811, 2147483648
      %v939 = vmul.f32 %v938, 1.442695
      %v940 = vpow.pop %v939
      %v941 = vadd.f32 %v940, 1.0
      %v942 = vrcp.pop %v941
      %v943 = vmul.f32 1.0, %v942
      %v944 = vxor.u32 %v853, 2147483648
      %v945 = vmul.f32 %v944, 1.442695
      %v946 = vpow.pop %v945
      %v947 = vadd.f32 %v946, 1.0
      %v948 = vrcp.pop %v947
      %v949 = vmul.f32 1.0, %v948
      %v950 = vtanh.pop %v895
      %v951 = vxor.u32 %v937, 2147483648
      %v952 = vmul.f32 %v951, 1.442695
      %v953 = vpow.pop %v952
      %v954 = vadd.f32 %v953, 1.0
      %v955 = vrcp.pop %v954
      %v956 = vmul.f32 1.0, %v955
      %v957 = vld [vmem:[#allocation3] sm:$0xff]
      %v958 = vmul.f32 %v949, %v957
      %v959 = vmul.f32 %v943, %v950
      %v960 = vadd.f32 %v958, %v959
      %v961 = vtanh.pop %v960
      %v962 = vmul.f32 %v956, %v961
      %963 = vst.msk [vmem:[#allocation3] sm:$0xff] %vm304, %v960
      %964 = vst.msk [vmem:[#allocation2] sm:$0xff] %vm304, %v962
      %v965 = vpack.c.bf16 %v962, %v962
      %s966 = smul.addr %s757, 4
      %s967 = scalar_lea.vmem %s248, %s966
      %968 = vst.msk [vmem:[%s967] sm:$0xf] %vm541, %v965
      %s969 = sadd.s32 %s17, 3
      %s970 = smul.u32 %s969, 4
      %s971 = smul.addr %s970, 4
      %s972 = scalar_lea.vmem %s225, %s971
      %v973 = vld [vmem:[%s972] sm:$0xf]
      %v974 = vld [vmem:[%s972 + $0x4] sm:$0xf]
      %v975 = vld [vmem:[%s972 + $0x8] sm:$0xf]
      %v976 = vld [vmem:[%s972 + $0xc] sm:$0xf]
      %v977 = vld [vmem:[#allocation2] sm:$0xff]
      %v978 = vpack.c.bf16 %v977, %v977
      %v979 = vunpack.c.l.bf16 %v973
      %v981 = vsel %vm304, %v978, 0
      %983 = vmatprep.subr.bf16.mxu0 0
      %984 = vmatpush1.bf16.msra.mxu0 %v300
      %985 = vmatprep.subr.bf16.mxu0 0
      %986 = vmatpush1.bf16.msra.mxu0 %v301
      %987 = vmatprep.subr.bf16.mxu0 0
      %988 = vmatpush1.bf16.msra.mxu0 0
      %989 = vmatprep.subr.bf16.mxu0 0
      %990 = vmatpush1.bf16.msra.mxu0 0
      %991 = vmatprep.subr.bf16.mxu0 0
      %992 = vmatpush1.bf16.msra.mxu0 0
      %993 = vmatprep.subr.bf16.mxu0 0
      %994 = vmatpush1.bf16.msra.mxu0 0
      %995 = vmatprep.subr.bf16.mxu0 0
      %996 = vmatpush1.bf16.msra.mxu0 0
      %997 = vmatprep.subr.bf16.mxu0 0
      %998 = vmatpush1.bf16.msra.mxu0 0
      %999 = vmatprep.subr.bf16.mxu0 0
      %1000 = vmatpush1.bf16.msra.mxu0 0
      %1001 = vmatprep.subr.bf16.mxu0 0
      %1002 = vmatpush1.bf16.msra.mxu0 0
      %1003 = vmatprep.subr.bf16.mxu0 0
      %1004 = vmatpush1.bf16.msra.mxu0 0
      %1005 = vmatprep.subr.bf16.mxu0 0
      %1006 = vmatpush1.bf16.msra.mxu0 0
      %1007 = vmatprep.subr.bf16.mxu0 0
      %1008 = vmatpush1.bf16.msra.mxu0 0
      %1009 = vmatprep.subr.bf16.mxu0 0
      %1010 = vmatpush1.bf16.msra.mxu0 0
      %1011 = vmatprep.subr.bf16.mxu0 0
      %1012 = vmatpush1.bf16.msra.mxu0 0
      %1013 = vmatprep.subr.bf16.mxu0 0
      %1014 = vmatpush1.bf16.msra.mxu0 0
      %1015 = vmatprep.mubr.bf16.mxu0 0
      %1016 = vmatmul.mubr.bf16.gmra.mrb[0].mxu0 %v981
      %v1017 = vpop.f32.mrb[0].mxu0
      %v1018 = vadd.f32 0.0, %v1017
      %v1019 = vpop.f32.mrb[0].mxu0
      %v1020 = vpop.f32.mrb[0].mxu0
      %v1021 = vpop.f32.mrb[0].mxu0
      %1022 = vdwg.mxu0
      %v1023 = vadd.f32 %v979, %v1018
      %v1024 = vunpack.c.l.bf16 %v974
      %1025 = vmatprep.subr.bf16.mxu0 0
      %1026 = vmatpush1.bf16.msra.mxu0 %v358
      %1027 = vmatprep.subr.bf16.mxu0 0
      %1028 = vmatpush1.bf16.msra.mxu0 %v359
      %1029 = vmatprep.subr.bf16.mxu0 0
      %1030 = vmatpush1.bf16.msra.mxu0 0
      %1031 = vmatprep.subr.bf16.mxu0 0
      %1032 = vmatpush1.bf16.msra.mxu0 0
      %1033 = vmatprep.subr.bf16.mxu0 0
      %1034 = vmatpush1.bf16.msra.mxu0 0
      %1035 = vmatprep.subr.bf16.mxu0 0
      %1036 = vmatpush1.bf16.msra.mxu0 0
      %1037 = vmatprep.subr.bf16.mxu0 0
      %1038 = vmatpush1.bf16.msra.mxu0 0
      %1039 = vmatprep.subr.bf16.mxu0 0
      %1040 = vmatpush1.bf16.msra.mxu0 0
      %1041 = vmatprep.subr.bf16.mxu0 0
      %1042 = vmatpush1.bf16.msra.mxu0 0
      %1043 = vmatprep.subr.bf16.mxu0 0
      %1044 = vmatpush1.bf16.msra.mxu0 0
      %1045 = vmatprep.subr.bf16.mxu0 0
      %1046 = vmatpush1.bf16.msra.mxu0 0
      %1047 = vmatprep.subr.bf16.mxu0 0
      %1048 = vmatpush1.bf16.msra.mxu0 0
      %1049 = vmatprep.subr.bf16.mxu0 0
      %1050 = vmatpush1.bf16.msra.mxu0 0
      %1051 = vmatprep.subr.bf16.mxu0 0
      %1052 = vmatpush1.bf16.msra.mxu0 0
      %1053 = vmatprep.subr.bf16.mxu0 0
      %1054 = vmatpush1.bf16.msra.mxu0 0
      %1055 = vmatprep.subr.bf16.mxu0 0
      %1056 = vmatpush1.bf16.msra.mxu0 0
      %1057 = vmatprep.mubr.bf16.mxu0 0
      %1058 = vmatmul.mubr.bf16.gmra.mrb[0].mxu0 %v981
      %v1059 = vpop.f32.mrb[0].mxu0
      %v1060 = vadd.f32 0.0, %v1059
      %v1061 = vpop.f32.mrb[0].mxu0
      %v1062 = vpop.f32.mrb[0].mxu0
      %v1063 = vpop.f32.mrb[0].mxu0
      %1064 = vdwg.mxu0
      %v1065 = vadd.f32 %v1024, %v1060
      %v1066 = vunpack.c.l.bf16 %v975
      %1067 = vmatprep.subr.bf16.mxu0 0
      %1068 = vmatpush1.bf16.msra.mxu0 %v412
      %1069 = vmatprep.subr.bf16.mxu0 0
      %1070 = vmatpush1.bf16.msra.mxu0 %v413
      %1071 = vmatprep.subr.bf16.mxu0 0
      %1072 = vmatpush1.bf16.msra.mxu0 0
      %1073 = vmatprep.subr.bf16.mxu0 0
      %1074 = vmatpush1.bf16.msra.mxu0 0
      %1075 = vmatprep.subr.bf16.mxu0 0
      %1076 = vmatpush1.bf16.msra.mxu0 0
      %1077 = vmatprep.subr.bf16.mxu0 0
      %1078 = vmatpush1.bf16.msra.mxu0 0
      %1079 = vmatprep.subr.bf16.mxu0 0
      %1080 = vmatpush1.bf16.msra.mxu0 0
      %1081 = vmatprep.subr.bf16.mxu0 0
      %1082 = vmatpush1.bf16.msra.mxu0 0
      %1083 = vmatprep.subr.bf16.mxu0 0
      %1084 = vmatpush1.bf16.msra.mxu0 0
      %1085 = vmatprep.subr.bf16.mxu0 0
      %1086 = vmatpush1.bf16.msra.mxu0 0
      %1087 = vmatprep.subr.bf16.mxu0 0
      %1088 = vmatpush1.bf16.msra.mxu0 0
      %1089 = vmatprep.subr.bf16.mxu0 0
      %1090 = vmatpush1.bf16.msra.mxu0 0
      %1091 = vmatprep.subr.bf16.mxu0 0
      %1092 = vmatpush1.bf16.msra.mxu0 0
      %1093 = vmatprep.subr.bf16.mxu0 0
      %1094 = vmatpush1.bf16.msra.mxu0 0
      %1095 = vmatprep.subr.bf16.mxu0 0
      %1096 = vmatpush1.bf16.msra.mxu0 0
      %1097 = vmatprep.subr.bf16.mxu0 0
      %1098 = vmatpush1.bf16.msra.mxu0 0
      %1099 = vmatprep.mubr.bf16.mxu0 0
      %1100 = vmatmul.mubr.bf16.gmra.mrb[0].mxu0 %v981
      %v1101 = vpop.f32.mrb[0].mxu0
      %v1102 = vadd.f32 0.0, %v1101
      %v1103 = vpop.f32.mrb[0].mxu0
      %v1104 = vpop.f32.mrb[0].mxu0
      %v1105 = vpop.f32.mrb[0].mxu0
      %1106 = vdwg.mxu0
      %v1107 = vadd.f32 %v1066, %v1102
      %v1108 = vunpack.c.l.bf16 %v976
      %1109 = vmatprep.subr.bf16.mxu0 0
      %1110 = vmatpush1.bf16.msra.mxu0 %v466
      %1111 = vmatprep.subr.bf16.mxu0 0
      %1112 = vmatpush1.bf16.msra.mxu0 %v467
      %1113 = vmatprep.subr.bf16.mxu0 0
      %1114 = vmatpush1.bf16.msra.mxu0 0
      %1115 = vmatprep.subr.bf16.mxu0 0
      %1116 = vmatpush1.bf16.msra.mxu0 0
      %1117 = vmatprep.subr.bf16.mxu0 0
      %1118 = vmatpush1.bf16.msra.mxu0 0
      %1119 = vmatprep.subr.bf16.mxu0 0
      %1120 = vmatpush1.bf16.msra.mxu0 0
      %1121 = vmatprep.subr.bf16.mxu0 0
      %1122 = vmatpush1.bf16.msra.mxu0 0
      %1123 = vmatprep.subr.bf16.mxu0 0
      %1124 = vmatpush1.bf16.msra.mxu0 0
      %1125 = vmatprep.subr.bf16.mxu0 0
      %1126 = vmatpush1.bf16.msra.mxu0 0
      %1127 = vmatprep.subr.bf16.mxu0 0
      %1128 = vmatpush1.bf16.msra.mxu0 0
      %1129 = vmatprep.subr.bf16.mxu0 0
      %1130 = vmatpush1.bf16.msra.mxu0 0
      %1131 = vmatprep.subr.bf16.mxu0 0
      %1132 = vmatpush1.bf16.msra.mxu0 0
      %1133 = vmatprep.subr.bf16.mxu0 0
      %1134 = vmatpush1.bf16.msra.mxu0 0
      %1135 = vmatprep.subr.bf16.mxu0 0
      %1136 = vmatpush1.bf16.msra.mxu0 0
      %1137 = vmatprep.subr.bf16.mxu0 0
      %1138 = vmatpush1.bf16.msra.mxu0 0
      %1139 = vmatprep.subr.bf16.mxu0 0
      %1140 = vmatpush1.bf16.msra.mxu0 0
      %1141 = vmatprep.mubr.bf16.mxu0 0
      %1142 = vmatmul.mubr.bf16.gmra.mrb[0].mxu0 %v981
      %v1143 = vpop.f32.mrb[0].mxu0
      %v1144 = vadd.f32 0.0, %v1143
      %v1145 = vpop.f32.mrb[0].mxu0
      %v1146 = vpop.f32.mrb[0].mxu0
      %v1147 = vpop.f32.mrb[0].mxu0
      %1148 = vdwg.mxu0
      %v1149 = vadd.f32 %v1108, %v1144
      %v1150 = vxor.u32 %v1023, 2147483648
      %v1151 = vmul.f32 %v1150, 1.442695
      %v1152 = vpow.pop %v1151
      %v1153 = vadd.f32 %v1152, 1.0
      %v1154 = vrcp.pop %v1153
      %v1155 = vmul.f32 1.0, %v1154
      %v1156 = vxor.u32 %v1065, 2147483648
      %v1157 = vmul.f32 %v1156, 1.442695
      %v1158 = vpow.pop %v1157
      %v1159 = vadd.f32 %v1158, 1.0
      %v1160 = vrcp.pop %v1159
      %v1161 = vmul.f32 1.0, %v1160
      %v1162 = vtanh.pop %v1107
      %v1163 = vxor.u32 %v1149, 2147483648
      %v1164 = vmul.f32 %v1163, 1.442695
      %v1165 = vpow.pop %v1164
      %v1166 = vadd.f32 %v1165, 1.0
      %v1167 = vrcp.pop %v1166
      %v1168 = vmul.f32 1.0, %v1167
      %v1169 = vld [vmem:[#allocation3] sm:$0xff]
      %v1170 = vmul.f32 %v1161, %v1169
      %v1171 = vmul.f32 %v1155, %v1162
      %v1172 = vadd.f32 %v1170, %v1171
      %v1173 = vtanh.pop %v1172
      %v1174 = vmul.f32 %v1168, %v1173
      %1175 = vst.msk [vmem:[#allocation3] sm:$0xff] %vm304, %v1172
      %1176 = vst.msk [vmem:[#allocation2] sm:$0xff] %vm304, %v1174
      %v1177 = vpack.c.bf16 %v1174, %v1174
      %s1178 = smul.addr %s969, 4
      %s1179 = scalar_lea.vmem %s248, %s1178
      %1180 = vst.msk [vmem:[%s1179] sm:$0xf] %vm541, %v1177
      %s1181 = ssub.s32 4, %s17
      %s1182 = smul.u32 %s1181, 4
      %s1183 = smul.addr %s1182, 4
      %s1184 = scalar_lea.vmem %s225, %s1183
      %v1185 = vld [vmem:[%s1184] sm:$0xf]
      %v1186 = vld [vmem:[%s1184 + $0x4] sm:$0xf]
      %v1187 = vld [vmem:[%s1184 + $0x8] sm:$0xf]
      %v1188 = vld [vmem:[%s1184 + $0xc] sm:$0xf]
      %v1189 = vld [vmem:[#allocation2] sm:$0xff]
      %v1190 = vpack.c.bf16 %v1189, %v1189
      %v1191 = vunpack.c.l.bf16 %v1185
      %v1193 = vsel %vm304, %v1190, 0
      %1195 = vmatprep.subr.bf16.mxu0 0
      %1196 = vmatpush1.bf16.msra.mxu0 %v300
      %1197 = vmatprep.subr.bf16.mxu0 0
      %1198 = vmatpush1.bf16.msra.mxu0 %v301
      %1199 = vmatprep.subr.bf16.mxu0 0
      %1200 = vmatpush1.bf16.msra.mxu0 0
      %1201 = vmatprep.subr.bf16.mxu0 0
      %1202 = vmatpush1.bf16.msra.mxu0 0
      %1203 = vmatprep.subr.bf16.mxu0 0
      %1204 = vmatpush1.bf16.msra.mxu0 0
      %1205 = vmatprep.subr.bf16.mxu0 0
      %1206 = vmatpush1.bf16.msra.mxu0 0
      %1207 = vmatprep.subr.bf16.mxu0 0
      %1208 = vmatpush1.bf16.msra.mxu0 0
      %1209 = vmatprep.subr.bf16.mxu0 0
      %1210 = vmatpush1.bf16.msra.mxu0 0
      %1211 = vmatprep.subr.bf16.mxu0 0
      %1212 = vmatpush1.bf16.msra.mxu0 0
      %1213 = vmatprep.subr.bf16.mxu0 0
      %1214 = vmatpush1.bf16.msra.mxu0 0
      %1215 = vmatprep.subr.bf16.mxu0 0
      %1216 = vmatpush1.bf16.msra.mxu0 0
      %1217 = vmatprep.subr.bf16.mxu0 0
      %1218 = vmatpush1.bf16.msra.mxu0 0
      %1219 = vmatprep.subr.bf16.mxu0 0
      %1220 = vmatpush1.bf16.msra.mxu0 0
      %1221 = vmatprep.subr.bf16.mxu0 0
      %1222 = vmatpush1.bf16.msra.mxu0 0
      %1223 = vmatprep.subr.bf16.mxu0 0
      %1224 = vmatpush1.bf16.msra.mxu0 0
      %1225 = vmatprep.subr.bf16.mxu0 0
      %1226 = vmatpush1.bf16.msra.mxu0 0
      %1227 = vmatprep.mubr.bf16.mxu0 0
      %1228 = vmatmul.mubr.bf16.gmra.mrb[0].mxu0 %v1193
      %v1229 = vpop.f32.mrb[0].mxu0
      %v1230 = vadd.f32 0.0, %v1229
      %v1231 = vpop.f32.mrb[0].mxu0
      %v1232 = vpop.f32.mrb[0].mxu0
      %v1233 = vpop.f32.mrb[0].mxu0
      %1234 = vdwg.mxu0
      %v1235 = vadd.f32 %v1191, %v1230
      %v1236 = vunpack.c.l.bf16 %v1186
      %1237 = vmatprep.subr.bf16.mxu0 0
      %1238 = vmatpush1.bf16.msra.mxu0 %v358
      %1239 = vmatprep.subr.bf16.mxu0 0
      %1240 = vmatpush1.bf16.msra.mxu0 %v359
      %1241 = vmatprep.subr.bf16.mxu0 0
      %1242 = vmatpush1.bf16.msra.mxu0 0
      %1243 = vmatprep.subr.bf16.mxu0 0
      %1244 = vmatpush1.bf16.msra.mxu0 0
      %1245 = vmatprep.subr.bf16.mxu0 0
      %1246 = vmatpush1.bf16.msra.mxu0 0
      %1247 = vmatprep.subr.bf16.mxu0 0
      %1248 = vmatpush1.bf16.msra.mxu0 0
      %1249 = vmatprep.subr.bf16.mxu0 0
      %1250 = vmatpush1.bf16.msra.mxu0 0
      %1251 = vmatprep.subr.bf16.mxu0 0
      %1252 = vmatpush1.bf16.msra.mxu0 0
      %1253 = vmatprep.subr.bf16.mxu0 0
      %1254 = vmatpush1.bf16.msra.mxu0 0
      %1255 = vmatprep.subr.bf16.mxu0 0
      %1256 = vmatpush1.bf16.msra.mxu0 0
      %1257 = vmatprep.subr.bf16.mxu0 0
      %1258 = vmatpush1.bf16.msra.mxu0 0
      %1259 = vmatprep.subr.bf16.mxu0 0
      %1260 = vmatpush1.bf16.msra.mxu0 0
      %1261 = vmatprep.subr.bf16.mxu0 0
      %1262 = vmatpush1.bf16.msra.mxu0 0
      %1263 = vmatprep.subr.bf16.mxu0 0
      %1264 = vmatpush1.bf16.msra.mxu0 0
      %1265 = vmatprep.subr.bf16.mxu0 0
      %1266 = vmatpush1.bf16.msra.mxu0 0
      %1267 = vmatprep.subr.bf16.mxu0 0
      %1268 = vmatpush1.bf16.msra.mxu0 0
      %1269 = vmatprep.mubr.bf16.mxu0 0
      %1270 = vmatmul.mubr.bf16.gmra.mrb[0].mxu0 %v1193
      %v1271 = vpop.f32.mrb[0].mxu0
      %v1272 = vadd.f32 0.0, %v1271
      %v1273 = vpop.f32.mrb[0].mxu0
      %v1274 = vpop.f32.mrb[0].mxu0
      %v1275 = vpop.f32.mrb[0].mxu0
      %1276 = vdwg.mxu0
      %v1277 = vadd.f32 %v1236, %v1272
      %v1278 = vunpack.c.l.bf16 %v1187
      %1279 = vmatprep.subr.bf16.mxu0 0
      %1280 = vmatpush1.bf16.msra.mxu0 %v412
      %1281 = vmatprep.subr.bf16.mxu0 0
      %1282 = vmatpush1.bf16.msra.mxu0 %v413
      %1283 = vmatprep.subr.bf16.mxu0 0
      %1284 = vmatpush1.bf16.msra.mxu0 0
      %1285 = vmatprep.subr.bf16.mxu0 0
      %1286 = vmatpush1.bf16.msra.mxu0 0
      %1287 = vmatprep.subr.bf16.mxu0 0
      %1288 = vmatpush1.bf16.msra.mxu0 0
      %1289 = vmatprep.subr.bf16.mxu0 0
      %1290 = vmatpush1.bf16.msra.mxu0 0
      %1291 = vmatprep.subr.bf16.mxu0 0
      %1292 = vmatpush1.bf16.msra.mxu0 0
      %1293 = vmatprep.subr.bf16.mxu0 0
      %1294 = vmatpush1.bf16.msra.mxu0 0
      %1295 = vmatprep.subr.bf16.mxu0 0
      %1296 = vmatpush1.bf16.msra.mxu0 0
      %1297 = vmatprep.subr.bf16.mxu0 0
      %1298 = vmatpush1.bf16.msra.mxu0 0
      %1299 = vmatprep.subr.bf16.mxu0 0
      %1300 = vmatpush1.bf16.msra.mxu0 0
      %1301 = vmatprep.subr.bf16.mxu0 0
      %1302 = vmatpush1.bf16.msra.mxu0 0
      %1303 = vmatprep.subr.bf16.mxu0 0
      %1304 = vmatpush1.bf16.msra.mxu0 0
      %1305 = vmatprep.subr.bf16.mxu0 0
      %1306 = vmatpush1.bf16.msra.mxu0 0
      %1307 = vmatprep.subr.bf16.mxu0 0
      %1308 = vmatpush1.bf16.msra.mxu0 0
      %1309 = vmatprep.subr.bf16.mxu0 0
      %1310 = vmatpush1.bf16.msra.mxu0 0
      %1311 = vmatprep.mubr.bf16.mxu0 0
      %1312 = vmatmul.mubr.bf16.gmra.mrb[0].mxu0 %v1193
      %v1313 = vpop.f32.mrb[0].mxu0
      %v1314 = vadd.f32 0.0, %v1313
      %v1315 = vpop.f32.mrb[0].mxu0
      %v1316 = vpop.f32.mrb[0].mxu0
      %v1317 = vpop.f32.mrb[0].mxu0
      %1318 = vdwg.mxu0
      %v1319 = vadd.f32 %v1278, %v1314
      %v1320 = vunpack.c.l.bf16 %v1188
      %1321 = vmatprep.subr.bf16.mxu0 0
      %1322 = vmatpush1.bf16.msra.mxu0 %v466
      %1323 = vmatprep.subr.bf16.mxu0 0
      %1324 = vmatpush1.bf16.msra.mxu0 %v467
      %1325 = vmatprep.subr.bf16.mxu0 0
      %1326 = vmatpush1.bf16.msra.mxu0 0
      %1327 = vmatprep.subr.bf16.mxu0 0
      %1328 = vmatpush1.bf16.msra.mxu0 0
      %1329 = vmatprep.subr.bf16.mxu0 0
      %1330 = vmatpush1.bf16.msra.mxu0 0
      %1331 = vmatprep.subr.bf16.mxu0 0
      %1332 = vmatpush1.bf16.msra.mxu0 0
      %1333 = vmatprep.subr.bf16.mxu0 0
      %1334 = vmatpush1.bf16.msra.mxu0 0
      %1335 = vmatprep.subr.bf16.mxu0 0
      %1336 = vmatpush1.bf16.msra.mxu0 0
      %1337 = vmatprep.subr.bf16.mxu0 0
      %1338 = vmatpush1.bf16.msra.mxu0 0
      %1339 = vmatprep.subr.bf16.mxu0 0
      %1340 = vmatpush1.bf16.msra.mxu0 0
      %1341 = vmatprep.subr.bf16.mxu0 0
      %1342 = vmatpush1.bf16.msra.mxu0 0
      %1343 = vmatprep.subr.bf16.mxu0 0
      %1344 = vmatpush1.bf16.msra.mxu0 0
      %1345 = vmatprep.subr.bf16.mxu0 0
      %1346 = vmatpush1.bf16.msra.mxu0 0
      %1347 = vmatprep.subr.bf16.mxu0 0
      %1348 = vmatpush1.bf16.msra.mxu0 0
      %1349 = vmatprep.subr.bf16.mxu0 0
      %1350 = vmatpush1.bf16.msra.mxu0 0
      %1351 = vmatprep.subr.bf16.mxu0 0
      %1352 = vmatpush1.bf16.msra.mxu0 0
      %1353 = vmatprep.mubr.bf16.mxu0 0
      %1354 = vmatmul.mubr.bf16.gmra.mrb[0].mxu0 %v1193
      %v1355 = vpop.f32.mrb[0].mxu0
      %v1356 = vadd.f32 0.0, %v1355
      %v1357 = vpop.f32.mrb[0].mxu0
      %v1358 = vpop.f32.mrb[0].mxu0
      %v1359 = vpop.f32.mrb[0].mxu0
      %1360 = vdwg.mxu0
      %v1361 = vadd.f32 %v1320, %v1356
      %v1362 = vxor.u32 %v1235, 2147483648
      %v1363 = vmul.f32 %v1362, 1.442695
      %v1364 = vpow.pop %v1363
      %v1365 = vadd.f32 %v1364, 1.0
      %v1366 = vrcp.pop %v1365
      %v1367 = vmul.f32 1.0, %v1366
      %v1368 = vxor.u32 %v1277, 2147483648
      %v1369 = vmul.f32 %v1368, 1.442695
      %v1370 = vpow.pop %v1369
      %v1371 = vadd.f32 %v1370, 1.0
      %v1372 = vrcp.pop %v1371
      %v1373 = vmul.f32 1.0, %v1372
      %v1374 = vtanh.pop %v1319
      %v1375 = vxor.u32 %v1361, 2147483648
      %v1376 = vmul.f32 %v1375, 1.442695
      %v1377 = vpow.pop %v1376
      %v1378 = vadd.f32 %v1377, 1.0
      %v1379 = vrcp.pop %v1378
      %v1380 = vmul.f32 1.0, %v1379
      %v1381 = vld [vmem:[#allocation3] sm:$0xff]
      %v1382 = vmul.f32 %v1373, %v1381
      %v1383 = vmul.f32 %v1367, %v1374
      %v1384 = vadd.f32 %v1382, %v1383
      %v1385 = vtanh.pop %v1384
      %v1386 = vmul.f32 %v1380, %v1385
      %1387 = vst.msk [vmem:[#allocation3] sm:$0xff] %vm304, %v1384
      %1388 = vst.msk [vmem:[#allocation2] sm:$0xff] %vm304, %v1386
      %v1389 = vpack.c.bf16 %v1386, %v1386
      %s1390 = smul.addr %s1181, 4
      %s1391 = scalar_lea.vmem %s248, %s1390
      %1392 = vst.msk [vmem:[%s1391] sm:$0xf] %vm541, %v1389
      %s1393 = smul.u32 %s17, 4294967293
      %s1394 = sadd.s32 %s1393, 5
      %s1395 = smul.u32 %s1394, 4
      %s1396 = smul.addr %s1395, 4
      %s1397 = scalar_lea.vmem %s225, %s1396
      %v1398 = vld [vmem:[%s1397] sm:$0xf]
      %v1399 = vld [vmem:[%s1397 + $0x4] sm:$0xf]
      %v1400 = vld [vmem:[%s1397 + $0x8] sm:$0xf]
      %v1401 = vld [vmem:[%s1397 + $0xc] sm:$0xf]
      %v1402 = vld [vmem:[#allocation2] sm:$0xff]
      %v1403 = vpack.c.bf16 %v1402, %v1402
      %v1404 = vunpack.c.l.bf16 %v1398
      %v1406 = vsel %vm304, %v1403, 0
      %1408 = vmatprep.subr.bf16.mxu0 0
      %1409 = vmatpush1.bf16.msra.mxu0 %v300
      %1410 = vmatprep.subr.bf16.mxu0 0
      %1411 = vmatpush1.bf16.msra.mxu0 %v301
      %1412 = vmatprep.subr.bf16.mxu0 0
      %1413 = vmatpush1.bf16.msra.mxu0 0
      %1414 = vmatprep.subr.bf16.mxu0 0
      %1415 = vmatpush1.bf16.msra.mxu0 0
      %1416 = vmatprep.subr.bf16.mxu0 0
      %1417 = vmatpush1.bf16.msra.mxu0 0
      %1418 = vmatprep.subr.bf16.mxu0 0
      %1419 = vmatpush1.bf16.msra.mxu0 0
      %1420 = vmatprep.subr.bf16.mxu0 0
      %1421 = vmatpush1.bf16.msra.mxu0 0
      %1422 = vmatprep.subr.bf16.mxu0 0
      %1423 = vmatpush1.bf16.msra.mxu0 0
      %1424 = vmatprep.subr.bf16.mxu0 0
      %1425 = vmatpush1.bf16.msra.mxu0 0
      %1426 = vmatprep.subr.bf16.mxu0 0
      %1427 = vmatpush1.bf16.msra.mxu0 0
      %1428 = vmatprep.subr.bf16.mxu0 0
      %1429 = vmatpush1.bf16.msra.mxu0 0
      %1430 = vmatprep.subr.bf16.mxu0 0
      %1431 = vmatpush1.bf16.msra.mxu0 0
      %1432 = vmatprep.subr.bf16.mxu0 0
      %1433 = vmatpush1.bf16.msra.mxu0 0
      %1434 = vmatprep.subr.bf16.mxu0 0
      %1435 = vmatpush1.bf16.msra.mxu0 0
      %1436 = vmatprep.subr.bf16.mxu0 0
      %1437 = vmatpush1.bf16.msra.mxu0 0
      %1438 = vmatprep.subr.bf16.mxu0 0
      %1439 = vmatpush1.bf16.msra.mxu0 0
      %1440 = vmatprep.mubr.bf16.mxu0 0
      %1441 = vmatmul.mubr.bf16.gmra.mrb[0].mxu0 %v1406
      %v1442 = vpop.f32.mrb[0].mxu0
      %v1443 = vadd.f32 0.0, %v1442
      %v1444 = vpop.f32.mrb[0].mxu0
      %v1445 = vpop.f32.mrb[0].mxu0
      %v1446 = vpop.f32.mrb[0].mxu0
      %1447 = vdwg.mxu0
      %v1448 = vadd.f32 %v1404, %v1443
      %v1449 = vunpack.c.l.bf16 %v1399
      %1450 = vmatprep.subr.bf16.mxu0 0
      %1451 = vmatpush1.bf16.msra.mxu0 %v358
      %1452 = vmatprep.subr.bf16.mxu0 0
      %1453 = vmatpush1.bf16.msra.mxu0 %v359
      %1454 = vmatprep.subr.bf16.mxu0 0
      %1455 = vmatpush1.bf16.msra.mxu0 0
      %1456 = vmatprep.subr.bf16.mxu0 0
      %1457 = vmatpush1.bf16.msra.mxu0 0
      %1458 = vmatprep.subr.bf16.mxu0 0
      %1459 = vmatpush1.bf16.msra.mxu0 0
      %1460 = vmatprep.subr.bf16.mxu0 0
      %1461 = vmatpush1.bf16.msra.mxu0 0
      %1462 = vmatprep.subr.bf16.mxu0 0
      %1463 = vmatpush1.bf16.msra.mxu0 0
      %1464 = vmatprep.subr.bf16.mxu0 0
      %1465 = vmatpush1.bf16.msra.mxu0 0
      %1466 = vmatprep.subr.bf16.mxu0 0
      %1467 = vmatpush1.bf16.msra.mxu0 0
      %1468 = vmatprep.subr.bf16.mxu0 0
      %1469 = vmatpush1.bf16.msra.mxu0 0
      %1470 = vmatprep.subr.bf16.mxu0 0
      %1471 = vmatpush1.bf16.msra.mxu0 0
      %1472 = vmatprep.subr.bf16.mxu0 0
      %1473 = vmatpush1.bf16.msra.mxu0 0
      %1474 = vmatprep.subr.bf16.mxu0 0
      %1475 = vmatpush1.bf16.msra.mxu0 0
      %1476 = vmatprep.subr.bf16.mxu0 0
      %1477 = vmatpush1.bf16.msra.mxu0 0
      %1478 = vmatprep.subr.bf16.mxu0 0
      %1479 = vmatpush1.bf16.msra.mxu0 0
      %1480 = vmatprep.subr.bf16.mxu0 0
      %1481 = vmatpush1.bf16.msra.mxu0 0
      %1482 = vmatprep.mubr.bf16.mxu0 0
      %1483 = vmatmul.mubr.bf16.gmra.mrb[0].mxu0 %v1406
      %v1484 = vpop.f32.mrb[0].mxu0
      %v1485 = vadd.f32 0.0, %v1484
      %v1486 = vpop.f32.mrb[0].mxu0
      %v1487 = vpop.f32.mrb[0].mxu0
      %v1488 = vpop.f32.mrb[0].mxu0
      %1489 = vdwg.mxu0
      %v1490 = vadd.f32 %v1449, %v1485
      %v1491 = vunpack.c.l.bf16 %v1400
      %1492 = vmatprep.subr.bf16.mxu0 0
      %1493 = vmatpush1.bf16.msra.mxu0 %v412
      %1494 = vmatprep.subr.bf16.mxu0 0
      %1495 = vmatpush1.bf16.msra.mxu0 %v413
      %1496 = vmatprep.subr.bf16.mxu0 0
      %1497 = vmatpush1.bf16.msra.mxu0 0
      %1498 = vmatprep.subr.bf16.mxu0 0
      %1499 = vmatpush1.bf16.msra.mxu0 0
      %1500 = vmatprep.subr.bf16.mxu0 0
      %1501 = vmatpush1.bf16.msra.mxu0 0
      %1502 = vmatprep.subr.bf16.mxu0 0
      %1503 = vmatpush1.bf16.msra.mxu0 0
      %1504 = vmatprep.subr.bf16.mxu0 0
      %1505 = vmatpush1.bf16.msra.mxu0 0
      %1506 = vmatprep.subr.bf16.mxu0 0
      %1507 = vmatpush1.bf16.msra.mxu0 0
      %1508 = vmatprep.subr.bf16.mxu0 0
      %1509 = vmatpush1.bf16.msra.mxu0 0
      %1510 = vmatprep.subr.bf16.mxu0 0
      %1511 = vmatpush1.bf16.msra.mxu0 0
      %1512 = vmatprep.subr.bf16.mxu0 0
      %1513 = vmatpush1.bf16.msra.mxu0 0
      %1514 = vmatprep.subr.bf16.mxu0 0
      %1515 = vmatpush1.bf16.msra.mxu0 0
      %1516 = vmatprep.subr.bf16.mxu0 0
      %1517 = vmatpush1.bf16.msra.mxu0 0
      %1518 = vmatprep.subr.bf16.mxu0 0
      %1519 = vmatpush1.bf16.msra.mxu0 0
      %1520 = vmatprep.subr.bf16.mxu0 0
      %1521 = vmatpush1.bf16.msra.mxu0 0
      %1522 = vmatprep.subr.bf16.mxu0 0
      %1523 = vmatpush1.bf16.msra.mxu0 0
      %1524 = vmatprep.mubr.bf16.mxu0 0
      %1525 = vmatmul.mubr.bf16.gmra.mrb[0].mxu0 %v1406
      %v1526 = vpop.f32.mrb[0].mxu0
      %v1527 = vadd.f32 0.0, %v1526
      %v1528 = vpop.f32.mrb[0].mxu0
      %v1529 = vpop.f32.mrb[0].mxu0
      %v1530 = vpop.f32.mrb[0].mxu0
      %1531 = vdwg.mxu0
      %v1532 = vadd.f32 %v1491, %v1527
      %v1533 = vunpack.c.l.bf16 %v1401
      %1534 = vmatprep.subr.bf16.mxu0 0
      %1535 = vmatpush1.bf16.msra.mxu0 %v466
      %1536 = vmatprep.subr.bf16.mxu0 0
      %1537 = vmatpush1.bf16.msra.mxu0 %v467
      %1538 = vmatprep.subr.bf16.mxu0 0
      %1539 = vmatpush1.bf16.msra.mxu0 0
      %1540 = vmatprep.subr.bf16.mxu0 0
      %1541 = vmatpush1.bf16.msra.mxu0 0
      %1542 = vmatprep.subr.bf16.mxu0 0
      %1543 = vmatpush1.bf16.msra.mxu0 0
      %1544 = vmatprep.subr.bf16.mxu0 0
      %1545 = vmatpush1.bf16.msra.mxu0 0
      %1546 = vmatprep.subr.bf16.mxu0 0
      %1547 = vmatpush1.bf16.msra.mxu0 0
      %1548 = vmatprep.subr.bf16.mxu0 0
      %1549 = vmatpush1.bf16.msra.mxu0 0
      %1550 = vmatprep.subr.bf16.mxu0 0
      %1551 = vmatpush1.bf16.msra.mxu0 0
      %1552 = vmatprep.subr.bf16.mxu0 0
      %1553 = vmatpush1.bf16.msra.mxu0 0
      %1554 = vmatprep.subr.bf16.mxu0 0
      %1555 = vmatpush1.bf16.msra.mxu0 0
      %1556 = vmatprep.subr.bf16.mxu0 0
      %1557 = vmatpush1.bf16.msra.mxu0 0
      %1558 = vmatprep.subr.bf16.mxu0 0
      %1559 = vmatpush1.bf16.msra.mxu0 0
      %1560 = vmatprep.subr.bf16.mxu0 0
      %1561 = vmatpush1.bf16.msra.mxu0 0
      %1562 = vmatprep.subr.bf16.mxu0 0
      %1563 = vmatpush1.bf16.msra.mxu0 0
      %1564 = vmatprep.subr.bf16.mxu0 0
      %1565 = vmatpush1.bf16.msra.mxu0 0
      %1566 = vmatprep.mubr.bf16.mxu0 0
      %1567 = vmatmul.mubr.bf16.gmra.mrb[0].mxu0 %v1406
      %v1568 = vpop.f32.mrb[0].mxu0
      %v1569 = vadd.f32 0.0, %v1568
      %v1570 = vpop.f32.mrb[0].mxu0
      %v1571 = vpop.f32.mrb[0].mxu0
      %v1572 = vpop.f32.mrb[0].mxu0
      %1573 = vdwg.mxu0
      %v1574 = vadd.f32 %v1533, %v1569
      %v1575 = vxor.u32 %v1448, 2147483648
      %v1576 = vmul.f32 %v1575, 1.442695
      %v1577 = vpow.pop %v1576
      %v1578 = vadd.f32 %v1577, 1.0
      %v1579 = vrcp.pop %v1578
      %v1580 = vmul.f32 1.0, %v1579
      %v1581 = vxor.u32 %v1490, 2147483648
      %v1582 = vmul.f32 %v1581, 1.442695
      %v1583 = vpow.pop %v1582
      %v1584 = vadd.f32 %v1583, 1.0
      %v1585 = vrcp.pop %v1584
      %v1586 = vmul.f32 1.0, %v1585
      %v1587 = vtanh.pop %v1532
      %v1588 = vxor.u32 %v1574, 2147483648
      %v1589 = vmul.f32 %v1588, 1.442695
      %v1590 = vpow.pop %v1589
      %v1591 = vadd.f32 %v1590, 1.0
      %v1592 = vrcp.pop %v1591
      %v1593 = vmul.f32 1.0, %v1592
      %v1594 = vld [vmem:[#allocation3] sm:$0xff]
      %v1595 = vmul.f32 %v1586, %v1594
      %v1596 = vmul.f32 %v1580, %v1587
      %v1597 = vadd.f32 %v1595, %v1596
      %v1598 = vtanh.pop %v1597
      %v1599 = vmul.f32 %v1593, %v1598
      %1600 = vst.msk [vmem:[#allocation3] sm:$0xff] %vm304, %v1597
      %1601 = vst.msk [vmem:[#allocation2] sm:$0xff] %vm304, %v1599
      %v1602 = vpack.c.bf16 %v1599, %v1599
      %s1603 = smul.addr %s1394, 4
      %s1604 = scalar_lea.vmem %s248, %s1603
      %1605 = vst.msk [vmem:[%s1604] sm:$0xf] %vm541, %v1602
      %s1606 = smul.u32 %s17, 4294967291
      %s1607 = sadd.s32 %s1606, 6
      %s1608 = smul.u32 %s1607, 4
      %s1609 = smul.addr %s1608, 4
      %s1610 = scalar_lea.vmem %s225, %s1609
      %v1611 = vld [vmem:[%s1610] sm:$0xf]
      %v1612 = vld [vmem:[%s1610 + $0x4] sm:$0xf]
      %v1613 = vld [vmem:[%s1610 + $0x8] sm:$0xf]
      %v1614 = vld [vmem:[%s1610 + $0xc] sm:$0xf]
      %v1615 = vld [vmem:[#allocation2] sm:$0xff]
      %v1616 = vpack.c.bf16 %v1615, %v1615
      %v1617 = vunpack.c.l.bf16 %v1611
      %v1619 = vsel %vm304, %v1616, 0
      %1621 = vmatprep.subr.bf16.mxu0 0
      %1622 = vmatpush1.bf16.msra.mxu0 %v300
      %1623 = vmatprep.subr.bf16.mxu0 0
      %1624 = vmatpush1.bf16.msra.mxu0 %v301
      %1625 = vmatprep.subr.bf16.mxu0 0
      %1626 = vmatpush1.bf16.msra.mxu0 0
      %1627 = vmatprep.subr.bf16.mxu0 0
      %1628 = vmatpush1.bf16.msra.mxu0 0
      %1629 = vmatprep.subr.bf16.mxu0 0
      %1630 = vmatpush1.bf16.msra.mxu0 0
      %1631 = vmatprep.subr.bf16.mxu0 0
      %1632 = vmatpush1.bf16.msra.mxu0 0
      %1633 = vmatprep.subr.bf16.mxu0 0
      %1634 = vmatpush1.bf16.msra.mxu0 0
      %1635 = vmatprep.subr.bf16.mxu0 0
      %1636 = vmatpush1.bf16.msra.mxu0 0
      %1637 = vmatprep.subr.bf16.mxu0 0
      %1638 = vmatpush1.bf16.msra.mxu0 0
      %1639 = vmatprep.subr.bf16.mxu0 0
      %1640 = vmatpush1.bf16.msra.mxu0 0
      %1641 = vmatprep.subr.bf16.mxu0 0
      %1642 = vmatpush1.bf16.msra.mxu0 0
      %1643 = vmatprep.subr.bf16.mxu0 0
      %1644 = vmatpush1.bf16.msra.mxu0 0
      %1645 = vmatprep.subr.bf16.mxu0 0
      %1646 = vmatpush1.bf16.msra.mxu0 0
      %1647 = vmatprep.subr.bf16.mxu0 0
      %1648 = vmatpush1.bf16.msra.mxu0 0
      %1649 = vmatprep.subr.bf16.mxu0 0
      %1650 = vmatpush1.bf16.msra.mxu0 0
      %1651 = vmatprep.subr.bf16.mxu0 0
      %1652 = vmatpush1.bf16.msra.mxu0 0
      %1653 = vmatprep.mubr.bf16.mxu0 0
      %1654 = vmatmul.mubr.bf16.gmra.mrb[0].mxu0 %v1619
      %v1655 = vpop.f32.mrb[0].mxu0
      %v1656 = vadd.f32 0.0, %v1655
      %v1657 = vpop.f32.mrb[0].mxu0
      %v1658 = vpop.f32.mrb[0].mxu0
      %v1659 = vpop.f32.mrb[0].mxu0
      %1660 = vdwg.mxu0
      %v1661 = vadd.f32 %v1617, %v1656
      %v1662 = vunpack.c.l.bf16 %v1612
      %1663 = vmatprep.subr.bf16.mxu0 0
      %1664 = vmatpush1.bf16.msra.mxu0 %v358
      %1665 = vmatprep.subr.bf16.mxu0 0
      %1666 = vmatpush1.bf16.msra.mxu0 %v359
      %1667 = vmatprep.subr.bf16.mxu0 0
      %1668 = vmatpush1.bf16.msra.mxu0 0
      %1669 = vmatprep.subr.bf16.mxu0 0
      %1670 = vmatpush1.bf16.msra.mxu0 0
      %1671 = vmatprep.subr.bf16.mxu0 0
      %1672 = vmatpush1.bf16.msra.mxu0 0
      %1673 = vmatprep.subr.bf16.mxu0 0
      %1674 = vmatpush1.bf16.msra.mxu0 0
      %1675 = vmatprep.subr.bf16.mxu0 0
      %1676 = vmatpush1.bf16.msra.mxu0 0
      %1677 = vmatprep.subr.bf16.mxu0 0
      %1678 = vmatpush1.bf16.msra.mxu0 0
      %1679 = vmatprep.subr.bf16.mxu0 0
      %1680 = vmatpush1.bf16.msra.mxu0 0
      %1681 = vmatprep.subr.bf16.mxu0 0
      %1682 = vmatpush1.bf16.msra.mxu0 0
      %1683 = vmatprep.subr.bf16.mxu0 0
      %1684 = vmatpush1.bf16.msra.mxu0 0
      %1685 = vmatprep.subr.bf16.mxu0 0
      %1686 = vmatpush1.bf16.msra.mxu0 0
      %1687 = vmatprep.subr.bf16.mxu0 0
      %1688 = vmatpush1.bf16.msra.mxu0 0
      %1689 = vmatprep.subr.bf16.mxu0 0
      %1690 = vmatpush1.bf16.msra.mxu0 0
      %1691 = vmatprep.subr.bf16.mxu0 0
      %1692 = vmatpush1.bf16.msra.mxu0 0
      %1693 = vmatprep.subr.bf16.mxu0 0
      %1694 = vmatpush1.bf16.msra.mxu0 0
      %1695 = vmatprep.mubr.bf16.mxu0 0
      %1696 = vmatmul.mubr.bf16.gmra.mrb[0].mxu0 %v1619
      %v1697 = vpop.f32.mrb[0].mxu0
      %v1698 = vadd.f32 0.0, %v1697
      %v1699 = vpop.f32.mrb[0].mxu0
      %v1700 = vpop.f32.mrb[0].mxu0
      %v1701 = vpop.f32.mrb[0].mxu0
      %1702 = vdwg.mxu0
      %v1703 = vadd.f32 %v1662, %v1698
      %v1704 = vunpack.c.l.bf16 %v1613
      %1705 = vmatprep.subr.bf16.mxu0 0
      %1706 = vmatpush1.bf16.msra.mxu0 %v412
      %1707 = vmatprep.subr.bf16.mxu0 0
      %1708 = vmatpush1.bf16.msra.mxu0 %v413
      %1709 = vmatprep.subr.bf16.mxu0 0
      %1710 = vmatpush1.bf16.msra.mxu0 0
      %1711 = vmatprep.subr.bf16.mxu0 0
      %1712 = vmatpush1.bf16.msra.mxu0 0
      %1713 = vmatprep.subr.bf16.mxu0 0
      %1714 = vmatpush1.bf16.msra.mxu0 0
      %1715 = vmatprep.subr.bf16.mxu0 0
      %1716 = vmatpush1.bf16.msra.mxu0 0
      %1717 = vmatprep.subr.bf16.mxu0 0
      %1718 = vmatpush1.bf16.msra.mxu0 0
      %1719 = vmatprep.subr.bf16.mxu0 0
      %1720 = vmatpush1.bf16.msra.mxu0 0
      %1721 = vmatprep.subr.bf16.mxu0 0
      %1722 = vmatpush1.bf16.msra.mxu0 0
      %1723 = vmatprep.subr.bf16.mxu0 0
      %1724 = vmatpush1.bf16.msra.mxu0 0
      %1725 = vmatprep.subr.bf16.mxu0 0
      %1726 = vmatpush1.bf16.msra.mxu0 0
      %1727 = vmatprep.subr.bf16.mxu0 0
      %1728 = vmatpush1.bf16.msra.mxu0 0
      %1729 = vmatprep.subr.bf16.mxu0 0
      %1730 = vmatpush1.bf16.msra.mxu0 0
      %1731 = vmatprep.subr.bf16.mxu0 0
      %1732 = vmatpush1.bf16.msra.mxu0 0
      %1733 = vmatprep.subr.bf16.mxu0 0
      %1734 = vmatpush1.bf16.msra.mxu0 0
      %1735 = vmatprep.subr.bf16.mxu0 0
      %1736 = vmatpush1.bf16.msra.mxu0 0
      %1737 = vmatprep.mubr.bf16.mxu0 0
      %1738 = vmatmul.mubr.bf16.gmra.mrb[0].mxu0 %v1619
      %v1739 = vpop.f32.mrb[0].mxu0
      %v1740 = vadd.f32 0.0, %v1739
      %v1741 = vpop.f32.mrb[0].mxu0
      %v1742 = vpop.f32.mrb[0].mxu0
      %v1743 = vpop.f32.mrb[0].mxu0
      %1744 = vdwg.mxu0
      %v1745 = vadd.f32 %v1704, %v1740
      %v1746 = vunpack.c.l.bf16 %v1614
      %1747 = vmatprep.subr.bf16.mxu0 0
      %1748 = vmatpush1.bf16.msra.mxu0 %v466
      %1749 = vmatprep.subr.bf16.mxu0 0
      %1750 = vmatpush1.bf16.msra.mxu0 %v467
      %1751 = vmatprep.subr.bf16.mxu0 0
      %1752 = vmatpush1.bf16.msra.mxu0 0
      %1753 = vmatprep.subr.bf16.mxu0 0
      %1754 = vmatpush1.bf16.msra.mxu0 0
      %1755 = vmatprep.subr.bf16.mxu0 0
      %1756 = vmatpush1.bf16.msra.mxu0 0
      %1757 = vmatprep.subr.bf16.mxu0 0
      %1758 = vmatpush1.bf16.msra.mxu0 0
      %1759 = vmatprep.subr.bf16.mxu0 0
      %1760 = vmatpush1.bf16.msra.mxu0 0
      %1761 = vmatprep.subr.bf16.mxu0 0
      %1762 = vmatpush1.bf16.msra.mxu0 0
      %1763 = vmatprep.subr.bf16.mxu0 0
      %1764 = vmatpush1.bf16.msra.mxu0 0
      %1765 = vmatprep.subr.bf16.mxu0 0
      %1766 = vmatpush1.bf16.msra.mxu0 0
      %1767 = vmatprep.subr.bf16.mxu0 0
      %1768 = vmatpush1.bf16.msra.mxu0 0
      %1769 = vmatprep.subr.bf16.mxu0 0
      %1770 = vmatpush1.bf16.msra.mxu0 0
      %1771 = vmatprep.subr.bf16.mxu0 0
      %1772 = vmatpush1.bf16.msra.mxu0 0
      %1773 = vmatprep.subr.bf16.mxu0 0
      %1774 = vmatpush1.bf16.msra.mxu0 0
      %1775 = vmatprep.subr.bf16.mxu0 0
      %1776 = vmatpush1.bf16.msra.mxu0 0
      %1777 = vmatprep.subr.bf16.mxu0 0
      %1778 = vmatpush1.bf16.msra.mxu0 0
      %1779 = vmatprep.mubr.bf16.mxu0 0
      %1780 = vmatmul.mubr.bf16.gmra.mrb[0].mxu0 %v1619
      %v1781 = vpop.f32.mrb[0].mxu0
      %v1782 = vadd.f32 0.0, %v1781
      %v1783 = vpop.f32.mrb[0].mxu0
      %v1784 = vpop.f32.mrb[0].mxu0
      %v1785 = vpop.f32.mrb[0].mxu0
      %1786 = vdwg.mxu0
      %v1787 = vadd.f32 %v1746, %v1782
      %v1788 = vxor.u32 %v1661, 2147483648
      %v1789 = vmul.f32 %v1788, 1.442695
      %v1790 = vpow.pop %v1789
      %v1791 = vadd.f32 %v1790, 1.0
      %v1792 = vrcp.pop %v1791
      %v1793 = vmul.f32 1.0, %v1792
      %v1794 = vxor.u32 %v1703, 2147483648
      %v1795 = vmul.f32 %v1794, 1.442695
      %v1796 = vpow.pop %v1795
      %v1797 = vadd.f32 %v1796, 1.0
      %v1798 = vrcp.pop %v1797
      %v1799 = vmul.f32 1.0, %v1798
      %v1800 = vtanh.pop %v1745
      %v1801 = vxor.u32 %v1787, 2147483648
      %v1802 = vmul.f32 %v1801, 1.442695
      %v1803 = vpow.pop %v1802
      %v1804 = vadd.f32 %v1803, 1.0
      %v1805 = vrcp.pop %v1804
      %v1806 = vmul.f32 1.0, %v1805
      %v1807 = vld [vmem:[#allocation3] sm:$0xff]
      %v1808 = vmul.f32 %v1799, %v1807
      %v1809 = vmul.f32 %v1793, %v1800
      %v1810 = vadd.f32 %v1808, %v1809
      %v1811 = vtanh.pop %v1810
      %v1812 = vmul.f32 %v1806, %v1811
      %1813 = vst.msk [vmem:[#allocation3] sm:$0xff] %vm304, %v1810
      %1814 = vst.msk [vmem:[#allocation2] sm:$0xff] %vm304, %v1812
      %v1815 = vpack.c.bf16 %v1812, %v1812
      %s1816 = smul.addr %s1607, 4
      %s1817 = scalar_lea.vmem %s248, %s1816
      %1818 = vst.msk [vmem:[%s1817] sm:$0xf] %vm541, %v1815
      %s1819 = smul.u32 %s17, 4294967289
      %s1820 = sadd.s32 %s1819, 7
      %s1821 = smul.u32 %s1820, 4
      %s1822 = smul.addr %s1821, 4
      %s1823 = scalar_lea.vmem %s225, %s1822
      %v1824 = vld [vmem:[%s1823] sm:$0xf]
      %v1825 = vld [vmem:[%s1823 + $0x4] sm:$0xf]
      %v1826 = vld [vmem:[%s1823 + $0x8] sm:$0xf]
      %v1827 = vld [vmem:[%s1823 + $0xc] sm:$0xf]
      %v1828 = vld [vmem:[#allocation2] sm:$0xff]
      %v1829 = vpack.c.bf16 %v1828, %v1828
      %v1830 = vunpack.c.l.bf16 %v1824
      %v1832 = vsel %vm304, %v1829, 0
      %1834 = vmatprep.subr.bf16.mxu0 0
      %1835 = vmatpush1.bf16.msra.mxu0 %v300
      %1836 = vmatprep.subr.bf16.mxu0 0
      %1837 = vmatpush1.bf16.msra.mxu0 %v301
      %1838 = vmatprep.subr.bf16.mxu0 0
      %1839 = vmatpush1.bf16.msra.mxu0 0
      %1840 = vmatprep.subr.bf16.mxu0 0
      %1841 = vmatpush1.bf16.msra.mxu0 0
      %1842 = vmatprep.subr.bf16.mxu0 0
      %1843 = vmatpush1.bf16.msra.mxu0 0
      %1844 = vmatprep.subr.bf16.mxu0 0
      %1845 = vmatpush1.bf16.msra.mxu0 0
      %1846 = vmatprep.subr.bf16.mxu0 0
      %1847 = vmatpush1.bf16.msra.mxu0 0
      %1848 = vmatprep.subr.bf16.mxu0 0
      %1849 = vmatpush1.bf16.msra.mxu0 0
      %1850 = vmatprep.subr.bf16.mxu0 0
      %1851 = vmatpush1.bf16.msra.mxu0 0
      %1852 = vmatprep.subr.bf16.mxu0 0
      %1853 = vmatpush1.bf16.msra.mxu0 0
      %1854 = vmatprep.subr.bf16.mxu0 0
      %1855 = vmatpush1.bf16.msra.mxu0 0
      %1856 = vmatprep.subr.bf16.mxu0 0
      %1857 = vmatpush1.bf16.msra.mxu0 0
      %1858 = vmatprep.subr.bf16.mxu0 0
      %1859 = vmatpush1.bf16.msra.mxu0 0
      %1860 = vmatprep.subr.bf16.mxu0 0
      %1861 = vmatpush1.bf16.msra.mxu0 0
      %1862 = vmatprep.subr.bf16.mxu0 0
      %1863 = vmatpush1.bf16.msra.mxu0 0
      %1864 = vmatprep.subr.bf16.mxu0 0
      %1865 = vmatpush1.bf16.msra.mxu0 0
      %1866 = vmatprep.mubr.bf16.mxu0 0
      %1867 = vmatmul.mubr.bf16.gmra.mrb[0].mxu0 %v1832
      %v1868 = vpop.f32.mrb[0].mxu0
      %v1869 = vadd.f32 0.0, %v1868
      %v1870 = vpop.f32.mrb[0].mxu0
      %v1871 = vpop.f32.mrb[0].mxu0
      %v1872 = vpop.f32.mrb[0].mxu0
      %1873 = vdwg.mxu0
      %v1874 = vadd.f32 %v1830, %v1869
      %v1875 = vunpack.c.l.bf16 %v1825
      %1876 = vmatprep.subr.bf16.mxu0 0
      %1877 = vmatpush1.bf16.msra.mxu0 %v358
      %1878 = vmatprep.subr.bf16.mxu0 0
      %1879 = vmatpush1.bf16.msra.mxu0 %v359
      %1880 = vmatprep.subr.bf16.mxu0 0
      %1881 = vmatpush1.bf16.msra.mxu0 0
      %1882 = vmatprep.subr.bf16.mxu0 0
      %1883 = vmatpush1.bf16.msra.mxu0 0
      %1884 = vmatprep.subr.bf16.mxu0 0
      %1885 = vmatpush1.bf16.msra.mxu0 0
      %1886 = vmatprep.subr.bf16.mxu0 0
      %1887 = vmatpush1.bf16.msra.mxu0 0
      %1888 = vmatprep.subr.bf16.mxu0 0
      %1889 = vmatpush1.bf16.msra.mxu0 0
      %1890 = vmatprep.subr.bf16.mxu0 0
      %1891 = vmatpush1.bf16.msra.mxu0 0
      %1892 = vmatprep.subr.bf16.mxu0 0
      %1893 = vmatpush1.bf16.msra.mxu0 0
      %1894 = vmatprep.subr.bf16.mxu0 0
      %1895 = vmatpush1.bf16.msra.mxu0 0
      %1896 = vmatprep.subr.bf16.mxu0 0
      %1897 = vmatpush1.bf16.msra.mxu0 0
      %1898 = vmatprep.subr.bf16.mxu0 0
      %1899 = vmatpush1.bf16.msra.mxu0 0
      %1900 = vmatprep.subr.bf16.mxu0 0
      %1901 = vmatpush1.bf16.msra.mxu0 0
      %1902 = vmatprep.subr.bf16.mxu0 0
      %1903 = vmatpush1.bf16.msra.mxu0 0
      %1904 = vmatprep.subr.bf16.mxu0 0
      %1905 = vmatpush1.bf16.msra.mxu0 0
      %1906 = vmatprep.subr.bf16.mxu0 0
      %1907 = vmatpush1.bf16.msra.mxu0 0
      %1908 = vmatprep.mubr.bf16.mxu0 0
      %1909 = vmatmul.mubr.bf16.gmra.mrb[0].mxu0 %v1832
      %v1910 = vpop.f32.mrb[0].mxu0
      %v1911 = vadd.f32 0.0, %v1910
      %v1912 = vpop.f32.mrb[0].mxu0
      %v1913 = vpop.f32.mrb[0].mxu0
      %v1914 = vpop.f32.mrb[0].mxu0
      %1915 = vdwg.mxu0
      %v1916 = vadd.f32 %v1875, %v1911
      %v1917 = vunpack.c.l.bf16 %v1826
      %1918 = vmatprep.subr.bf16.mxu0 0
      %1919 = vmatpush1.bf16.msra.mxu0 %v412
      %1920 = vmatprep.subr.bf16.mxu0 0
      %1921 = vmatpush1.bf16.msra.mxu0 %v413
      %1922 = vmatprep.subr.bf16.mxu0 0
      %1923 = vmatpush1.bf16.msra.mxu0 0
      %1924 = vmatprep.subr.bf16.mxu0 0
      %1925 = vmatpush1.bf16.msra.mxu0 0
      %1926 = vmatprep.subr.bf16.mxu0 0
      %1927 = vmatpush1.bf16.msra.mxu0 0
      %1928 = vmatprep.subr.bf16.mxu0 0
      %1929 = vmatpush1.bf16.msra.mxu0 0
      %1930 = vmatprep.subr.bf16.mxu0 0
      %1931 = vmatpush1.bf16.msra.mxu0 0
      %1932 = vmatprep.subr.bf16.mxu0 0
      %1933 = vmatpush1.bf16.msra.mxu0 0
      %1934 = vmatprep.subr.bf16.mxu0 0
      %1935 = vmatpush1.bf16.msra.mxu0 0
      %1936 = vmatprep.subr.bf16.mxu0 0
      %1937 = vmatpush1.bf16.msra.mxu0 0
      %1938 = vmatprep.subr.bf16.mxu0 0
      %1939 = vmatpush1.bf16.msra.mxu0 0
      %1940 = vmatprep.subr.bf16.mxu0 0
      %1941 = vmatpush1.bf16.msra.mxu0 0
      %1942 = vmatprep.subr.bf16.mxu0 0
      %1943 = vmatpush1.bf16.msra.mxu0 0
      %1944 = vmatprep.subr.bf16.mxu0 0
      %1945 = vmatpush1.bf16.msra.mxu0 0
      %1946 = vmatprep.subr.bf16.mxu0 0
      %1947 = vmatpush1.bf16.msra.mxu0 0
      %1948 = vmatprep.subr.bf16.mxu0 0
      %1949 = vmatpush1.bf16.msra.mxu0 0
      %1950 = vmatprep.mubr.bf16.mxu0 0
      %1951 = vmatmul.mubr.bf16.gmra.mrb[0].mxu0 %v1832
      %v1952 = vpop.f32.mrb[0].mxu0
      %v1953 = vadd.f32 0.0, %v1952
      %v1954 = vpop.f32.mrb[0].mxu0
      %v1955 = vpop.f32.mrb[0].mxu0
      %v1956 = vpop.f32.mrb[0].mxu0
      %1957 = vdwg.mxu0
      %v1958 = vadd.f32 %v1917, %v1953
      %v1959 = vunpack.c.l.bf16 %v1827
      %1960 = vmatprep.subr.bf16.mxu0 0
      %1961 = vmatpush1.bf16.msra.mxu0 %v466
      %1962 = vmatprep.subr.bf16.mxu0 0
      %1963 = vmatpush1.bf16.msra.mxu0 %v467
      %1964 = vmatprep.subr.bf16.mxu0 0
      %1965 = vmatpush1.bf16.msra.mxu0 0
      %1966 = vmatprep.subr.bf16.mxu0 0
      %1967 = vmatpush1.bf16.msra.mxu0 0
      %1968 = vmatprep.subr.bf16.mxu0 0
      %1969 = vmatpush1.bf16.msra.mxu0 0
      %1970 = vmatprep.subr.bf16.mxu0 0
      %1971 = vmatpush1.bf16.msra.mxu0 0
      %1972 = vmatprep.subr.bf16.mxu0 0
      %1973 = vmatpush1.bf16.msra.mxu0 0
      %1974 = vmatprep.subr.bf16.mxu0 0
      %1975 = vmatpush1.bf16.msra.mxu0 0
      %1976 = vmatprep.subr.bf16.mxu0 0
      %1977 = vmatpush1.bf16.msra.mxu0 0
      %1978 = vmatprep.subr.bf16.mxu0 0
      %1979 = vmatpush1.bf16.msra.mxu0 0
      %1980 = vmatprep.subr.bf16.mxu0 0
      %1981 = vmatpush1.bf16.msra.mxu0 0
      %1982 = vmatprep.subr.bf16.mxu0 0
      %1983 = vmatpush1.bf16.msra.mxu0 0
      %1984 = vmatprep.subr.bf16.mxu0 0
      %1985 = vmatpush1.bf16.msra.mxu0 0
      %1986 = vmatprep.subr.bf16.mxu0 0
      %1987 = vmatpush1.bf16.msra.mxu0 0
      %1988 = vmatprep.subr.bf16.mxu0 0
      %1989 = vmatpush1.bf16.msra.mxu0 0
      %1990 = vmatprep.subr.bf16.mxu0 0
      %1991 = vmatpush1.bf16.msra.mxu0 0
      %1992 = vmatprep.mubr.bf16.mxu0 0
      %1993 = vmatmul.mubr.bf16.gmra.mrb[0].mxu0 %v1832
      %v1994 = vpop.f32.mrb[0].mxu0
      %v1995 = vadd.f32 0.0, %v1994
      %v1996 = vpop.f32.mrb[0].mxu0
      %v1997 = vpop.f32.mrb[0].mxu0
      %v1998 = vpop.f32.mrb[0].mxu0
      %1999 = vdwg.mxu0
      %v2000 = vadd.f32 %v1959, %v1995
      %v2001 = vxor.u32 %v1874, 2147483648
      %v2002 = vmul.f32 %v2001, 1.442695
      %v2003 = vpow.pop %v2002
      %v2004 = vadd.f32 %v2003, 1.0
      %v2005 = vrcp.pop %v2004
      %v2006 = vmul.f32 1.0, %v2005
      %v2007 = vxor.u32 %v1916, 2147483648
      %v2008 = vmul.f32 %v2007, 1.442695
      %v2009 = vpow.pop %v2008
      %v2010 = vadd.f32 %v2009, 1.0
      %v2011 = vrcp.pop %v2010
      %v2012 = vmul.f32 1.0, %v2011
      %v2013 = vtanh.pop %v1958
      %v2014 = vxor.u32 %v2000, 2147483648
      %v2015 = vmul.f32 %v2014, 1.442695
      %v2016 = vpow.pop %v2015
      %v2017 = vadd.f32 %v2016, 1.0
      %v2018 = vrcp.pop %v2017
      %v2019 = vmul.f32 1.0, %v2018
      %v2020 = vld [vmem:[#allocation3] sm:$0xff]
      %v2021 = vmul.f32 %v2012, %v2020
      %v2022 = vmul.f32 %v2006, %v2013
      %v2023 = vadd.f32 %v2021, %v2022
      %v2024 = vtanh.pop %v2023
      %v2025 = vmul.f32 %v2019, %v2024
      %2026 = vst.msk [vmem:[#allocation3] sm:$0xff] %vm304, %v2023
      %2027 = vst.msk [vmem:[#allocation2] sm:$0xff] %vm304, %v2025
      %v2028 = vpack.c.bf16 %v2025, %v2025
      %s2029 = smul.addr %s1820, 4
      %s2030 = scalar_lea.vmem %s248, %s2029
      %2031 = vst.msk [vmem:[%s2030] sm:$0xf] %vm541, %v2028
      %s2032 = smul.u32 %s18, 2
      %s2033 = ssub.s32 0, %s2032
      %s2034 = smul.u32 %s17, %s2033
      %s2035 = sadd.s32 %s18, %s2034
      %s2036 = smul.u32 8, %s2035
      %p2037 = scmp.lt.s32.totalorder %s17, 1
      %s2038 = scalar_select %p2037, %s17, 1
      %p2039 = scmp.lt.s32.totalorder %s2036, 7
      %s2040 = scalar_select %p2039, %s2036, 7
      %s2041 = smul.addr %s2038, 8
      %s2042 = sadd.s32 %s2040, %s2041
      %s2043 = smul.addr %s2042, 4
      %s2044 = scalar_lea.vmem %s2, %s2043
      // Predicated region
      $region33: #{birnn_forward.2} parent=27 // pred_check
        %p2045 = pneg %p115
      $region34: #{birnn_forward.2} parent=27 // pred_check_branch
        %2047 = sbr.rel (%p2045) target = $region36
      $region35: #{birnn_forward.2} parent=27 // pred_region
        %s2048 = smul.u32 %s18, 2
        %s2049 = ssub.s32 0, %s2048
        %s2050 = smul.u32 %s17, %s2049
        %s2051 = sadd.s32 %s18, %s2050
        %s2052 = smul.u32 8, %s2051
      $region36: #{birnn_forward.2} parent=27 // pred_fallthru
        _
    $region28: #{birnn_forward.2} parent=5 // pred_fallthru
      _
    %p2053 = scmp.le.s32.totalorder 2, %s8
    // Predicated region
    $region37: #{birnn_forward.2} parent=5 // pred_check
      %p2054 = pneg %p2053
    $region38: #{birnn_forward.2} parent=5 // pred_check_branch
      %2056 = sbr.rel (%p2054) target = $region40
    $region39: #{birnn_forward.2} parent=5 // pred_region
      %s2057 = ssub.s32 %s8, 2
      // Predicated region
      $region41: #{birnn_forward.2} parent=39 // pred_check
        %p2058 = pneg %p121
      $region42: #{birnn_forward.2} parent=39 // pred_check_branch
        %2060 = sbr.rel (%p2058) target = $region44
      $region43: #{birnn_forward.2} parent=39 // pred_region
        %s2061 = smul.u32 %s20, 2
        %s2062 = ssub.s32 0, %s2061
        %s2063 = smul.u32 %s19, %s2062
        %s2064 = sadd.s32 %s20, %s2063
        %s2065 = smul.u32 8, %s2064
        %p2066 = scmp.lt.s32.totalorder %s19, 1
        %s2067 = scalar_select %p2066, %s19, 1
        %p2068 = scmp.lt.s32.totalorder %s2065, 7
        %s2069 = scalar_select %p2068, %s2065, 7
        %s2070 = smul.addr %s2067, 8
        %s2071 = sadd.s32 %s2069, %s2070
        %s2072 = smul.addr %s2071, 4
        %s2073 = scalar_lea.vmem %s2, %s2072
      $region44: #{birnn_forward.2} parent=39 // pred_fallthru
        _
    $region40: #{birnn_forward.2} parent=5 // pred_fallthru
      _
  $region6: #{birnn_forward.2} parent=0 // loop_footer
    %s12 = sadd.s32 1, %s8
  $region7: #{birnn_forward.2} parent=0 // loop_footer_branch
    %7 = sbr.rel target = $region3
  $region8: #{birnn_forward.2} parent=0 // loop_exit
    _

</llo_original>
